<compile_context>
chip_gen: v5e
topology: v5e:2x2
jax: 0.10.0
libtpu: 0.0.40
codegen_flags: <defaults>
</compile_context>

<pallas_src>
import jax
import jax.numpy as jnp
from jax.experimental import pallas as pl
from jax.experimental.pallas import tpu as pltpu


def _make_bilstm_stack_kernel(num_layers: int, hidden: int):
    """Build a kernel processing the whole bidirectional-LSTM stack in VMEM."""
    L, H = num_layers, hidden
    G = 4 * H

    def kernel(*refs):
        # refs layout (no grid, everything whole-array in VMEM):
        #   refs[0]              : x      (S, B, I)        time-major input
        #   refs[1 : 1+3L]       : per layer (wih_t, whh_bd, bias)
        #       wih_t  (I_l, 8H)  = [W_ih_fwd.T | W_ih_bwd.T]
        #       whh_bd (2H, 8H)   = blockdiag(W_hh_fwd.T, W_hh_bwd.T)
        #       bias   (1, 8H)    = [b_ih_f + b_hh_f | b_ih_b + b_hh_b]
        #   refs[1+3L]           : out    (S, B, 2H)       [fwd | bwd]
        #   refs[2+3L : 5+3L]    : scratch: xg (S,B,8H), of (S,B,H), ob (S,B,H)
        x_ref = refs[0]
        w_refs = refs[1:1 + 3 * L]
        out_ref = refs[1 + 3 * L]
        xg_ref, of_ref, ob_ref = refs[2 + 3 * L:5 + 3 * L]

        S, B, _ = x_ref.shape

        def cell(g, c_prev):
            i = jax.nn.sigmoid(g[:, 0 * H:1 * H])
            f = jax.nn.sigmoid(g[:, 1 * H:2 * H])
            gg = jnp.tanh(g[:, 2 * H:3 * H])
            o = jax.nn.sigmoid(g[:, 3 * H:4 * H])
            c_new = f * c_prev + i * gg
            return o * jnp.tanh(c_new), c_new

        for l in range(L):
            wih_ref = w_refs[3 * l]
            wbd_ref = w_refs[3 * l + 1]
            b_ref = w_refs[3 * l + 2]

            # Layer input: original x for layer 0, previous layer's output
            # (already sitting in the VMEM output ref) afterwards.
            if l == 0:
                x_in = x_ref[...].astype(jnp.float32)          # (S, B, I)
            else:
                x_in = out_ref[...].astype(jnp.float32)        # (S, B, 2H)
            in_f = x_in.shape[-1]

            # Fused input projection: all timesteps x both directions.
            xg = jnp.dot(x_in.reshape(S * B, in_f), wih_ref[...],
                         preferred_element_type=jnp.float32) + b_ref[...]
            xg_ref[...] = xg.reshape(S, B, 2 * G)

            def step(t, carry):
                h_cat, c_f, c_b = carry                        # (B,2H),(B,H),(B,H)
                tb = S - 1 - t
                # One block-diagonal matmul advances both directions.
                hh = jnp.dot(h_cat, wbd_ref[...],
                             preferred_element_type=jnp.float32)   # (B, 8H)
                gf = xg_ref[t][:, :G] + hh[:, :G]
                gb = xg_ref[tb][:, G:] + hh[:, G:]
                h_f, c_f = cell(gf, c_f)
                h_b, c_b = cell(gb, c_b)
                of_ref[t] = h_f
                ob_ref[tb] = h_b
                return jnp.concatenate([h_f, h_b], axis=1), c_f, c_b

            init = (jnp.zeros((B, 2 * H), jnp.float32),   # h (fwd | bwd)
                    jnp.zeros((B, H), jnp.float32),       # c fwd
                    jnp.zeros((B, H), jnp.float32))       # c bwd
            jax.lax.fori_loop(0, S, step, init, unroll=True)

            # Layer output = [fwd | bwd], written into the (VMEM) output ref,
            # which is also the next layer's input buffer.
            out_ref[:, :, :H] = of_ref[...].astype(out_ref.dtype)
            out_ref[:, :, H:] = ob_ref[...].astype(out_ref.dtype)

    return kernel


def bilstm_forward(x, params):
    """x: (B, S, input_size); params: per layer ((fwd 4-tuple), (bwd 4-tuple))
    with torch nn.LSTM parameter layout/shapes. Returns (B, S, 2H)."""
    B, S, _ = x.shape
    L = len(params)
    H = params[0][0][1].shape[1]          # whh_fwd of layer 0: (4H, H)

    # One-time weight preprocessing (pure JAX, tiny):
    flat_weights = []
    for (wih_f, whh_f, bih_f, bhh_f), (wih_b, whh_b, bih_b, bhh_b) in params:
        wih_t = jnp.concatenate([wih_f.T, wih_b.T], axis=1).astype(jnp.float32)
        whh_bd = jnp.zeros((2 * H, 8 * H), jnp.float32)
        whh_bd = whh_bd.at[:H, :4 * H].set(whh_f.T.astype(jnp.float32))
        whh_bd = whh_bd.at[H:, 4 * H:].set(whh_b.T.astype(jnp.float32))
        bias = jnp.concatenate([bih_f + bhh_f, bih_b + bhh_b]).astype(
            jnp.float32).reshape(1, 8 * H)
        flat_weights += [wih_t, whh_bd, bias]

    x_tm = jnp.transpose(x, (1, 0, 2))                         # (S, B, I)

    out_tm = pl.pallas_call(
        _make_bilstm_stack_kernel(L, H),
        out_shape=jax.ShapeDtypeStruct((S, B, 2 * H), x.dtype),
        in_specs=[pl.BlockSpec(memory_space=pltpu.MemorySpace.VMEM)]
        * (1 + 3 * L),
        out_specs=pl.BlockSpec(memory_space=pltpu.MemorySpace.VMEM),
        scratch_shapes=[
            pltpu.VMEM((S, B, 8 * H), jnp.float32),   # fused input gates
            pltpu.VMEM((S, B, H), jnp.float32),       # fwd hidden states
            pltpu.VMEM((S, B, H), jnp.float32),       # bwd hidden states
        ],
    )(x_tm, *flat_weights)

    return jnp.transpose(out_tm, (1, 0, 2))                    # (B, S, 2H)


# ---------------------------- pure-JAX reference ----------------------------

def _lstm_cell_ref(x_t, h, c, w_ih, w_hh, b_ih, b_hh):
    g = x_t @ w_ih.T + b_ih + h @ w_hh.T + b_hh
    i, f, gg, o = jnp.split(g, 4, axis=-1)
    c = jax.nn.sigmoid(f) * c + jax.nn.sigmoid(i) * jnp.tanh(gg)
    h = jax.nn.sigmoid(o) * jnp.tanh(c)
    return h, c


def bilstm_reference(x, params):
    B, S, _ = x.shape
    out = x
    for (wih_f, whh_f, bih_f, bhh_f), (wih_b, whh_b, bih_b, bhh_b) in params:
        H = whh_f.shape[1]
        h = jnp.zeros((B, H), jnp.float32)
        c = jnp.zeros((B, H), jnp.float32)
        fwd = []
        for t in range(S):
            h, c = _lstm_cell_ref(out[:, t], h, c, wih_f, whh_f, bih_f, bhh_f)
            fwd.append(h)
        h = jnp.zeros((B, H), jnp.float32)
        c = jnp.zeros((B, H), jnp.float32)
        bwd = [None] * S
        for t in range(S - 1, -1, -1):
            h, c = _lstm_cell_ref(out[:, t], h, c, wih_b, whh_b, bih_b, bhh_b)
            bwd[t] = h
        out = jnp.concatenate(
            [jnp.stack(fwd, axis=1), jnp.stack(bwd, axis=1)], axis=-1)
    return out


if __name__ == "__main__":
    B, S = 2, 8
    input_size, hidden_size, num_layers = 32, 32, 2

    key = jax.random.PRNGKey(0)
    key, kx = jax.random.split(key)
    x = jax.random.normal(kx, (B, S, input_size), dtype=jnp.float32)

    # Deterministic synthetic nn.LSTM parameters (torch layout / init range)
    scale = 1.0 / float(hidden_size) ** 0.5
    params = []
    for layer in range(num_layers):
        in_l = input_size if layer == 0 else 2 * hidden_size
        dirs = []
        for _ in range(2):   # forward, backward
            key, k1, k2, k3, k4 = jax.random.split(key, 5)
            w_ih = jax.random.uniform(k1, (4 * hidden_size, in_l),
                                      jnp.float32, -scale, scale)
            w_hh = jax.random.uniform(k2, (4 * hidden_size, hidden_size),
                                      jnp.float32, -scale, scale)
            b_ih = jax.random.uniform(k3, (4 * hidden_size,),
                                      jnp.float32, -scale, scale)
            b_hh = jax.random.uniform(k4, (4 * hidden_size,),
                                      jnp.float32, -scale, scale)
            dirs.append((w_ih, w_hh, b_ih, b_hh))
        params.append(tuple(dirs))

    out = jax.jit(bilstm_forward)(x, params)
    out = jax.block_until_ready(out)

    ref = bilstm_reference(x, params)
    assert out.shape == (B, S, 2 * hidden_size)
    assert jnp.allclose(out, ref, atol=1e-4, rtol=1e-4), "mismatch vs. reference"

    print("KERNEL_OK")
</pallas_src>

<mosaic_0001>
module attributes {stable_mosaic.version = 11 : i64} {
  func.func @kernel(%arg0: memref<8x2x32xf32, #tpu.memory_space<vmem>>, %arg1: memref<32x256xf32, #tpu.memory_space<vmem>>, %arg2: memref<64x256xf32, #tpu.memory_space<vmem>>, %arg3: memref<1x256xf32, #tpu.memory_space<vmem>>, %arg4: memref<64x256xf32, #tpu.memory_space<vmem>>, %arg5: memref<64x256xf32, #tpu.memory_space<vmem>>, %arg6: memref<1x256xf32, #tpu.memory_space<vmem>>, %arg7: memref<8x2x64xf32, #tpu.memory_space<vmem>>, %arg8: memref<8x2x256xf32, #tpu.memory_space<vmem>>, %arg9: memref<8x2x32xf32, #tpu.memory_space<vmem>>, %arg10: memref<8x2x32xf32, #tpu.memory_space<vmem>>) attributes {dimension_semantics = [], scalar_prefetch = 0 : i64, scratch_operands = 3 : i64, tpu.core_type = #tpu.core_type<tc>} {
    %c0 = arith.constant 0 : index
    %c0_0 = arith.constant 0 : index
    %c0_1 = arith.constant 0 : index
    %0 = vector.load %arg0[%c0, %c0_0, %c0_1] : memref<8x2x32xf32, #tpu.memory_space<vmem>>, vector<8x2x32xf32>
    %1 = vector.shape_cast %0 : vector<8x2x32xf32> to vector<16x32xf32>
    %c0_2 = arith.constant 0 : index
    %c0_3 = arith.constant 0 : index
    %2 = vector.load %arg1[%c0_2, %c0_3] : memref<32x256xf32, #tpu.memory_space<vmem>>, vector<32x256xf32>
    %cst = arith.constant dense<0.000000e+00> : vector<16x256xf32>
    %3 = tpu.matmul %1, %2, %cst {dimension_numbers = #tpu.dot_dimension_numbers<[1], [0], [0], [1], [0, 0, 1, 1], [], []>} : vector<16x32xf32>, vector<32x256xf32>, vector<16x256xf32> -> vector<16x256xf32>
    %c0_4 = arith.constant 0 : index
    %c0_5 = arith.constant 0 : index
    %4 = vector.load %arg3[%c0_4, %c0_5] : memref<1x256xf32, #tpu.memory_space<vmem>>, vector<1x256xf32>
    %5 = vector.broadcast %4 : vector<1x256xf32> to vector<16x256xf32>
    %6 = arith.addf %3, %5 : vector<16x256xf32>
    %7 = vector.shape_cast %6 : vector<16x256xf32> to vector<8x2x256xf32>
    %c0_6 = arith.constant 0 : index
    %c0_7 = arith.constant 0 : index
    %c0_8 = arith.constant 0 : index
    %8 = vector.load %arg8[%c0_6, %c0_7, %c0_8] : memref<8x2x256xf32, #tpu.memory_space<vmem>>, vector<8x2x256xf32>
    tpu.vector_store %arg8[%c0_6, %c0_7, %c0_8], %7 {strides = array<i32>} : memref<8x2x256xf32, #tpu.memory_space<vmem>>, vector<8x2x256xf32>,
    %cst_9 = arith.constant 0.000000e+00 : f32
    %9 = vector.broadcast %cst_9 : f32 to vector<2x64xf32>
    %cst_10 = arith.constant 0.000000e+00 : f32
    %10 = vector.broadcast %cst_10 : f32 to vector<2x32xf32>
    %cst_11 = arith.constant 0.000000e+00 : f32
    %11 = vector.broadcast %cst_11 : f32 to vector<2x32xf32>
    %c0_i32 = arith.constant 0 : i32
    %c7_i32 = arith.constant 7 : i32
    %12 = arith.subi %c7_i32, %c0_i32 : i32
    %c0_12 = arith.constant 0 : index
    %c0_13 = arith.constant 0 : index
    %13 = vector.load %arg2[%c0_12, %c0_13] : memref<64x256xf32, #tpu.memory_space<vmem>>, vector<64x256xf32>
    %cst_14 = arith.constant dense<0.000000e+00> : vector<2x256xf32>
    %14 = tpu.matmul %9, %13, %cst_14 {dimension_numbers = #tpu.dot_dimension_numbers<[1], [0], [0], [1], [0, 0, 1, 1], [], []>} : vector<2x64xf32>, vector<64x256xf32>, vector<2x256xf32> -> vector<2x256xf32>
    %15 = arith.index_cast %c0_i32 : i32 to index
    %c0_15 = arith.constant 0 : index
    %c0_16 = arith.constant 0 : index
    %16 = vector.load %arg8[%15, %c0_15, %c0_16] : memref<8x2x256xf32, #tpu.memory_space<vmem>>, vector<1x2x256xf32>
    %17 = vector.shape_cast %16 : vector<1x2x256xf32> to vector<2x256xf32>
    %18 = vector.extract_strided_slice %17 {offsets = [0, 0], sizes = [2, 128], strides = [1, 1]} : vector<2x256xf32> to vector<2x128xf32>
    %19 = vector.extract_strided_slice %14 {offsets = [0, 0], sizes = [2, 128], strides = [1, 1]} : vector<2x256xf32> to vector<2x128xf32>
    %20 = arith.addf %18, %19 : vector<2x128xf32>
    %21 = arith.index_cast %12 : i32 to index
    %c0_17 = arith.constant 0 : index
    %c0_18 = arith.constant 0 : index
    %22 = vector.load %arg8[%21, %c0_17, %c0_18] : memref<8x2x256xf32, #tpu.memory_space<vmem>>, vector<1x2x256xf32>
    %23 = vector.shape_cast %22 : vector<1x2x256xf32> to vector<2x256xf32>
    %24 = vector.extract_strided_slice %23 {offsets = [0, 128], sizes = [2, 128], strides = [1, 1]} : vector<2x256xf32> to vector<2x128xf32>
    %25 = vector.extract_strided_slice %14 {offsets = [0, 128], sizes = [2, 128], strides = [1, 1]} : vector<2x256xf32> to vector<2x128xf32>
    %26 = arith.addf %24, %25 : vector<2x128xf32>
    %27 = vector.extract_strided_slice %20 {offsets = [0, 0], sizes = [2, 32], strides = [1, 1]} : vector<2x128xf32> to vector<2x32xf32>
    %28 = arith.negf %27 : vector<2x32xf32>
    %29 = math.exp %28 : vector<2x32xf32>
    %cst_19 = arith.constant 1.000000e+00 : f32
    %30 = vector.broadcast %cst_19 : f32 to vector<2x32xf32>
    %31 = arith.addf %30, %29 : vector<2x32xf32>
    %32 = arith.divf %30, %31 : vector<2x32xf32>
    %33 = vector.extract_strided_slice %20 {offsets = [0, 32], sizes = [2, 32], strides = [1, 1]} : vector<2x128xf32> to vector<2x32xf32>
    %34 = arith.negf %33 : vector<2x32xf32>
    %35 = math.exp %34 : vector<2x32xf32>
    %cst_20 = arith.constant 1.000000e+00 : f32
    %36 = vector.broadcast %cst_20 : f32 to vector<2x32xf32>
    %37 = arith.addf %36, %35 : vector<2x32xf32>
    %38 = arith.divf %36, %37 : vector<2x32xf32>
    %39 = vector.extract_strided_slice %20 {offsets = [0, 64], sizes = [2, 32], strides = [1, 1]} : vector<2x128xf32> to vector<2x32xf32>
    %40 = math.tanh %39 : vector<2x32xf32>
    %41 = vector.extract_strided_slice %20 {offsets = [0, 96], sizes = [2, 32], strides = [1, 1]} : vector<2x128xf32> to vector<2x32xf32>
    %42 = arith.negf %41 : vector<2x32xf32>
    %43 = math.exp %42 : vector<2x32xf32>
    %cst_21 = arith.constant 1.000000e+00 : f32
    %44 = vector.broadcast %cst_21 : f32 to vector<2x32xf32>
    %45 = arith.addf %44, %43 : vector<2x32xf32>
    %46 = arith.divf %44, %45 : vector<2x32xf32>
    %47 = arith.mulf %38, %10 : vector<2x32xf32>
    %48 = arith.mulf %32, %40 : vector<2x32xf32>
    %49 = arith.addf %47, %48 : vector<2x32xf32>
    %50 = math.tanh %49 : vector<2x32xf32>
    %51 = arith.mulf %46, %50 : vector<2x32xf32>
    %52 = vector.extract_strided_slice %26 {offsets = [0, 0], sizes = [2, 32], strides = [1, 1]} : vector<2x128xf32> to vector<2x32xf32>
    %53 = arith.negf %52 : vector<2x32xf32>
    %54 = math.exp %53 : vector<2x32xf32>
    %cst_22 = arith.constant 1.000000e+00 : f32
    %55 = vector.broadcast %cst_22 : f32 to vector<2x32xf32>
    %56 = arith.addf %55, %54 : vector<2x32xf32>
    %57 = arith.divf %55, %56 : vector<2x32xf32>
    %58 = vector.extract_strided_slice %26 {offsets = [0, 32], sizes = [2, 32], strides = [1, 1]} : vector<2x128xf32> to vector<2x32xf32>
    %59 = arith.negf %58 : vector<2x32xf32>
    %60 = math.exp %59 : vector<2x32xf32>
    %cst_23 = arith.constant 1.000000e+00 : f32
    %61 = vector.broadcast %cst_23 : f32 to vector<2x32xf32>
    %62 = arith.addf %61, %60 : vector<2x32xf32>
    %63 = arith.divf %61, %62 : vector<2x32xf32>
    %64 = vector.extract_strided_slice %26 {offsets = [0, 64], sizes = [2, 32], strides = [1, 1]} : vector<2x128xf32> to vector<2x32xf32>
    %65 = math.tanh %64 : vector<2x32xf32>
    %66 = vector.extract_strided_slice %26 {offsets = [0, 96], sizes = [2, 32], strides = [1, 1]} : vector<2x128xf32> to vector<2x32xf32>
    %67 = arith.negf %66 : vector<2x32xf32>
    %68 = math.exp %67 : vector<2x32xf32>
    %cst_24 = arith.constant 1.000000e+00 : f32
    %69 = vector.broadcast %cst_24 : f32 to vector<2x32xf32>
    %70 = arith.addf %69, %68 : vector<2x32xf32>
    %71 = arith.divf %69, %70 : vector<2x32xf32>
    %72 = arith.mulf %63, %11 : vector<2x32xf32>
    %73 = arith.mulf %57, %65 : vector<2x32xf32>
    %74 = arith.addf %72, %73 : vector<2x32xf32>
    %75 = math.tanh %74 : vector<2x32xf32>
    %76 = arith.mulf %71, %75 : vector<2x32xf32>
    %77 = arith.index_cast %c0_i32 : i32 to index
    %c0_25 = arith.constant 0 : index
    %c0_26 = arith.constant 0 : index
    %78 = vector.load %arg9[%77, %c0_25, %c0_26] : memref<8x2x32xf32, #tpu.memory_space<vmem>>, vector<1x2x32xf32>
    %79 = vector.shape_cast %78 : vector<1x2x32xf32> to vector<2x32xf32>
    %80 = vector.shape_cast %51 : vector<2x32xf32> to vector<1x2x32xf32>
    tpu.vector_store %arg9[%77, %c0_25, %c0_26], %80 {strides = array<i32>} : memref<8x2x32xf32, #tpu.memory_space<vmem>>, vector<1x2x32xf32>,
    %81 = arith.index_cast %12 : i32 to index
    %c0_27 = arith.constant 0 : index
    %c0_28 = arith.constant 0 : index
    %82 = vector.load %arg10[%81, %c0_27, %c0_28] : memref<8x2x32xf32, #tpu.memory_space<vmem>>, vector<1x2x32xf32>
    %83 = vector.shape_cast %82 : vector<1x2x32xf32> to vector<2x32xf32>
    %84 = vector.shape_cast %76 : vector<2x32xf32> to vector<1x2x32xf32>
    tpu.vector_store %arg10[%81, %c0_27, %c0_28], %84 {strides = array<i32>} : memref<8x2x32xf32, #tpu.memory_space<vmem>>, vector<1x2x32xf32>,
    %85 = tpu.concatenate %51, %76 in 1 : vector<2x32xf32>, vector<2x32xf32> -> vector<2x64xf32>
    %c1_i32 = arith.constant 1 : i32
    %c7_i32_29 = arith.constant 7 : i32
    %86 = arith.subi %c7_i32_29, %c1_i32 : i32
    %c0_30 = arith.constant 0 : index
    %c0_31 = arith.constant 0 : index
    %87 = vector.load %arg2[%c0_30, %c0_31] : memref<64x256xf32, #tpu.memory_space<vmem>>, vector<64x256xf32>
    %cst_32 = arith.constant dense<0.000000e+00> : vector<2x256xf32>
    %88 = tpu.matmul %85, %87, %cst_32 {dimension_numbers = #tpu.dot_dimension_numbers<[1], [0], [0], [1], [0, 0, 1, 1], [], []>} : vector<2x64xf32>, vector<64x256xf32>, vector<2x256xf32> -> vector<2x256xf32>
    %89 = arith.index_cast %c1_i32 : i32 to index
    %c0_33 = arith.constant 0 : index
    %c0_34 = arith.constant 0 : index
    %90 = vector.load %arg8[%89, %c0_33, %c0_34] : memref<8x2x256xf32, #tpu.memory_space<vmem>>, vector<1x2x256xf32>
    %91 = vector.shape_cast %90 : vector<1x2x256xf32> to vector<2x256xf32>
    %92 = vector.extract_strided_slice %91 {offsets = [0, 0], sizes = [2, 128], strides = [1, 1]} : vector<2x256xf32> to vector<2x128xf32>
    %93 = vector.extract_strided_slice %88 {offsets = [0, 0], sizes = [2, 128], strides = [1, 1]} : vector<2x256xf32> to vector<2x128xf32>
    %94 = arith.addf %92, %93 : vector<2x128xf32>
    %95 = arith.index_cast %86 : i32 to index
    %c0_35 = arith.constant 0 : index
    %c0_36 = arith.constant 0 : index
    %96 = vector.load %arg8[%95, %c0_35, %c0_36] : memref<8x2x256xf32, #tpu.memory_space<vmem>>, vector<1x2x256xf32>
    %97 = vector.shape_cast %96 : vector<1x2x256xf32> to vector<2x256xf32>
    %98 = vector.extract_strided_slice %97 {offsets = [0, 128], sizes = [2, 128], strides = [1, 1]} : vector<2x256xf32> to vector<2x128xf32>
    %99 = vector.extract_strided_slice %88 {offsets = [0, 128], sizes = [2, 128], strides = [1, 1]} : vector<2x256xf32> to vector<2x128xf32>
    %100 = arith.addf %98, %99 : vector<2x128xf32>
    %101 = vector.extract_strided_slice %94 {offsets = [0, 0], sizes = [2, 32], strides = [1, 1]} : vector<2x128xf32> to vector<2x32xf32>
    %102 = arith.negf %101 : vector<2x32xf32>
    %103 = math.exp %102 : vector<2x32xf32>
    %cst_37 = arith.constant 1.000000e+00 : f32
    %104 = vector.broadcast %cst_37 : f32 to vector<2x32xf32>
    %105 = arith.addf %104, %103 : vector<2x32xf32>
    %106 = arith.divf %104, %105 : vector<2x32xf32>
    %107 = vector.extract_strided_slice %94 {offsets = [0, 32], sizes = [2, 32], strides = [1, 1]} : vector<2x128xf32> to vector<2x32xf32>
    %108 = arith.negf %107 : vector<2x32xf32>
    %109 = math.exp %108 : vector<2x32xf32>
    %cst_38 = arith.constant 1.000000e+00 : f32
    %110 = vector.broadcast %cst_38 : f32 to vector<2x32xf32>
    %111 = arith.addf %110, %109 : vector<2x32xf32>
    %112 = arith.divf %110, %111 : vector<2x32xf32>
    %113 = vector.extract_strided_slice %94 {offsets = [0, 64], sizes = [2, 32], strides = [1, 1]} : vector<2x128xf32> to vector<2x32xf32>
    %114 = math.tanh %113 : vector<2x32xf32>
    %115 = vector.extract_strided_slice %94 {offsets = [0, 96], sizes = [2, 32], strides = [1, 1]} : vector<2x128xf32> to vector<2x32xf32>
    %116 = arith.negf %115 : vector<2x32xf32>
    %117 = math.exp %116 : vector<2x32xf32>
    %cst_39 = arith.constant 1.000000e+00 : f32
    %118 = vector.broadcast %cst_39 : f32 to vector<2x32xf32>
    %119 = arith.addf %118, %117 : vector<2x32xf32>
    %120 = arith.divf %118, %119 : vector<2x32xf32>
    %121 = arith.mulf %112, %49 : vector<2x32xf32>
    %122 = arith.mulf %106, %114 : vector<2x32xf32>
    %123 = arith.addf %121, %122 : vector<2x32xf32>
    %124 = math.tanh %123 : vector<2x32xf32>
    %125 = arith.mulf %120, %124 : vector<2x32xf32>
    %126 = vector.extract_strided_slice %100 {offsets = [0, 0], sizes = [2, 32], strides = [1, 1]} : vector<2x128xf32> to vector<2x32xf32>
    %127 = arith.negf %126 : vector<2x32xf32>
    %128 = math.exp %127 : vector<2x32xf32>
    %cst_40 = arith.constant 1.000000e+00 : f32
    %129 = vector.broadcast %cst_40 : f32 to vector<2x32xf32>
    %130 = arith.addf %129, %128 : vector<2x32xf32>
    %131 = arith.divf %129, %130 : vector<2x32xf32>
    %132 = vector.extract_strided_slice %100 {offsets = [0, 32], sizes = [2, 32], strides = [1, 1]} : vector<2x128xf32> to vector<2x32xf32>
    %133 = arith.negf %132 : vector<2x32xf32>
    %134 = math.exp %133 : vector<2x32xf32>
    %cst_41 = arith.constant 1.000000e+00 : f32
    %135 = vector.broadcast %cst_41 : f32 to vector<2x32xf32>
    %136 = arith.addf %135, %134 : vector<2x32xf32>
    %137 = arith.divf %135, %136 : vector<2x32xf32>
    %138 = vector.extract_strided_slice %100 {offsets = [0, 64], sizes = [2, 32], strides = [1, 1]} : vector<2x128xf32> to vector<2x32xf32>
    %139 = math.tanh %138 : vector<2x32xf32>
    %140 = vector.extract_strided_slice %100 {offsets = [0, 96], sizes = [2, 32], strides = [1, 1]} : vector<2x128xf32> to vector<2x32xf32>
    %141 = arith.negf %140 : vector<2x32xf32>
    %142 = math.exp %141 : vector<2x32xf32>
    %cst_42 = arith.constant 1.000000e+00 : f32
    %143 = vector.broadcast %cst_42 : f32 to vector<2x32xf32>
    %144 = arith.addf %143, %142 : vector<2x32xf32>
    %145 = arith.divf %143, %144 : vector<2x32xf32>
    %146 = arith.mulf %137, %74 : vector<2x32xf32>
    %147 = arith.mulf %131, %139 : vector<2x32xf32>
    %148 = arith.addf %146, %147 : vector<2x32xf32>
    %149 = math.tanh %148 : vector<2x32xf32>
    %150 = arith.mulf %145, %149 : vector<2x32xf32>
    %151 = arith.index_cast %c1_i32 : i32 to index
    %c0_43 = arith.constant 0 : index
    %c0_44 = arith.constant 0 : index
    %152 = vector.load %arg9[%151, %c0_43, %c0_44] : memref<8x2x32xf32, #tpu.memory_space<vmem>>, vector<1x2x32xf32>
    %153 = vector.shape_cast %152 : vector<1x2x32xf32> to vector<2x32xf32>
    %154 = vector.shape_cast %125 : vector<2x32xf32> to vector<1x2x32xf32>
    tpu.vector_store %arg9[%151, %c0_43, %c0_44], %154 {strides = array<i32>} : memref<8x2x32xf32, #tpu.memory_space<vmem>>, vector<1x2x32xf32>,
    %155 = arith.index_cast %86 : i32 to index
    %c0_45 = arith.constant 0 : index
    %c0_46 = arith.constant 0 : index
    %156 = vector.load %arg10[%155, %c0_45, %c0_46] : memref<8x2x32xf32, #tpu.memory_space<vmem>>, vector<1x2x32xf32>
    %157 = vector.shape_cast %156 : vector<1x2x32xf32> to vector<2x32xf32>
    %158 = vector.shape_cast %150 : vector<2x32xf32> to vector<1x2x32xf32>
    tpu.vector_store %arg10[%155, %c0_45, %c0_46], %158 {strides = array<i32>} : memref<8x2x32xf32, #tpu.memory_space<vmem>>, vector<1x2x32xf32>,
    %159 = tpu.concatenate %125, %150 in 1 : vector<2x32xf32>, vector<2x32xf32> -> vector<2x64xf32>
    %c2_i32 = arith.constant 2 : i32
    %c7_i32_47 = arith.constant 7 : i32
    %160 = arith.subi %c7_i32_47, %c2_i32 : i32
    %c0_48 = arith.constant 0 : index
    %c0_49 = arith.constant 0 : index
    %161 = vector.load %arg2[%c0_48, %c0_49] : memref<64x256xf32, #tpu.memory_space<vmem>>, vector<64x256xf32>
    %cst_50 = arith.constant dense<0.000000e+00> : vector<2x256xf32>
    %162 = tpu.matmul %159, %161, %cst_50 {dimension_numbers = #tpu.dot_dimension_numbers<[1], [0], [0], [1], [0, 0, 1, 1], [], []>} : vector<2x64xf32>, vector<64x256xf32>, vector<2x256xf32> -> vector<2x256xf32>
    %163 = arith.index_cast %c2_i32 : i32 to index
    %c0_51 = arith.constant 0 : index
    %c0_52 = arith.constant 0 : index
    %164 = vector.load %arg8[%163, %c0_51, %c0_52] : memref<8x2x256xf32, #tpu.memory_space<vmem>>, vector<1x2x256xf32>
    %165 = vector.shape_cast %164 : vector<1x2x256xf32> to vector<2x256xf32>
    %166 = vector.extract_strided_slice %165 {offsets = [0, 0], sizes = [2, 128], strides = [1, 1]} : vector<2x256xf32> to vector<2x128xf32>
    %167 = vector.extract_strided_slice %162 {offsets = [0, 0], sizes = [2, 128], strides = [1, 1]} : vector<2x256xf32> to vector<2x128xf32>
    %168 = arith.addf %166, %167 : vector<2x128xf32>
    %169 = arith.index_cast %160 : i32 to index
    %c0_53 = arith.constant 0 : index
    %c0_54 = arith.constant 0 : index
    %170 = vector.load %arg8[%169, %c0_53, %c0_54] : memref<8x2x256xf32, #tpu.memory_space<vmem>>, vector<1x2x256xf32>
    %171 = vector.shape_cast %170 : vector<1x2x256xf32> to vector<2x256xf32>
    %172 = vector.extract_strided_slice %171 {offsets = [0, 128], sizes = [2, 128], strides = [1, 1]} : vector<2x256xf32> to vector<2x128xf32>
    %173 = vector.extract_strided_slice %162 {offsets = [0, 128], sizes = [2, 128], strides = [1, 1]} : vector<2x256xf32> to vector<2x128xf32>
    %174 = arith.addf %172, %173 : vector<2x128xf32>
    %175 = vector.extract_strided_slice %168 {offsets = [0, 0], sizes = [2, 32], strides = [1, 1]} : vector<2x128xf32> to vector<2x32xf32>
    %176 = arith.negf %175 : vector<2x32xf32>
    %177 = math.exp %176 : vector<2x32xf32>
    %cst_55 = arith.constant 1.000000e+00 : f32
    %178 = vector.broadcast %cst_55 : f32 to vector<2x32xf32>
    %179 = arith.addf %178, %177 : vector<2x32xf32>
    %180 = arith.divf %178, %179 : vector<2x32xf32>
    %181 = vector.extract_strided_slice %168 {offsets = [0, 32], sizes = [2, 32], strides = [1, 1]} : vector<2x128xf32> to vector<2x32xf32>
    %182 = arith.negf %181 : vector<2x32xf32>
    %183 = math.exp %182 : vector<2x32xf32>
    %cst_56 = arith.constant 1.000000e+00 : f32
    %184 = vector.broadcast %cst_56 : f32 to vector<2x32xf32>
    %185 = arith.addf %184, %183 : vector<2x32xf32>
    %186 = arith.divf %184, %185 : vector<2x32xf32>
    %187 = vector.extract_strided_slice %168 {offsets = [0, 64], sizes = [2, 32], strides = [1, 1]} : vector<2x128xf32> to vector<2x32xf32>
    %188 = math.tanh %187 : vector<2x32xf32>
    %189 = vector.extract_strided_slice %168 {offsets = [0, 96], sizes = [2, 32], strides = [1, 1]} : vector<2x128xf32> to vector<2x32xf32>
    %190 = arith.negf %189 : vector<2x32xf32>
    %191 = math.exp %190 : vector<2x32xf32>
    %cst_57 = arith.constant 1.000000e+00 : f32
    %192 = vector.broadcast %cst_57 : f32 to vector<2x32xf32>
    %193 = arith.addf %192, %191 : vector<2x32xf32>
    %194 = arith.divf %192, %193 : vector<2x32xf32>
    %195 = arith.mulf %186, %123 : vector<2x32xf32>
    %196 = arith.mulf %180, %188 : vector<2x32xf32>
    %197 = arith.addf %195, %196 : vector<2x32xf32>
    %198 = math.tanh %197 : vector<2x32xf32>
    %199 = arith.mulf %194, %198 : vector<2x32xf32>
    %200 = vector.extract_strided_slice %174 {offsets = [0, 0], sizes = [2, 32], strides = [1, 1]} : vector<2x128xf32> to vector<2x32xf32>
    %201 = arith.negf %200 : vector<2x32xf32>
    %202 = math.exp %201 : vector<2x32xf32>
    %cst_58 = arith.constant 1.000000e+00 : f32
    %203 = vector.broadcast %cst_58 : f32 to vector<2x32xf32>
    %204 = arith.addf %203, %202 : vector<2x32xf32>
    %205 = arith.divf %203, %204 : vector<2x32xf32>
    %206 = vector.extract_strided_slice %174 {offsets = [0, 32], sizes = [2, 32], strides = [1, 1]} : vector<2x128xf32> to vector<2x32xf32>
    %207 = arith.negf %206 : vector<2x32xf32>
    %208 = math.exp %207 : vector<2x32xf32>
    %cst_59 = arith.constant 1.000000e+00 : f32
    %209 = vector.broadcast %cst_59 : f32 to vector<2x32xf32>
    %210 = arith.addf %209, %208 : vector<2x32xf32>
    %211 = arith.divf %209, %210 : vector<2x32xf32>
    %212 = vector.extract_strided_slice %174 {offsets = [0, 64], sizes = [2, 32], strides = [1, 1]} : vector<2x128xf32> to vector<2x32xf32>
    %213 = math.tanh %212 : vector<2x32xf32>
    %214 = vector.extract_strided_slice %174 {offsets = [0, 96], sizes = [2, 32], strides = [1, 1]} : vector<2x128xf32> to vector<2x32xf32>
    %215 = arith.negf %214 : vector<2x32xf32>
    %216 = math.exp %215 : vector<2x32xf32>
    %cst_60 = arith.constant 1.000000e+00 : f32
    %217 = vector.broadcast %cst_60 : f32 to vector<2x32xf32>
    %218 = arith.addf %217, %216 : vector<2x32xf32>
    %219 = arith.divf %217, %218 : vector<2x32xf32>
    %220 = arith.mulf %211, %148 : vector<2x32xf32>
    %221 = arith.mulf %205, %213 : vector<2x32xf32>
    %222 = arith.addf %220, %221 : vector<2x32xf32>
    %223 = math.tanh %222 : vector<2x32xf32>
    %224 = arith.mulf %219, %223 : vector<2x32xf32>
    %225 = arith.index_cast %c2_i32 : i32 to index
    %c0_61 = arith.constant 0 : index
    %c0_62 = arith.constant 0 : index
    %226 = vector.load %arg9[%225, %c0_61, %c0_62] : memref<8x2x32xf32, #tpu.memory_space<vmem>>, vector<1x2x32xf32>
    %227 = vector.shape_cast %226 : vector<1x2x32xf32> to vector<2x32xf32>
    %228 = vector.shape_cast %199 : vector<2x32xf32> to vector<1x2x32xf32>
    tpu.vector_store %arg9[%225, %c0_61, %c0_62], %228 {strides = array<i32>} : memref<8x2x32xf32, #tpu.memory_space<vmem>>, vector<1x2x32xf32>,
    %229 = arith.index_cast %160 : i32 to index
    %c0_63 = arith.constant 0 : index
    %c0_64 = arith.constant 0 : index
    %230 = vector.load %arg10[%229, %c0_63, %c0_64] : memref<8x2x32xf32, #tpu.memory_space<vmem>>, vector<1x2x32xf32>
    %231 = vector.shape_cast %230 : vector<1x2x32xf32> to vector<2x32xf32>
    %232 = vector.shape_cast %224 : vector<2x32xf32> to vector<1x2x32xf32>
    tpu.vector_store %arg10[%229, %c0_63, %c0_64], %232 {strides = array<i32>} : memref<8x2x32xf32, #tpu.memory_space<vmem>>, vector<1x2x32xf32>,
    %233 = tpu.concatenate %199, %224 in 1 : vector<2x32xf32>, vector<2x32xf32> -> vector<2x64xf32>
    %c3_i32 = arith.constant 3 : i32
    %c7_i32_65 = arith.constant 7 : i32
    %234 = arith.subi %c7_i32_65, %c3_i32 : i32
    %c0_66 = arith.constant 0 : index
    %c0_67 = arith.constant 0 : index
    %235 = vector.load %arg2[%c0_66, %c0_67] : memref<64x256xf32, #tpu.memory_space<vmem>>, vector<64x256xf32>
    %cst_68 = arith.constant dense<0.000000e+00> : vector<2x256xf32>
    %236 = tpu.matmul %233, %235, %cst_68 {dimension_numbers = #tpu.dot_dimension_numbers<[1], [0], [0], [1], [0, 0, 1, 1], [], []>} : vector<2x64xf32>, vector<64x256xf32>, vector<2x256xf32> -> vector<2x256xf32>
    %237 = arith.index_cast %c3_i32 : i32 to index
    %c0_69 = arith.constant 0 : index
    %c0_70 = arith.constant 0 : index
    %238 = vector.load %arg8[%237, %c0_69, %c0_70] : memref<8x2x256xf32, #tpu.memory_space<vmem>>, vector<1x2x256xf32>
    %239 = vector.shape_cast %238 : vector<1x2x256xf32> to vector<2x256xf32>
    %240 = vector.extract_strided_slice %239 {offsets = [0, 0], sizes = [2, 128], strides = [1, 1]} : vector<2x256xf32> to vector<2x128xf32>
    %241 = vector.extract_strided_slice %236 {offsets = [0, 0], sizes = [2, 128], strides = [1, 1]} : vector<2x256xf32> to vector<2x128xf32>
    %242 = arith.addf %240, %241 : vector<2x128xf32>
    %243 = arith.index_cast %234 : i32 to index
    %c0_71 = arith.constant 0 : index
    %c0_72 = arith.constant 0 : index
    %244 = vector.load %arg8[%243, %c0_71, %c0_72] : memref<8x2x256xf32, #tpu.memory_space<vmem>>, vector<1x2x256xf32>
    %245 = vector.shape_cast %244 : vector<1x2x256xf32> to vector<2x256xf32>
    %246 = vector.extract_strided_slice %245 {offsets = [0, 128], sizes = [2, 128], strides = [1, 1]} : vector<2x256xf32> to vector<2x128xf32>
    %247 = vector.extract_strided_slice %236 {offsets = [0, 128], sizes = [2, 128], strides = [1, 1]} : vector<2x256xf32> to vector<2x128xf32>
    %248 = arith.addf %246, %247 : vector<2x128xf32>
    %249 = vector.extract_strided_slice %242 {offsets = [0, 0], sizes = [2, 32], strides = [1, 1]} : vector<2x128xf32> to vector<2x32xf32>
    %250 = arith.negf %249 : vector<2x32xf32>
    %251 = math.exp %250 : vector<2x32xf32>
    %cst_73 = arith.constant 1.000000e+00 : f32
    %252 = vector.broadcast %cst_73 : f32 to vector<2x32xf32>
    %253 = arith.addf %252, %251 : vector<2x32xf32>
    %254 = arith.divf %252, %253 : vector<2x32xf32>
    %255 = vector.extract_strided_slice %242 {offsets = [0, 32], sizes = [2, 32], strides = [1, 1]} : vector<2x128xf32> to vector<2x32xf32>
    %256 = arith.negf %255 : vector<2x32xf32>
    %257 = math.exp %256 : vector<2x32xf32>
    %cst_74 = arith.constant 1.000000e+00 : f32
    %258 = vector.broadcast %cst_74 : f32 to vector<2x32xf32>
    %259 = arith.addf %258, %257 : vector<2x32xf32>
    %260 = arith.divf %258, %259 : vector<2x32xf32>
    %261 = vector.extract_strided_slice %242 {offsets = [0, 64], sizes = [2, 32], strides = [1, 1]} : vector<2x128xf32> to vector<2x32xf32>
    %262 = math.tanh %261 : vector<2x32xf32>
    %263 = vector.extract_strided_slice %242 {offsets = [0, 96], sizes = [2, 32], strides = [1, 1]} : vector<2x128xf32> to vector<2x32xf32>
    %264 = arith.negf %263 : vector<2x32xf32>
    %265 = math.exp %264 : vector<2x32xf32>
    %cst_75 = arith.constant 1.000000e+00 : f32
    %266 = vector.broadcast %cst_75 : f32 to vector<2x32xf32>
    %267 = arith.addf %266, %265 : vector<2x32xf32>
    %268 = arith.divf %266, %267 : vector<2x32xf32>
    %269 = arith.mulf %260, %197 : vector<2x32xf32>
    %270 = arith.mulf %254, %262 : vector<2x32xf32>
    %271 = arith.addf %269, %270 : vector<2x32xf32>
    %272 = math.tanh %271 : vector<2x32xf32>
    %273 = arith.mulf %268, %272 : vector<2x32xf32>
    %274 = vector.extract_strided_slice %248 {offsets = [0, 0], sizes = [2, 32], strides = [1, 1]} : vector<2x128xf32> to vector<2x32xf32>
    %275 = arith.negf %274 : vector<2x32xf32>
    %276 = math.exp %275 : vector<2x32xf32>
    %cst_76 = arith.constant 1.000000e+00 : f32
    %277 = vector.broadcast %cst_76 : f32 to vector<2x32xf32>
    %278 = arith.addf %277, %276 : vector<2x32xf32>
    %279 = arith.divf %277, %278 : vector<2x32xf32>
    %280 = vector.extract_strided_slice %248 {offsets = [0, 32], sizes = [2, 32], strides = [1, 1]} : vector<2x128xf32> to vector<2x32xf32>
    %281 = arith.negf %280 : vector<2x32xf32>
    %282 = math.exp %281 : vector<2x32xf32>
    %cst_77 = arith.constant 1.000000e+00 : f32
    %283 = vector.broadcast %cst_77 : f32 to vector<2x32xf32>
    %284 = arith.addf %283, %282 : vector<2x32xf32>
    %285 = arith.divf %283, %284 : vector<2x32xf32>
    %286 = vector.extract_strided_slice %248 {offsets = [0, 64], sizes = [2, 32], strides = [1, 1]} : vector<2x128xf32> to vector<2x32xf32>
    %287 = math.tanh %286 : vector<2x32xf32>
    %288 = vector.extract_strided_slice %248 {offsets = [0, 96], sizes = [2, 32], strides = [1, 1]} : vector<2x128xf32> to vector<2x32xf32>
    %289 = arith.negf %288 : vector<2x32xf32>
    %290 = math.exp %289 : vector<2x32xf32>
    %cst_78 = arith.constant 1.000000e+00 : f32
    %291 = vector.broadcast %cst_78 : f32 to vector<2x32xf32>
    %292 = arith.addf %291, %290 : vector<2x32xf32>
    %293 = arith.divf %291, %292 : vector<2x32xf32>
    %294 = arith.mulf %285, %222 : vector<2x32xf32>
    %295 = arith.mulf %279, %287 : vector<2x32xf32>
    %296 = arith.addf %294, %295 : vector<2x32xf32>
    %297 = math.tanh %296 : vector<2x32xf32>
    %298 = arith.mulf %293, %297 : vector<2x32xf32>
    %299 = arith.index_cast %c3_i32 : i32 to index
    %c0_79 = arith.constant 0 : index
    %c0_80 = arith.constant 0 : index
    %300 = vector.load %arg9[%299, %c0_79, %c0_80] : memref<8x2x32xf32, #tpu.memory_space<vmem>>, vector<1x2x32xf32>
    %301 = vector.shape_cast %300 : vector<1x2x32xf32> to vector<2x32xf32>
    %302 = vector.shape_cast %273 : vector<2x32xf32> to vector<1x2x32xf32>
    tpu.vector_store %arg9[%299, %c0_79, %c0_80], %302 {strides = array<i32>} : memref<8x2x32xf32, #tpu.memory_space<vmem>>, vector<1x2x32xf32>,
    %303 = arith.index_cast %234 : i32 to index
    %c0_81 = arith.constant 0 : index
    %c0_82 = arith.constant 0 : index
    %304 = vector.load %arg10[%303, %c0_81, %c0_82] : memref<8x2x32xf32, #tpu.memory_space<vmem>>, vector<1x2x32xf32>
    %305 = vector.shape_cast %304 : vector<1x2x32xf32> to vector<2x32xf32>
    %306 = vector.shape_cast %298 : vector<2x32xf32> to vector<1x2x32xf32>
    tpu.vector_store %arg10[%303, %c0_81, %c0_82], %306 {strides = array<i32>} : memref<8x2x32xf32, #tpu.memory_space<vmem>>, vector<1x2x32xf32>,
    %307 = tpu.concatenate %273, %298 in 1 : vector<2x32xf32>, vector<2x32xf32> -> vector<2x64xf32>
    %c4_i32 = arith.constant 4 : i32
    %c7_i32_83 = arith.constant 7 : i32
    %308 = arith.subi %c7_i32_83, %c4_i32 : i32
    %c0_84 = arith.constant 0 : index
    %c0_85 = arith.constant 0 : index
    %309 = vector.load %arg2[%c0_84, %c0_85] : memref<64x256xf32, #tpu.memory_space<vmem>>, vector<64x256xf32>
    %cst_86 = arith.constant dense<0.000000e+00> : vector<2x256xf32>
    %310 = tpu.matmul %307, %309, %cst_86 {dimension_numbers = #tpu.dot_dimension_numbers<[1], [0], [0], [1], [0, 0, 1, 1], [], []>} : vector<2x64xf32>, vector<64x256xf32>, vector<2x256xf32> -> vector<2x256xf32>
    %311 = arith.index_cast %c4_i32 : i32 to index
    %c0_87 = arith.constant 0 : index
    %c0_88 = arith.constant 0 : index
    %312 = vector.load %arg8[%311, %c0_87, %c0_88] : memref<8x2x256xf32, #tpu.memory_space<vmem>>, vector<1x2x256xf32>
    %313 = vector.shape_cast %312 : vector<1x2x256xf32> to vector<2x256xf32>
    %314 = vector.extract_strided_slice %313 {offsets = [0, 0], sizes = [2, 128], strides = [1, 1]} : vector<2x256xf32> to vector<2x128xf32>
    %315 = vector.extract_strided_slice %310 {offsets = [0, 0], sizes = [2, 128], strides = [1, 1]} : vector<2x256xf32> to vector<2x128xf32>
    %316 = arith.addf %314, %315 : vector<2x128xf32>
    %317 = arith.index_cast %308 : i32 to index
    %c0_89 = arith.constant 0 : index
    %c0_90 = arith.constant 0 : index
    %318 = vector.load %arg8[%317, %c0_89, %c0_90] : memref<8x2x256xf32, #tpu.memory_space<vmem>>, vector<1x2x256xf32>
    %319 = vector.shape_cast %318 : vector<1x2x256xf32> to vector<2x256xf32>
    %320 = vector.extract_strided_slice %319 {offsets = [0, 128], sizes = [2, 128], strides = [1, 1]} : vector<2x256xf32> to vector<2x128xf32>
    %321 = vector.extract_strided_slice %310 {offsets = [0, 128], sizes = [2, 128], strides = [1, 1]} : vector<2x256xf32> to vector<2x128xf32>
    %322 = arith.addf %320, %321 : vector<2x128xf32>
    %323 = vector.extract_strided_slice %316 {offsets = [0, 0], sizes = [2, 32], strides = [1, 1]} : vector<2x128xf32> to vector<2x32xf32>
    %324 = arith.negf %323 : vector<2x32xf32>
    %325 = math.exp %324 : vector<2x32xf32>
    %cst_91 = arith.constant 1.000000e+00 : f32
    %326 = vector.broadcast %cst_91 : f32 to vector<2x32xf32>
    %327 = arith.addf %326, %325 : vector<2x32xf32>
    %328 = arith.divf %326, %327 : vector<2x32xf32>
    %329 = vector.extract_strided_slice %316 {offsets = [0, 32], sizes = [2, 32], strides = [1, 1]} : vector<2x128xf32> to vector<2x32xf32>
    %330 = arith.negf %329 : vector<2x32xf32>
    %331 = math.exp %330 : vector<2x32xf32>
    %cst_92 = arith.constant 1.000000e+00 : f32
    %332 = vector.broadcast %cst_92 : f32 to vector<2x32xf32>
    %333 = arith.addf %332, %331 : vector<2x32xf32>
    %334 = arith.divf %332, %333 : vector<2x32xf32>
    %335 = vector.extract_strided_slice %316 {offsets = [0, 64], sizes = [2, 32], strides = [1, 1]} : vector<2x128xf32> to vector<2x32xf32>
    %336 = math.tanh %335 : vector<2x32xf32>
    %337 = vector.extract_strided_slice %316 {offsets = [0, 96], sizes = [2, 32], strides = [1, 1]} : vector<2x128xf32> to vector<2x32xf32>
    %338 = arith.negf %337 : vector<2x32xf32>
    %339 = math.exp %338 : vector<2x32xf32>
    %cst_93 = arith.constant 1.000000e+00 : f32
    %340 = vector.broadcast %cst_93 : f32 to vector<2x32xf32>
    %341 = arith.addf %340, %339 : vector<2x32xf32>
    %342 = arith.divf %340, %341 : vector<2x32xf32>
    %343 = arith.mulf %334, %271 : vector<2x32xf32>
    %344 = arith.mulf %328, %336 : vector<2x32xf32>
    %345 = arith.addf %343, %344 : vector<2x32xf32>
    %346 = math.tanh %345 : vector<2x32xf32>
    %347 = arith.mulf %342, %346 : vector<2x32xf32>
    %348 = vector.extract_strided_slice %322 {offsets = [0, 0], sizes = [2, 32], strides = [1, 1]} : vector<2x128xf32> to vector<2x32xf32>
    %349 = arith.negf %348 : vector<2x32xf32>
    %350 = math.exp %349 : vector<2x32xf32>
    %cst_94 = arith.constant 1.000000e+00 : f32
    %351 = vector.broadcast %cst_94 : f32 to vector<2x32xf32>
    %352 = arith.addf %351, %350 : vector<2x32xf32>
    %353 = arith.divf %351, %352 : vector<2x32xf32>
    %354 = vector.extract_strided_slice %322 {offsets = [0, 32], sizes = [2, 32], strides = [1, 1]} : vector<2x128xf32> to vector<2x32xf32>
    %355 = arith.negf %354 : vector<2x32xf32>
    %356 = math.exp %355 : vector<2x32xf32>
    %cst_95 = arith.constant 1.000000e+00 : f32
    %357 = vector.broadcast %cst_95 : f32 to vector<2x32xf32>
    %358 = arith.addf %357, %356 : vector<2x32xf32>
    %359 = arith.divf %357, %358 : vector<2x32xf32>
    %360 = vector.extract_strided_slice %322 {offsets = [0, 64], sizes = [2, 32], strides = [1, 1]} : vector<2x128xf32> to vector<2x32xf32>
    %361 = math.tanh %360 : vector<2x32xf32>
    %362 = vector.extract_strided_slice %322 {offsets = [0, 96], sizes = [2, 32], strides = [1, 1]} : vector<2x128xf32> to vector<2x32xf32>
    %363 = arith.negf %362 : vector<2x32xf32>
    %364 = math.exp %363 : vector<2x32xf32>
    %cst_96 = arith.constant 1.000000e+00 : f32
    %365 = vector.broadcast %cst_96 : f32 to vector<2x32xf32>
    %366 = arith.addf %365, %364 : vector<2x32xf32>
    %367 = arith.divf %365, %366 : vector<2x32xf32>
    %368 = arith.mulf %359, %296 : vector<2x32xf32>
    %369 = arith.mulf %353, %361 : vector<2x32xf32>
    %370 = arith.addf %368, %369 : vector<2x32xf32>
    %371 = math.tanh %370 : vector<2x32xf32>
    %372 = arith.mulf %367, %371 : vector<2x32xf32>
    %373 = arith.index_cast %c4_i32 : i32 to index
    %c0_97 = arith.constant 0 : index
    %c0_98 = arith.constant 0 : index
    %374 = vector.load %arg9[%373, %c0_97, %c0_98] : memref<8x2x32xf32, #tpu.memory_space<vmem>>, vector<1x2x32xf32>
    %375 = vector.shape_cast %374 : vector<1x2x32xf32> to vector<2x32xf32>
    %376 = vector.shape_cast %347 : vector<2x32xf32> to vector<1x2x32xf32>
    tpu.vector_store %arg9[%373, %c0_97, %c0_98], %376 {strides = array<i32>} : memref<8x2x32xf32, #tpu.memory_space<vmem>>, vector<1x2x32xf32>,
    %377 = arith.index_cast %308 : i32 to index
    %c0_99 = arith.constant 0 : index
    %c0_100 = arith.constant 0 : index
    %378 = vector.load %arg10[%377, %c0_99, %c0_100] : memref<8x2x32xf32, #tpu.memory_space<vmem>>, vector<1x2x32xf32>
    %379 = vector.shape_cast %378 : vector<1x2x32xf32> to vector<2x32xf32>
    %380 = vector.shape_cast %372 : vector<2x32xf32> to vector<1x2x32xf32>
    tpu.vector_store %arg10[%377, %c0_99, %c0_100], %380 {strides = array<i32>} : memref<8x2x32xf32, #tpu.memory_space<vmem>>, vector<1x2x32xf32>,
    %381 = tpu.concatenate %347, %372 in 1 : vector<2x32xf32>, vector<2x32xf32> -> vector<2x64xf32>
    %c5_i32 = arith.constant 5 : i32
    %c7_i32_101 = arith.constant 7 : i32
    %382 = arith.subi %c7_i32_101, %c5_i32 : i32
    %c0_102 = arith.constant 0 : index
    %c0_103 = arith.constant 0 : index
    %383 = vector.load %arg2[%c0_102, %c0_103] : memref<64x256xf32, #tpu.memory_space<vmem>>, vector<64x256xf32>
    %cst_104 = arith.constant dense<0.000000e+00> : vector<2x256xf32>
    %384 = tpu.matmul %381, %383, %cst_104 {dimension_numbers = #tpu.dot_dimension_numbers<[1], [0], [0], [1], [0, 0, 1, 1], [], []>} : vector<2x64xf32>, vector<64x256xf32>, vector<2x256xf32> -> vector<2x256xf32>
    %385 = arith.index_cast %c5_i32 : i32 to index
    %c0_105 = arith.constant 0 : index
    %c0_106 = arith.constant 0 : index
    %386 = vector.load %arg8[%385, %c0_105, %c0_106] : memref<8x2x256xf32, #tpu.memory_space<vmem>>, vector<1x2x256xf32>
    %387 = vector.shape_cast %386 : vector<1x2x256xf32> to vector<2x256xf32>
    %388 = vector.extract_strided_slice %387 {offsets = [0, 0], sizes = [2, 128], strides = [1, 1]} : vector<2x256xf32> to vector<2x128xf32>
    %389 = vector.extract_strided_slice %384 {offsets = [0, 0], sizes = [2, 128], strides = [1, 1]} : vector<2x256xf32> to vector<2x128xf32>
    %390 = arith.addf %388, %389 : vector<2x128xf32>
    %391 = arith.index_cast %382 : i32 to index
    %c0_107 = arith.constant 0 : index
    %c0_108 = arith.constant 0 : index
    %392 = vector.load %arg8[%391, %c0_107, %c0_108] : memref<8x2x256xf32, #tpu.memory_space<vmem>>, vector<1x2x256xf32>
    %393 = vector.shape_cast %392 : vector<1x2x256xf32> to vector<2x256xf32>
    %394 = vector.extract_strided_slice %393 {offsets = [0, 128], sizes = [2, 128], strides = [1, 1]} : vector<2x256xf32> to vector<2x128xf32>
    %395 = vector.extract_strided_slice %384 {offsets = [0, 128], sizes = [2, 128], strides = [1, 1]} : vector<2x256xf32> to vector<2x128xf32>
    %396 = arith.addf %394, %395 : vector<2x128xf32>
    %397 = vector.extract_strided_slice %390 {offsets = [0, 0], sizes = [2, 32], strides = [1, 1]} : vector<2x128xf32> to vector<2x32xf32>
    %398 = arith.negf %397 : vector<2x32xf32>
    %399 = math.exp %398 : vector<2x32xf32>
    %cst_109 = arith.constant 1.000000e+00 : f32
    %400 = vector.broadcast %cst_109 : f32 to vector<2x32xf32>
    %401 = arith.addf %400, %399 : vector<2x32xf32>
    %402 = arith.divf %400, %401 : vector<2x32xf32>
    %403 = vector.extract_strided_slice %390 {offsets = [0, 32], sizes = [2, 32], strides = [1, 1]} : vector<2x128xf32> to vector<2x32xf32>
    %404 = arith.negf %403 : vector<2x32xf32>
    %405 = math.exp %404 : vector<2x32xf32>
    %cst_110 = arith.constant 1.000000e+00 : f32
    %406 = vector.broadcast %cst_110 : f32 to vector<2x32xf32>
    %407 = arith.addf %406, %405 : vector<2x32xf32>
    %408 = arith.divf %406, %407 : vector<2x32xf32>
    %409 = vector.extract_strided_slice %390 {offsets = [0, 64], sizes = [2, 32], strides = [1, 1]} : vector<2x128xf32> to vector<2x32xf32>
    %410 = math.tanh %409 : vector<2x32xf32>
    %411 = vector.extract_strided_slice %390 {offsets = [0, 96], sizes = [2, 32], strides = [1, 1]} : vector<2x128xf32> to vector<2x32xf32>
    %412 = arith.negf %411 : vector<2x32xf32>
    %413 = math.exp %412 : vector<2x32xf32>
    %cst_111 = arith.constant 1.000000e+00 : f32
    %414 = vector.broadcast %cst_111 : f32 to vector<2x32xf32>
    %415 = arith.addf %414, %413 : vector<2x32xf32>
    %416 = arith.divf %414, %415 : vector<2x32xf32>
    %417 = arith.mulf %408, %345 : vector<2x32xf32>
    %418 = arith.mulf %402, %410 : vector<2x32xf32>
    %419 = arith.addf %417, %418 : vector<2x32xf32>
    %420 = math.tanh %419 : vector<2x32xf32>
    %421 = arith.mulf %416, %420 : vector<2x32xf32>
    %422 = vector.extract_strided_slice %396 {offsets = [0, 0], sizes = [2, 32], strides = [1, 1]} : vector<2x128xf32> to vector<2x32xf32>
    %423 = arith.negf %422 : vector<2x32xf32>
    %424 = math.exp %423 : vector<2x32xf32>
    %cst_112 = arith.constant 1.000000e+00 : f32
    %425 = vector.broadcast %cst_112 : f32 to vector<2x32xf32>
    %426 = arith.addf %425, %424 : vector<2x32xf32>
    %427 = arith.divf %425, %426 : vector<2x32xf32>
    %428 = vector.extract_strided_slice %396 {offsets = [0, 32], sizes = [2, 32], strides = [1, 1]} : vector<2x128xf32> to vector<2x32xf32>
    %429 = arith.negf %428 : vector<2x32xf32>
    %430 = math.exp %429 : vector<2x32xf32>
    %cst_113 = arith.constant 1.000000e+00 : f32
    %431 = vector.broadcast %cst_113 : f32 to vector<2x32xf32>
    %432 = arith.addf %431, %430 : vector<2x32xf32>
    %433 = arith.divf %431, %432 : vector<2x32xf32>
    %434 = vector.extract_strided_slice %396 {offsets = [0, 64], sizes = [2, 32], strides = [1, 1]} : vector<2x128xf32> to vector<2x32xf32>
    %435 = math.tanh %434 : vector<2x32xf32>
    %436 = vector.extract_strided_slice %396 {offsets = [0, 96], sizes = [2, 32], strides = [1, 1]} : vector<2x128xf32> to vector<2x32xf32>
    %437 = arith.negf %436 : vector<2x32xf32>
    %438 = math.exp %437 : vector<2x32xf32>
    %cst_114 = arith.constant 1.000000e+00 : f32
    %439 = vector.broadcast %cst_114 : f32 to vector<2x32xf32>
    %440 = arith.addf %439, %438 : vector<2x32xf32>
    %441 = arith.divf %439, %440 : vector<2x32xf32>
    %442 = arith.mulf %433, %370 : vector<2x32xf32>
    %443 = arith.mulf %427, %435 : vector<2x32xf32>
    %444 = arith.addf %442, %443 : vector<2x32xf32>
    %445 = math.tanh %444 : vector<2x32xf32>
    %446 = arith.mulf %441, %445 : vector<2x32xf32>
    %447 = arith.index_cast %c5_i32 : i32 to index
    %c0_115 = arith.constant 0 : index
    %c0_116 = arith.constant 0 : index
    %448 = vector.load %arg9[%447, %c0_115, %c0_116] : memref<8x2x32xf32, #tpu.memory_space<vmem>>, vector<1x2x32xf32>
    %449 = vector.shape_cast %448 : vector<1x2x32xf32> to vector<2x32xf32>
    %450 = vector.shape_cast %421 : vector<2x32xf32> to vector<1x2x32xf32>
    tpu.vector_store %arg9[%447, %c0_115, %c0_116], %450 {strides = array<i32>} : memref<8x2x32xf32, #tpu.memory_space<vmem>>, vector<1x2x32xf32>,
    %451 = arith.index_cast %382 : i32 to index
    %c0_117 = arith.constant 0 : index
    %c0_118 = arith.constant 0 : index
    %452 = vector.load %arg10[%451, %c0_117, %c0_118] : memref<8x2x32xf32, #tpu.memory_space<vmem>>, vector<1x2x32xf32>
    %453 = vector.shape_cast %452 : vector<1x2x32xf32> to vector<2x32xf32>
    %454 = vector.shape_cast %446 : vector<2x32xf32> to vector<1x2x32xf32>
    tpu.vector_store %arg10[%451, %c0_117, %c0_118], %454 {strides = array<i32>} : memref<8x2x32xf32, #tpu.memory_space<vmem>>, vector<1x2x32xf32>,
    %455 = tpu.concatenate %421, %446 in 1 : vector<2x32xf32>, vector<2x32xf32> -> vector<2x64xf32>
    %c6_i32 = arith.constant 6 : i32
    %c7_i32_119 = arith.constant 7 : i32
    %456 = arith.subi %c7_i32_119, %c6_i32 : i32
    %c0_120 = arith.constant 0 : index
    %c0_121 = arith.constant 0 : index
    %457 = vector.load %arg2[%c0_120, %c0_121] : memref<64x256xf32, #tpu.memory_space<vmem>>, vector<64x256xf32>
    %cst_122 = arith.constant dense<0.000000e+00> : vector<2x256xf32>
    %458 = tpu.matmul %455, %457, %cst_122 {dimension_numbers = #tpu.dot_dimension_numbers<[1], [0], [0], [1], [0, 0, 1, 1], [], []>} : vector<2x64xf32>, vector<64x256xf32>, vector<2x256xf32> -> vector<2x256xf32>
    %459 = arith.index_cast %c6_i32 : i32 to index
    %c0_123 = arith.constant 0 : index
    %c0_124 = arith.constant 0 : index
    %460 = vector.load %arg8[%459, %c0_123, %c0_124] : memref<8x2x256xf32, #tpu.memory_space<vmem>>, vector<1x2x256xf32>
    %461 = vector.shape_cast %460 : vector<1x2x256xf32> to vector<2x256xf32>
    %462 = vector.extract_strided_slice %461 {offsets = [0, 0], sizes = [2, 128], strides = [1, 1]} : vector<2x256xf32> to vector<2x128xf32>
    %463 = vector.extract_strided_slice %458 {offsets = [0, 0], sizes = [2, 128], strides = [1, 1]} : vector<2x256xf32> to vector<2x128xf32>
    %464 = arith.addf %462, %463 : vector<2x128xf32>
    %465 = arith.index_cast %456 : i32 to index
    %c0_125 = arith.constant 0 : index
    %c0_126 = arith.constant 0 : index
    %466 = vector.load %arg8[%465, %c0_125, %c0_126] : memref<8x2x256xf32, #tpu.memory_space<vmem>>, vector<1x2x256xf32>
    %467 = vector.shape_cast %466 : vector<1x2x256xf32> to vector<2x256xf32>
    %468 = vector.extract_strided_slice %467 {offsets = [0, 128], sizes = [2, 128], strides = [1, 1]} : vector<2x256xf32> to vector<2x128xf32>
    %469 = vector.extract_strided_slice %458 {offsets = [0, 128], sizes = [2, 128], strides = [1, 1]} : vector<2x256xf32> to vector<2x128xf32>
    %470 = arith.addf %468, %469 : vector<2x128xf32>
    %471 = vector.extract_strided_slice %464 {offsets = [0, 0], sizes = [2, 32], strides = [1, 1]} : vector<2x128xf32> to vector<2x32xf32>
    %472 = arith.negf %471 : vector<2x32xf32>
    %473 = math.exp %472 : vector<2x32xf32>
    %cst_127 = arith.constant 1.000000e+00 : f32
    %474 = vector.broadcast %cst_127 : f32 to vector<2x32xf32>
    %475 = arith.addf %474, %473 : vector<2x32xf32>
    %476 = arith.divf %474, %475 : vector<2x32xf32>
    %477 = vector.extract_strided_slice %464 {offsets = [0, 32], sizes = [2, 32], strides = [1, 1]} : vector<2x128xf32> to vector<2x32xf32>
    %478 = arith.negf %477 : vector<2x32xf32>
    %479 = math.exp %478 : vector<2x32xf32>
    %cst_128 = arith.constant 1.000000e+00 : f32
    %480 = vector.broadcast %cst_128 : f32 to vector<2x32xf32>
    %481 = arith.addf %480, %479 : vector<2x32xf32>
    %482 = arith.divf %480, %481 : vector<2x32xf32>
    %483 = vector.extract_strided_slice %464 {offsets = [0, 64], sizes = [2, 32], strides = [1, 1]} : vector<2x128xf32> to vector<2x32xf32>
    %484 = math.tanh %483 : vector<2x32xf32>
    %485 = vector.extract_strided_slice %464 {offsets = [0, 96], sizes = [2, 32], strides = [1, 1]} : vector<2x128xf32> to vector<2x32xf32>
    %486 = arith.negf %485 : vector<2x32xf32>
    %487 = math.exp %486 : vector<2x32xf32>
    %cst_129 = arith.constant 1.000000e+00 : f32
    %488 = vector.broadcast %cst_129 : f32 to vector<2x32xf32>
    %489 = arith.addf %488, %487 : vector<2x32xf32>
    %490 = arith.divf %488, %489 : vector<2x32xf32>
    %491 = arith.mulf %482, %419 : vector<2x32xf32>
    %492 = arith.mulf %476, %484 : vector<2x32xf32>
    %493 = arith.addf %491, %492 : vector<2x32xf32>
    %494 = math.tanh %493 : vector<2x32xf32>
    %495 = arith.mulf %490, %494 : vector<2x32xf32>
    %496 = vector.extract_strided_slice %470 {offsets = [0, 0], sizes = [2, 32], strides = [1, 1]} : vector<2x128xf32> to vector<2x32xf32>
    %497 = arith.negf %496 : vector<2x32xf32>
    %498 = math.exp %497 : vector<2x32xf32>
    %cst_130 = arith.constant 1.000000e+00 : f32
    %499 = vector.broadcast %cst_130 : f32 to vector<2x32xf32>
    %500 = arith.addf %499, %498 : vector<2x32xf32>
    %501 = arith.divf %499, %500 : vector<2x32xf32>
    %502 = vector.extract_strided_slice %470 {offsets = [0, 32], sizes = [2, 32], strides = [1, 1]} : vector<2x128xf32> to vector<2x32xf32>
    %503 = arith.negf %502 : vector<2x32xf32>
    %504 = math.exp %503 : vector<2x32xf32>
    %cst_131 = arith.constant 1.000000e+00 : f32
    %505 = vector.broadcast %cst_131 : f32 to vector<2x32xf32>
    %506 = arith.addf %505, %504 : vector<2x32xf32>
    %507 = arith.divf %505, %506 : vector<2x32xf32>
    %508 = vector.extract_strided_slice %470 {offsets = [0, 64], sizes = [2, 32], strides = [1, 1]} : vector<2x128xf32> to vector<2x32xf32>
    %509 = math.tanh %508 : vector<2x32xf32>
    %510 = vector.extract_strided_slice %470 {offsets = [0, 96], sizes = [2, 32], strides = [1, 1]} : vector<2x128xf32> to vector<2x32xf32>
    %511 = arith.negf %510 : vector<2x32xf32>
    %512 = math.exp %511 : vector<2x32xf32>
    %cst_132 = arith.constant 1.000000e+00 : f32
    %513 = vector.broadcast %cst_132 : f32 to vector<2x32xf32>
    %514 = arith.addf %513, %512 : vector<2x32xf32>
    %515 = arith.divf %513, %514 : vector<2x32xf32>
    %516 = arith.mulf %507, %444 : vector<2x32xf32>
    %517 = arith.mulf %501, %509 : vector<2x32xf32>
    %518 = arith.addf %516, %517 : vector<2x32xf32>
    %519 = math.tanh %518 : vector<2x32xf32>
    %520 = arith.mulf %515, %519 : vector<2x32xf32>
    %521 = arith.index_cast %c6_i32 : i32 to index
    %c0_133 = arith.constant 0 : index
    %c0_134 = arith.constant 0 : index
    %522 = vector.load %arg9[%521, %c0_133, %c0_134] : memref<8x2x32xf32, #tpu.memory_space<vmem>>, vector<1x2x32xf32>
    %523 = vector.shape_cast %522 : vector<1x2x32xf32> to vector<2x32xf32>
    %524 = vector.shape_cast %495 : vector<2x32xf32> to vector<1x2x32xf32>
    tpu.vector_store %arg9[%521, %c0_133, %c0_134], %524 {strides = array<i32>} : memref<8x2x32xf32, #tpu.memory_space<vmem>>, vector<1x2x32xf32>,
    %525 = arith.index_cast %456 : i32 to index
    %c0_135 = arith.constant 0 : index
    %c0_136 = arith.constant 0 : index
    %526 = vector.load %arg10[%525, %c0_135, %c0_136] : memref<8x2x32xf32, #tpu.memory_space<vmem>>, vector<1x2x32xf32>
    %527 = vector.shape_cast %526 : vector<1x2x32xf32> to vector<2x32xf32>
    %528 = vector.shape_cast %520 : vector<2x32xf32> to vector<1x2x32xf32>
    tpu.vector_store %arg10[%525, %c0_135, %c0_136], %528 {strides = array<i32>} : memref<8x2x32xf32, #tpu.memory_space<vmem>>, vector<1x2x32xf32>,
    %529 = tpu.concatenate %495, %520 in 1 : vector<2x32xf32>, vector<2x32xf32> -> vector<2x64xf32>
    %c7_i32_137 = arith.constant 7 : i32
    %c7_i32_138 = arith.constant 7 : i32
    %530 = arith.subi %c7_i32_138, %c7_i32_137 : i32
    %c0_139 = arith.constant 0 : index
    %c0_140 = arith.constant 0 : index
    %531 = vector.load %arg2[%c0_139, %c0_140] : memref<64x256xf32, #tpu.memory_space<vmem>>, vector<64x256xf32>
    %cst_141 = arith.constant dense<0.000000e+00> : vector<2x256xf32>
    %532 = tpu.matmul %529, %531, %cst_141 {dimension_numbers = #tpu.dot_dimension_numbers<[1], [0], [0], [1], [0, 0, 1, 1], [], []>} : vector<2x64xf32>, vector<64x256xf32>, vector<2x256xf32> -> vector<2x256xf32>
    %533 = arith.index_cast %c7_i32_137 : i32 to index
    %c0_142 = arith.constant 0 : index
    %c0_143 = arith.constant 0 : index
    %534 = vector.load %arg8[%533, %c0_142, %c0_143] : memref<8x2x256xf32, #tpu.memory_space<vmem>>, vector<1x2x256xf32>
    %535 = vector.shape_cast %534 : vector<1x2x256xf32> to vector<2x256xf32>
    %536 = vector.extract_strided_slice %535 {offsets = [0, 0], sizes = [2, 128], strides = [1, 1]} : vector<2x256xf32> to vector<2x128xf32>
    %537 = vector.extract_strided_slice %532 {offsets = [0, 0], sizes = [2, 128], strides = [1, 1]} : vector<2x256xf32> to vector<2x128xf32>
    %538 = arith.addf %536, %537 : vector<2x128xf32>
    %539 = arith.index_cast %530 : i32 to index
    %c0_144 = arith.constant 0 : index
    %c0_145 = arith.constant 0 : index
    %540 = vector.load %arg8[%539, %c0_144, %c0_145] : memref<8x2x256xf32, #tpu.memory_space<vmem>>, vector<1x2x256xf32>
    %541 = vector.shape_cast %540 : vector<1x2x256xf32> to vector<2x256xf32>
    %542 = vector.extract_strided_slice %541 {offsets = [0, 128], sizes = [2, 128], strides = [1, 1]} : vector<2x256xf32> to vector<2x128xf32>
    %543 = vector.extract_strided_slice %532 {offsets = [0, 128], sizes = [2, 128], strides = [1, 1]} : vector<2x256xf32> to vector<2x128xf32>
    %544 = arith.addf %542, %543 : vector<2x128xf32>
    %545 = vector.extract_strided_slice %538 {offsets = [0, 0], sizes = [2, 32], strides = [1, 1]} : vector<2x128xf32> to vector<2x32xf32>
    %546 = arith.negf %545 : vector<2x32xf32>
    %547 = math.exp %546 : vector<2x32xf32>
    %cst_146 = arith.constant 1.000000e+00 : f32
    %548 = vector.broadcast %cst_146 : f32 to vector<2x32xf32>
    %549 = arith.addf %548, %547 : vector<2x32xf32>
    %550 = arith.divf %548, %549 : vector<2x32xf32>
    %551 = vector.extract_strided_slice %538 {offsets = [0, 32], sizes = [2, 32], strides = [1, 1]} : vector<2x128xf32> to vector<2x32xf32>
    %552 = arith.negf %551 : vector<2x32xf32>
    %553 = math.exp %552 : vector<2x32xf32>
    %cst_147 = arith.constant 1.000000e+00 : f32
    %554 = vector.broadcast %cst_147 : f32 to vector<2x32xf32>
    %555 = arith.addf %554, %553 : vector<2x32xf32>
    %556 = arith.divf %554, %555 : vector<2x32xf32>
    %557 = vector.extract_strided_slice %538 {offsets = [0, 64], sizes = [2, 32], strides = [1, 1]} : vector<2x128xf32> to vector<2x32xf32>
    %558 = math.tanh %557 : vector<2x32xf32>
    %559 = vector.extract_strided_slice %538 {offsets = [0, 96], sizes = [2, 32], strides = [1, 1]} : vector<2x128xf32> to vector<2x32xf32>
    %560 = arith.negf %559 : vector<2x32xf32>
    %561 = math.exp %560 : vector<2x32xf32>
    %cst_148 = arith.constant 1.000000e+00 : f32
    %562 = vector.broadcast %cst_148 : f32 to vector<2x32xf32>
    %563 = arith.addf %562, %561 : vector<2x32xf32>
    %564 = arith.divf %562, %563 : vector<2x32xf32>
    %565 = arith.mulf %556, %493 : vector<2x32xf32>
    %566 = arith.mulf %550, %558 : vector<2x32xf32>
    %567 = arith.addf %565, %566 : vector<2x32xf32>
    %568 = math.tanh %567 : vector<2x32xf32>
    %569 = arith.mulf %564, %568 : vector<2x32xf32>
    %570 = vector.extract_strided_slice %544 {offsets = [0, 0], sizes = [2, 32], strides = [1, 1]} : vector<2x128xf32> to vector<2x32xf32>
    %571 = arith.negf %570 : vector<2x32xf32>
    %572 = math.exp %571 : vector<2x32xf32>
    %cst_149 = arith.constant 1.000000e+00 : f32
    %573 = vector.broadcast %cst_149 : f32 to vector<2x32xf32>
    %574 = arith.addf %573, %572 : vector<2x32xf32>
    %575 = arith.divf %573, %574 : vector<2x32xf32>
    %576 = vector.extract_strided_slice %544 {offsets = [0, 32], sizes = [2, 32], strides = [1, 1]} : vector<2x128xf32> to vector<2x32xf32>
    %577 = arith.negf %576 : vector<2x32xf32>
    %578 = math.exp %577 : vector<2x32xf32>
    %cst_150 = arith.constant 1.000000e+00 : f32
    %579 = vector.broadcast %cst_150 : f32 to vector<2x32xf32>
    %580 = arith.addf %579, %578 : vector<2x32xf32>
    %581 = arith.divf %579, %580 : vector<2x32xf32>
    %582 = vector.extract_strided_slice %544 {offsets = [0, 64], sizes = [2, 32], strides = [1, 1]} : vector<2x128xf32> to vector<2x32xf32>
    %583 = math.tanh %582 : vector<2x32xf32>
    %584 = vector.extract_strided_slice %544 {offsets = [0, 96], sizes = [2, 32], strides = [1, 1]} : vector<2x128xf32> to vector<2x32xf32>
    %585 = arith.negf %584 : vector<2x32xf32>
    %586 = math.exp %585 : vector<2x32xf32>
    %cst_151 = arith.constant 1.000000e+00 : f32
    %587 = vector.broadcast %cst_151 : f32 to vector<2x32xf32>
    %588 = arith.addf %587, %586 : vector<2x32xf32>
    %589 = arith.divf %587, %588 : vector<2x32xf32>
    %590 = arith.mulf %581, %518 : vector<2x32xf32>
    %591 = arith.mulf %575, %583 : vector<2x32xf32>
    %592 = arith.addf %590, %591 : vector<2x32xf32>
    %593 = math.tanh %592 : vector<2x32xf32>
    %594 = arith.mulf %589, %593 : vector<2x32xf32>
    %595 = arith.index_cast %c7_i32_137 : i32 to index
    %c0_152 = arith.constant 0 : index
    %c0_153 = arith.constant 0 : index
    %596 = vector.load %arg9[%595, %c0_152, %c0_153] : memref<8x2x32xf32, #tpu.memory_space<vmem>>, vector<1x2x32xf32>
    %597 = vector.shape_cast %596 : vector<1x2x32xf32> to vector<2x32xf32>
    %598 = vector.shape_cast %569 : vector<2x32xf32> to vector<1x2x32xf32>
    tpu.vector_store %arg9[%595, %c0_152, %c0_153], %598 {strides = array<i32>} : memref<8x2x32xf32, #tpu.memory_space<vmem>>, vector<1x2x32xf32>,
    %599 = arith.index_cast %530 : i32 to index
    %c0_154 = arith.constant 0 : index
    %c0_155 = arith.constant 0 : index
    %600 = vector.load %arg10[%599, %c0_154, %c0_155] : memref<8x2x32xf32, #tpu.memory_space<vmem>>, vector<1x2x32xf32>
    %601 = vector.shape_cast %600 : vector<1x2x32xf32> to vector<2x32xf32>
    %602 = vector.shape_cast %594 : vector<2x32xf32> to vector<1x2x32xf32>
    tpu.vector_store %arg10[%599, %c0_154, %c0_155], %602 {strides = array<i32>} : memref<8x2x32xf32, #tpu.memory_space<vmem>>, vector<1x2x32xf32>,
    %603 = tpu.concatenate %569, %594 in 1 : vector<2x32xf32>, vector<2x32xf32> -> vector<2x64xf32>
    %c8_i32 = arith.constant 8 : i32
    %c0_156 = arith.constant 0 : index
    %c0_157 = arith.constant 0 : index
    %c0_158 = arith.constant 0 : index
    %604 = vector.load %arg9[%c0_156, %c0_157, %c0_158] : memref<8x2x32xf32, #tpu.memory_space<vmem>>, vector<8x2x32xf32>
    %c0_159 = arith.constant 0 : index
    %c0_160 = arith.constant 0 : index
    %c0_161 = arith.constant 0 : index
    %605 = vector.load %arg7[%c0_159, %c0_160, %c0_161] : memref<8x2x64xf32, #tpu.memory_space<vmem>>, vector<8x2x32xf32>
    tpu.vector_store %arg7[%c0_159, %c0_160, %c0_161], %604 {strides = array<i32>} : memref<8x2x64xf32, #tpu.memory_space<vmem>>, vector<8x2x32xf32>,
    %c0_162 = arith.constant 0 : index
    %c0_163 = arith.constant 0 : index
    %c0_164 = arith.constant 0 : index
    %606 = vector.load %arg10[%c0_162, %c0_163, %c0_164] : memref<8x2x32xf32, #tpu.memory_space<vmem>>, vector<8x2x32xf32>
    %c0_165 = arith.constant 0 : index
    %c0_166 = arith.constant 0 : index
    %c32 = arith.constant 32 : index
    %607 = vector.load %arg7[%c0_165, %c0_166, %c32] : memref<8x2x64xf32, #tpu.memory_space<vmem>>, vector<8x2x32xf32>
    tpu.vector_store %arg7[%c0_165, %c0_166, %c32], %606 {strides = array<i32>} : memref<8x2x64xf32, #tpu.memory_space<vmem>>, vector<8x2x32xf32>,
    %c0_167 = arith.constant 0 : index
    %c0_168 = arith.constant 0 : index
    %c0_169 = arith.constant 0 : index
    %608 = vector.load %arg7[%c0_167, %c0_168, %c0_169] : memref<8x2x64xf32, #tpu.memory_space<vmem>>, vector<8x2x64xf32>
    %609 = vector.shape_cast %608 : vector<8x2x64xf32> to vector<16x64xf32>
    %c0_170 = arith.constant 0 : index
    %c0_171 = arith.constant 0 : index
    %610 = vector.load %arg4[%c0_170, %c0_171] : memref<64x256xf32, #tpu.memory_space<vmem>>, vector<64x256xf32>
    %cst_172 = arith.constant dense<0.000000e+00> : vector<16x256xf32>
    %611 = tpu.matmul %609, %610, %cst_172 {dimension_numbers = #tpu.dot_dimension_numbers<[1], [0], [0], [1], [0, 0, 1, 1], [], []>} : vector<16x64xf32>, vector<64x256xf32>, vector<16x256xf32> -> vector<16x256xf32>
    %c0_173 = arith.constant 0 : index
    %c0_174 = arith.constant 0 : index
    %612 = vector.load %arg6[%c0_173, %c0_174] : memref<1x256xf32, #tpu.memory_space<vmem>>, vector<1x256xf32>
    %613 = vector.broadcast %612 : vector<1x256xf32> to vector<16x256xf32>
    %614 = arith.addf %611, %613 : vector<16x256xf32>
    %615 = vector.shape_cast %614 : vector<16x256xf32> to vector<8x2x256xf32>
    %c0_175 = arith.constant 0 : index
    %c0_176 = arith.constant 0 : index
    %c0_177 = arith.constant 0 : index
    %616 = vector.load %arg8[%c0_175, %c0_176, %c0_177] : memref<8x2x256xf32, #tpu.memory_space<vmem>>, vector<8x2x256xf32>
    tpu.vector_store %arg8[%c0_175, %c0_176, %c0_177], %615 {strides = array<i32>} : memref<8x2x256xf32, #tpu.memory_space<vmem>>, vector<8x2x256xf32>,
    %cst_178 = arith.constant 0.000000e+00 : f32
    %617 = vector.broadcast %cst_178 : f32 to vector<2x64xf32>
    %cst_179 = arith.constant 0.000000e+00 : f32
    %618 = vector.broadcast %cst_179 : f32 to vector<2x32xf32>
    %cst_180 = arith.constant 0.000000e+00 : f32
    %619 = vector.broadcast %cst_180 : f32 to vector<2x32xf32>
    %c0_i32_181 = arith.constant 0 : i32
    %c7_i32_182 = arith.constant 7 : i32
    %620 = arith.subi %c7_i32_182, %c0_i32_181 : i32
    %c0_183 = arith.constant 0 : index
    %c0_184 = arith.constant 0 : index
    %621 = vector.load %arg5[%c0_183, %c0_184] : memref<64x256xf32, #tpu.memory_space<vmem>>, vector<64x256xf32>
    %cst_185 = arith.constant dense<0.000000e+00> : vector<2x256xf32>
    %622 = tpu.matmul %617, %621, %cst_185 {dimension_numbers = #tpu.dot_dimension_numbers<[1], [0], [0], [1], [0, 0, 1, 1], [], []>} : vector<2x64xf32>, vector<64x256xf32>, vector<2x256xf32> -> vector<2x256xf32>
    %623 = arith.index_cast %c0_i32_181 : i32 to index
    %c0_186 = arith.constant 0 : index
    %c0_187 = arith.constant 0 : index
    %624 = vector.load %arg8[%623, %c0_186, %c0_187] : memref<8x2x256xf32, #tpu.memory_space<vmem>>, vector<1x2x256xf32>
    %625 = vector.shape_cast %624 : vector<1x2x256xf32> to vector<2x256xf32>
    %626 = vector.extract_strided_slice %625 {offsets = [0, 0], sizes = [2, 128], strides = [1, 1]} : vector<2x256xf32> to vector<2x128xf32>
    %627 = vector.extract_strided_slice %622 {offsets = [0, 0], sizes = [2, 128], strides = [1, 1]} : vector<2x256xf32> to vector<2x128xf32>
    %628 = arith.addf %626, %627 : vector<2x128xf32>
    %629 = arith.index_cast %620 : i32 to index
    %c0_188 = arith.constant 0 : index
    %c0_189 = arith.constant 0 : index
    %630 = vector.load %arg8[%629, %c0_188, %c0_189] : memref<8x2x256xf32, #tpu.memory_space<vmem>>, vector<1x2x256xf32>
    %631 = vector.shape_cast %630 : vector<1x2x256xf32> to vector<2x256xf32>
    %632 = vector.extract_strided_slice %631 {offsets = [0, 128], sizes = [2, 128], strides = [1, 1]} : vector<2x256xf32> to vector<2x128xf32>
    %633 = vector.extract_strided_slice %622 {offsets = [0, 128], sizes = [2, 128], strides = [1, 1]} : vector<2x256xf32> to vector<2x128xf32>
    %634 = arith.addf %632, %633 : vector<2x128xf32>
    %635 = vector.extract_strided_slice %628 {offsets = [0, 0], sizes = [2, 32], strides = [1, 1]} : vector<2x128xf32> to vector<2x32xf32>
    %636 = arith.negf %635 : vector<2x32xf32>
    %637 = math.exp %636 : vector<2x32xf32>
    %cst_190 = arith.constant 1.000000e+00 : f32
    %638 = vector.broadcast %cst_190 : f32 to vector<2x32xf32>
    %639 = arith.addf %638, %637 : vector<2x32xf32>
    %640 = arith.divf %638, %639 : vector<2x32xf32>
    %641 = vector.extract_strided_slice %628 {offsets = [0, 32], sizes = [2, 32], strides = [1, 1]} : vector<2x128xf32> to vector<2x32xf32>
    %642 = arith.negf %641 : vector<2x32xf32>
    %643 = math.exp %642 : vector<2x32xf32>
    %cst_191 = arith.constant 1.000000e+00 : f32
    %644 = vector.broadcast %cst_191 : f32 to vector<2x32xf32>
    %645 = arith.addf %644, %643 : vector<2x32xf32>
    %646 = arith.divf %644, %645 : vector<2x32xf32>
    %647 = vector.extract_strided_slice %628 {offsets = [0, 64], sizes = [2, 32], strides = [1, 1]} : vector<2x128xf32> to vector<2x32xf32>
    %648 = math.tanh %647 : vector<2x32xf32>
    %649 = vector.extract_strided_slice %628 {offsets = [0, 96], sizes = [2, 32], strides = [1, 1]} : vector<2x128xf32> to vector<2x32xf32>
    %650 = arith.negf %649 : vector<2x32xf32>
    %651 = math.exp %650 : vector<2x32xf32>
    %cst_192 = arith.constant 1.000000e+00 : f32
    %652 = vector.broadcast %cst_192 : f32 to vector<2x32xf32>
    %653 = arith.addf %652, %651 : vector<2x32xf32>
    %654 = arith.divf %652, %653 : vector<2x32xf32>
    %655 = arith.mulf %646, %618 : vector<2x32xf32>
    %656 = arith.mulf %640, %648 : vector<2x32xf32>
    %657 = arith.addf %655, %656 : vector<2x32xf32>
    %658 = math.tanh %657 : vector<2x32xf32>
    %659 = arith.mulf %654, %658 : vector<2x32xf32>
    %660 = vector.extract_strided_slice %634 {offsets = [0, 0], sizes = [2, 32], strides = [1, 1]} : vector<2x128xf32> to vector<2x32xf32>
    %661 = arith.negf %660 : vector<2x32xf32>
    %662 = math.exp %661 : vector<2x32xf32>
    %cst_193 = arith.constant 1.000000e+00 : f32
    %663 = vector.broadcast %cst_193 : f32 to vector<2x32xf32>
    %664 = arith.addf %663, %662 : vector<2x32xf32>
    %665 = arith.divf %663, %664 : vector<2x32xf32>
    %666 = vector.extract_strided_slice %634 {offsets = [0, 32], sizes = [2, 32], strides = [1, 1]} : vector<2x128xf32> to vector<2x32xf32>
    %667 = arith.negf %666 : vector<2x32xf32>
    %668 = math.exp %667 : vector<2x32xf32>
    %cst_194 = arith.constant 1.000000e+00 : f32
    %669 = vector.broadcast %cst_194 : f32 to vector<2x32xf32>
    %670 = arith.addf %669, %668 : vector<2x32xf32>
    %671 = arith.divf %669, %670 : vector<2x32xf32>
    %672 = vector.extract_strided_slice %634 {offsets = [0, 64], sizes = [2, 32], strides = [1, 1]} : vector<2x128xf32> to vector<2x32xf32>
    %673 = math.tanh %672 : vector<2x32xf32>
    %674 = vector.extract_strided_slice %634 {offsets = [0, 96], sizes = [2, 32], strides = [1, 1]} : vector<2x128xf32> to vector<2x32xf32>
    %675 = arith.negf %674 : vector<2x32xf32>
    %676 = math.exp %675 : vector<2x32xf32>
    %cst_195 = arith.constant 1.000000e+00 : f32
    %677 = vector.broadcast %cst_195 : f32 to vector<2x32xf32>
    %678 = arith.addf %677, %676 : vector<2x32xf32>
    %679 = arith.divf %677, %678 : vector<2x32xf32>
    %680 = arith.mulf %671, %619 : vector<2x32xf32>
    %681 = arith.mulf %665, %673 : vector<2x32xf32>
    %682 = arith.addf %680, %681 : vector<2x32xf32>
    %683 = math.tanh %682 : vector<2x32xf32>
    %684 = arith.mulf %679, %683 : vector<2x32xf32>
    %685 = arith.index_cast %c0_i32_181 : i32 to index
    %c0_196 = arith.constant 0 : index
    %c0_197 = arith.constant 0 : index
    %686 = vector.load %arg9[%685, %c0_196, %c0_197] : memref<8x2x32xf32, #tpu.memory_space<vmem>>, vector<1x2x32xf32>
    %687 = vector.shape_cast %686 : vector<1x2x32xf32> to vector<2x32xf32>
    %688 = vector.shape_cast %659 : vector<2x32xf32> to vector<1x2x32xf32>
    tpu.vector_store %arg9[%685, %c0_196, %c0_197], %688 {strides = array<i32>} : memref<8x2x32xf32, #tpu.memory_space<vmem>>, vector<1x2x32xf32>,
    %689 = arith.index_cast %620 : i32 to index
    %c0_198 = arith.constant 0 : index
    %c0_199 = arith.constant 0 : index
    %690 = vector.load %arg10[%689, %c0_198, %c0_199] : memref<8x2x32xf32, #tpu.memory_space<vmem>>, vector<1x2x32xf32>
    %691 = vector.shape_cast %690 : vector<1x2x32xf32> to vector<2x32xf32>
    %692 = vector.shape_cast %684 : vector<2x32xf32> to vector<1x2x32xf32>
    tpu.vector_store %arg10[%689, %c0_198, %c0_199], %692 {strides = array<i32>} : memref<8x2x32xf32, #tpu.memory_space<vmem>>, vector<1x2x32xf32>,
    %693 = tpu.concatenate %659, %684 in 1 : vector<2x32xf32>, vector<2x32xf32> -> vector<2x64xf32>
    %c1_i32_200 = arith.constant 1 : i32
    %c7_i32_201 = arith.constant 7 : i32
    %694 = arith.subi %c7_i32_201, %c1_i32_200 : i32
    %c0_202 = arith.constant 0 : index
    %c0_203 = arith.constant 0 : index
    %695 = vector.load %arg5[%c0_202, %c0_203] : memref<64x256xf32, #tpu.memory_space<vmem>>, vector<64x256xf32>
    %cst_204 = arith.constant dense<0.000000e+00> : vector<2x256xf32>
    %696 = tpu.matmul %693, %695, %cst_204 {dimension_numbers = #tpu.dot_dimension_numbers<[1], [0], [0], [1], [0, 0, 1, 1], [], []>} : vector<2x64xf32>, vector<64x256xf32>, vector<2x256xf32> -> vector<2x256xf32>
    %697 = arith.index_cast %c1_i32_200 : i32 to index
    %c0_205 = arith.constant 0 : index
    %c0_206 = arith.constant 0 : index
    %698 = vector.load %arg8[%697, %c0_205, %c0_206] : memref<8x2x256xf32, #tpu.memory_space<vmem>>, vector<1x2x256xf32>
    %699 = vector.shape_cast %698 : vector<1x2x256xf32> to vector<2x256xf32>
    %700 = vector.extract_strided_slice %699 {offsets = [0, 0], sizes = [2, 128], strides = [1, 1]} : vector<2x256xf32> to vector<2x128xf32>
    %701 = vector.extract_strided_slice %696 {offsets = [0, 0], sizes = [2, 128], strides = [1, 1]} : vector<2x256xf32> to vector<2x128xf32>
    %702 = arith.addf %700, %701 : vector<2x128xf32>
    %703 = arith.index_cast %694 : i32 to index
    %c0_207 = arith.constant 0 : index
    %c0_208 = arith.constant 0 : index
    %704 = vector.load %arg8[%703, %c0_207, %c0_208] : memref<8x2x256xf32, #tpu.memory_space<vmem>>, vector<1x2x256xf32>
    %705 = vector.shape_cast %704 : vector<1x2x256xf32> to vector<2x256xf32>
    %706 = vector.extract_strided_slice %705 {offsets = [0, 128], sizes = [2, 128], strides = [1, 1]} : vector<2x256xf32> to vector<2x128xf32>
    %707 = vector.extract_strided_slice %696 {offsets = [0, 128], sizes = [2, 128], strides = [1, 1]} : vector<2x256xf32> to vector<2x128xf32>
    %708 = arith.addf %706, %707 : vector<2x128xf32>
    %709 = vector.extract_strided_slice %702 {offsets = [0, 0], sizes = [2, 32], strides = [1, 1]} : vector<2x128xf32> to vector<2x32xf32>
    %710 = arith.negf %709 : vector<2x32xf32>
    %711 = math.exp %710 : vector<2x32xf32>
    %cst_209 = arith.constant 1.000000e+00 : f32
    %712 = vector.broadcast %cst_209 : f32 to vector<2x32xf32>
    %713 = arith.addf %712, %711 : vector<2x32xf32>
    %714 = arith.divf %712, %713 : vector<2x32xf32>
    %715 = vector.extract_strided_slice %702 {offsets = [0, 32], sizes = [2, 32], strides = [1, 1]} : vector<2x128xf32> to vector<2x32xf32>
    %716 = arith.negf %715 : vector<2x32xf32>
    %717 = math.exp %716 : vector<2x32xf32>
    %cst_210 = arith.constant 1.000000e+00 : f32
    %718 = vector.broadcast %cst_210 : f32 to vector<2x32xf32>
    %719 = arith.addf %718, %717 : vector<2x32xf32>
    %720 = arith.divf %718, %719 : vector<2x32xf32>
    %721 = vector.extract_strided_slice %702 {offsets = [0, 64], sizes = [2, 32], strides = [1, 1]} : vector<2x128xf32> to vector<2x32xf32>
    %722 = math.tanh %721 : vector<2x32xf32>
    %723 = vector.extract_strided_slice %702 {offsets = [0, 96], sizes = [2, 32], strides = [1, 1]} : vector<2x128xf32> to vector<2x32xf32>
    %724 = arith.negf %723 : vector<2x32xf32>
    %725 = math.exp %724 : vector<2x32xf32>
    %cst_211 = arith.constant 1.000000e+00 : f32
    %726 = vector.broadcast %cst_211 : f32 to vector<2x32xf32>
    %727 = arith.addf %726, %725 : vector<2x32xf32>
    %728 = arith.divf %726, %727 : vector<2x32xf32>
    %729 = arith.mulf %720, %657 : vector<2x32xf32>
    %730 = arith.mulf %714, %722 : vector<2x32xf32>
    %731 = arith.addf %729, %730 : vector<2x32xf32>
    %732 = math.tanh %731 : vector<2x32xf32>
    %733 = arith.mulf %728, %732 : vector<2x32xf32>
    %734 = vector.extract_strided_slice %708 {offsets = [0, 0], sizes = [2, 32], strides = [1, 1]} : vector<2x128xf32> to vector<2x32xf32>
    %735 = arith.negf %734 : vector<2x32xf32>
    %736 = math.exp %735 : vector<2x32xf32>
    %cst_212 = arith.constant 1.000000e+00 : f32
    %737 = vector.broadcast %cst_212 : f32 to vector<2x32xf32>
    %738 = arith.addf %737, %736 : vector<2x32xf32>
    %739 = arith.divf %737, %738 : vector<2x32xf32>
    %740 = vector.extract_strided_slice %708 {offsets = [0, 32], sizes = [2, 32], strides = [1, 1]} : vector<2x128xf32> to vector<2x32xf32>
    %741 = arith.negf %740 : vector<2x32xf32>
    %742 = math.exp %741 : vector<2x32xf32>
    %cst_213 = arith.constant 1.000000e+00 : f32
    %743 = vector.broadcast %cst_213 : f32 to vector<2x32xf32>
    %744 = arith.addf %743, %742 : vector<2x32xf32>
    %745 = arith.divf %743, %744 : vector<2x32xf32>
    %746 = vector.extract_strided_slice %708 {offsets = [0, 64], sizes = [2, 32], strides = [1, 1]} : vector<2x128xf32> to vector<2x32xf32>
    %747 = math.tanh %746 : vector<2x32xf32>
    %748 = vector.extract_strided_slice %708 {offsets = [0, 96], sizes = [2, 32], strides = [1, 1]} : vector<2x128xf32> to vector<2x32xf32>
    %749 = arith.negf %748 : vector<2x32xf32>
    %750 = math.exp %749 : vector<2x32xf32>
    %cst_214 = arith.constant 1.000000e+00 : f32
    %751 = vector.broadcast %cst_214 : f32 to vector<2x32xf32>
    %752 = arith.addf %751, %750 : vector<2x32xf32>
    %753 = arith.divf %751, %752 : vector<2x32xf32>
    %754 = arith.mulf %745, %682 : vector<2x32xf32>
    %755 = arith.mulf %739, %747 : vector<2x32xf32>
    %756 = arith.addf %754, %755 : vector<2x32xf32>
    %757 = math.tanh %756 : vector<2x32xf32>
    %758 = arith.mulf %753, %757 : vector<2x32xf32>
    %759 = arith.index_cast %c1_i32_200 : i32 to index
    %c0_215 = arith.constant 0 : index
    %c0_216 = arith.constant 0 : index
    %760 = vector.load %arg9[%759, %c0_215, %c0_216] : memref<8x2x32xf32, #tpu.memory_space<vmem>>, vector<1x2x32xf32>
    %761 = vector.shape_cast %760 : vector<1x2x32xf32> to vector<2x32xf32>
    %762 = vector.shape_cast %733 : vector<2x32xf32> to vector<1x2x32xf32>
    tpu.vector_store %arg9[%759, %c0_215, %c0_216], %762 {strides = array<i32>} : memref<8x2x32xf32, #tpu.memory_space<vmem>>, vector<1x2x32xf32>,
    %763 = arith.index_cast %694 : i32 to index
    %c0_217 = arith.constant 0 : index
    %c0_218 = arith.constant 0 : index
    %764 = vector.load %arg10[%763, %c0_217, %c0_218] : memref<8x2x32xf32, #tpu.memory_space<vmem>>, vector<1x2x32xf32>
    %765 = vector.shape_cast %764 : vector<1x2x32xf32> to vector<2x32xf32>
    %766 = vector.shape_cast %758 : vector<2x32xf32> to vector<1x2x32xf32>
    tpu.vector_store %arg10[%763, %c0_217, %c0_218], %766 {strides = array<i32>} : memref<8x2x32xf32, #tpu.memory_space<vmem>>, vector<1x2x32xf32>,
    %767 = tpu.concatenate %733, %758 in 1 : vector<2x32xf32>, vector<2x32xf32> -> vector<2x64xf32>
    %c2_i32_219 = arith.constant 2 : i32
    %c7_i32_220 = arith.constant 7 : i32
    %768 = arith.subi %c7_i32_220, %c2_i32_219 : i32
    %c0_221 = arith.constant 0 : index
    %c0_222 = arith.constant 0 : index
    %769 = vector.load %arg5[%c0_221, %c0_222] : memref<64x256xf32, #tpu.memory_space<vmem>>, vector<64x256xf32>
    %cst_223 = arith.constant dense<0.000000e+00> : vector<2x256xf32>
    %770 = tpu.matmul %767, %769, %cst_223 {dimension_numbers = #tpu.dot_dimension_numbers<[1], [0], [0], [1], [0, 0, 1, 1], [], []>} : vector<2x64xf32>, vector<64x256xf32>, vector<2x256xf32> -> vector<2x256xf32>
    %771 = arith.index_cast %c2_i32_219 : i32 to index
    %c0_224 = arith.constant 0 : index
    %c0_225 = arith.constant 0 : index
    %772 = vector.load %arg8[%771, %c0_224, %c0_225] : memref<8x2x256xf32, #tpu.memory_space<vmem>>, vector<1x2x256xf32>
    %773 = vector.shape_cast %772 : vector<1x2x256xf32> to vector<2x256xf32>
    %774 = vector.extract_strided_slice %773 {offsets = [0, 0], sizes = [2, 128], strides = [1, 1]} : vector<2x256xf32> to vector<2x128xf32>
    %775 = vector.extract_strided_slice %770 {offsets = [0, 0], sizes = [2, 128], strides = [1, 1]} : vector<2x256xf32> to vector<2x128xf32>
    %776 = arith.addf %774, %775 : vector<2x128xf32>
    %777 = arith.index_cast %768 : i32 to index
    %c0_226 = arith.constant 0 : index
    %c0_227 = arith.constant 0 : index
    %778 = vector.load %arg8[%777, %c0_226, %c0_227] : memref<8x2x256xf32, #tpu.memory_space<vmem>>, vector<1x2x256xf32>
    %779 = vector.shape_cast %778 : vector<1x2x256xf32> to vector<2x256xf32>
    %780 = vector.extract_strided_slice %779 {offsets = [0, 128], sizes = [2, 128], strides = [1, 1]} : vector<2x256xf32> to vector<2x128xf32>
    %781 = vector.extract_strided_slice %770 {offsets = [0, 128], sizes = [2, 128], strides = [1, 1]} : vector<2x256xf32> to vector<2x128xf32>
    %782 = arith.addf %780, %781 : vector<2x128xf32>
    %783 = vector.extract_strided_slice %776 {offsets = [0, 0], sizes = [2, 32], strides = [1, 1]} : vector<2x128xf32> to vector<2x32xf32>
    %784 = arith.negf %783 : vector<2x32xf32>
    %785 = math.exp %784 : vector<2x32xf32>
    %cst_228 = arith.constant 1.000000e+00 : f32
    %786 = vector.broadcast %cst_228 : f32 to vector<2x32xf32>
    %787 = arith.addf %786, %785 : vector<2x32xf32>
    %788 = arith.divf %786, %787 : vector<2x32xf32>
    %789 = vector.extract_strided_slice %776 {offsets = [0, 32], sizes = [2, 32], strides = [1, 1]} : vector<2x128xf32> to vector<2x32xf32>
    %790 = arith.negf %789 : vector<2x32xf32>
    %791 = math.exp %790 : vector<2x32xf32>
    %cst_229 = arith.constant 1.000000e+00 : f32
    %792 = vector.broadcast %cst_229 : f32 to vector<2x32xf32>
    %793 = arith.addf %792, %791 : vector<2x32xf32>
    %794 = arith.divf %792, %793 : vector<2x32xf32>
    %795 = vector.extract_strided_slice %776 {offsets = [0, 64], sizes = [2, 32], strides = [1, 1]} : vector<2x128xf32> to vector<2x32xf32>
    %796 = math.tanh %795 : vector<2x32xf32>
    %797 = vector.extract_strided_slice %776 {offsets = [0, 96], sizes = [2, 32], strides = [1, 1]} : vector<2x128xf32> to vector<2x32xf32>
    %798 = arith.negf %797 : vector<2x32xf32>
    %799 = math.exp %798 : vector<2x32xf32>
    %cst_230 = arith.constant 1.000000e+00 : f32
    %800 = vector.broadcast %cst_230 : f32 to vector<2x32xf32>
    %801 = arith.addf %800, %799 : vector<2x32xf32>
    %802 = arith.divf %800, %801 : vector<2x32xf32>
    %803 = arith.mulf %794, %731 : vector<2x32xf32>
    %804 = arith.mulf %788, %796 : vector<2x32xf32>
    %805 = arith.addf %803, %804 : vector<2x32xf32>
    %806 = math.tanh %805 : vector<2x32xf32>
    %807 = arith.mulf %802, %806 : vector<2x32xf32>
    %808 = vector.extract_strided_slice %782 {offsets = [0, 0], sizes = [2, 32], strides = [1, 1]} : vector<2x128xf32> to vector<2x32xf32>
    %809 = arith.negf %808 : vector<2x32xf32>
    %810 = math.exp %809 : vector<2x32xf32>
    %cst_231 = arith.constant 1.000000e+00 : f32
    %811 = vector.broadcast %cst_231 : f32 to vector<2x32xf32>
    %812 = arith.addf %811, %810 : vector<2x32xf32>
    %813 = arith.divf %811, %812 : vector<2x32xf32>
    %814 = vector.extract_strided_slice %782 {offsets = [0, 32], sizes = [2, 32], strides = [1, 1]} : vector<2x128xf32> to vector<2x32xf32>
    %815 = arith.negf %814 : vector<2x32xf32>
    %816 = math.exp %815 : vector<2x32xf32>
    %cst_232 = arith.constant 1.000000e+00 : f32
    %817 = vector.broadcast %cst_232 : f32 to vector<2x32xf32>
    %818 = arith.addf %817, %816 : vector<2x32xf32>
    %819 = arith.divf %817, %818 : vector<2x32xf32>
    %820 = vector.extract_strided_slice %782 {offsets = [0, 64], sizes = [2, 32], strides = [1, 1]} : vector<2x128xf32> to vector<2x32xf32>
    %821 = math.tanh %820 : vector<2x32xf32>
    %822 = vector.extract_strided_slice %782 {offsets = [0, 96], sizes = [2, 32], strides = [1, 1]} : vector<2x128xf32> to vector<2x32xf32>
    %823 = arith.negf %822 : vector<2x32xf32>
    %824 = math.exp %823 : vector<2x32xf32>
    %cst_233 = arith.constant 1.000000e+00 : f32
    %825 = vector.broadcast %cst_233 : f32 to vector<2x32xf32>
    %826 = arith.addf %825, %824 : vector<2x32xf32>
    %827 = arith.divf %825, %826 : vector<2x32xf32>
    %828 = arith.mulf %819, %756 : vector<2x32xf32>
    %829 = arith.mulf %813, %821 : vector<2x32xf32>
    %830 = arith.addf %828, %829 : vector<2x32xf32>
    %831 = math.tanh %830 : vector<2x32xf32>
    %832 = arith.mulf %827, %831 : vector<2x32xf32>
    %833 = arith.index_cast %c2_i32_219 : i32 to index
    %c0_234 = arith.constant 0 : index
    %c0_235 = arith.constant 0 : index
    %834 = vector.load %arg9[%833, %c0_234, %c0_235] : memref<8x2x32xf32, #tpu.memory_space<vmem>>, vector<1x2x32xf32>
    %835 = vector.shape_cast %834 : vector<1x2x32xf32> to vector<2x32xf32>
    %836 = vector.shape_cast %807 : vector<2x32xf32> to vector<1x2x32xf32>
    tpu.vector_store %arg9[%833, %c0_234, %c0_235], %836 {strides = array<i32>} : memref<8x2x32xf32, #tpu.memory_space<vmem>>, vector<1x2x32xf32>,
    %837 = arith.index_cast %768 : i32 to index
    %c0_236 = arith.constant 0 : index
    %c0_237 = arith.constant 0 : index
    %838 = vector.load %arg10[%837, %c0_236, %c0_237] : memref<8x2x32xf32, #tpu.memory_space<vmem>>, vector<1x2x32xf32>
    %839 = vector.shape_cast %838 : vector<1x2x32xf32> to vector<2x32xf32>
    %840 = vector.shape_cast %832 : vector<2x32xf32> to vector<1x2x32xf32>
    tpu.vector_store %arg10[%837, %c0_236, %c0_237], %840 {strides = array<i32>} : memref<8x2x32xf32, #tpu.memory_space<vmem>>, vector<1x2x32xf32>,
    %841 = tpu.concatenate %807, %832 in 1 : vector<2x32xf32>, vector<2x32xf32> -> vector<2x64xf32>
    %c3_i32_238 = arith.constant 3 : i32
    %c7_i32_239 = arith.constant 7 : i32
    %842 = arith.subi %c7_i32_239, %c3_i32_238 : i32
    %c0_240 = arith.constant 0 : index
    %c0_241 = arith.constant 0 : index
    %843 = vector.load %arg5[%c0_240, %c0_241] : memref<64x256xf32, #tpu.memory_space<vmem>>, vector<64x256xf32>
    %cst_242 = arith.constant dense<0.000000e+00> : vector<2x256xf32>
    %844 = tpu.matmul %841, %843, %cst_242 {dimension_numbers = #tpu.dot_dimension_numbers<[1], [0], [0], [1], [0, 0, 1, 1], [], []>} : vector<2x64xf32>, vector<64x256xf32>, vector<2x256xf32> -> vector<2x256xf32>
    %845 = arith.index_cast %c3_i32_238 : i32 to index
    %c0_243 = arith.constant 0 : index
    %c0_244 = arith.constant 0 : index
    %846 = vector.load %arg8[%845, %c0_243, %c0_244] : memref<8x2x256xf32, #tpu.memory_space<vmem>>, vector<1x2x256xf32>
    %847 = vector.shape_cast %846 : vector<1x2x256xf32> to vector<2x256xf32>
    %848 = vector.extract_strided_slice %847 {offsets = [0, 0], sizes = [2, 128], strides = [1, 1]} : vector<2x256xf32> to vector<2x128xf32>
    %849 = vector.extract_strided_slice %844 {offsets = [0, 0], sizes = [2, 128], strides = [1, 1]} : vector<2x256xf32> to vector<2x128xf32>
    %850 = arith.addf %848, %849 : vector<2x128xf32>
    %851 = arith.index_cast %842 : i32 to index
    %c0_245 = arith.constant 0 : index
    %c0_246 = arith.constant 0 : index
    %852 = vector.load %arg8[%851, %c0_245, %c0_246] : memref<8x2x256xf32, #tpu.memory_space<vmem>>, vector<1x2x256xf32>
    %853 = vector.shape_cast %852 : vector<1x2x256xf32> to vector<2x256xf32>
    %854 = vector.extract_strided_slice %853 {offsets = [0, 128], sizes = [2, 128], strides = [1, 1]} : vector<2x256xf32> to vector<2x128xf32>
    %855 = vector.extract_strided_slice %844 {offsets = [0, 128], sizes = [2, 128], strides = [1, 1]} : vector<2x256xf32> to vector<2x128xf32>
    %856 = arith.addf %854, %855 : vector<2x128xf32>
    %857 = vector.extract_strided_slice %850 {offsets = [0, 0], sizes = [2, 32], strides = [1, 1]} : vector<2x128xf32> to vector<2x32xf32>
    %858 = arith.negf %857 : vector<2x32xf32>
    %859 = math.exp %858 : vector<2x32xf32>
    %cst_247 = arith.constant 1.000000e+00 : f32
    %860 = vector.broadcast %cst_247 : f32 to vector<2x32xf32>
    %861 = arith.addf %860, %859 : vector<2x32xf32>
    %862 = arith.divf %860, %861 : vector<2x32xf32>
    %863 = vector.extract_strided_slice %850 {offsets = [0, 32], sizes = [2, 32], strides = [1, 1]} : vector<2x128xf32> to vector<2x32xf32>
    %864 = arith.negf %863 : vector<2x32xf32>
    %865 = math.exp %864 : vector<2x32xf32>
    %cst_248 = arith.constant 1.000000e+00 : f32
    %866 = vector.broadcast %cst_248 : f32 to vector<2x32xf32>
    %867 = arith.addf %866, %865 : vector<2x32xf32>
    %868 = arith.divf %866, %867 : vector<2x32xf32>
    %869 = vector.extract_strided_slice %850 {offsets = [0, 64], sizes = [2, 32], strides = [1, 1]} : vector<2x128xf32> to vector<2x32xf32>
    %870 = math.tanh %869 : vector<2x32xf32>
    %871 = vector.extract_strided_slice %850 {offsets = [0, 96], sizes = [2, 32], strides = [1, 1]} : vector<2x128xf32> to vector<2x32xf32>
    %872 = arith.negf %871 : vector<2x32xf32>
    %873 = math.exp %872 : vector<2x32xf32>
    %cst_249 = arith.constant 1.000000e+00 : f32
    %874 = vector.broadcast %cst_249 : f32 to vector<2x32xf32>
    %875 = arith.addf %874, %873 : vector<2x32xf32>
    %876 = arith.divf %874, %875 : vector<2x32xf32>
    %877 = arith.mulf %868, %805 : vector<2x32xf32>
    %878 = arith.mulf %862, %870 : vector<2x32xf32>
    %879 = arith.addf %877, %878 : vector<2x32xf32>
    %880 = math.tanh %879 : vector<2x32xf32>
    %881 = arith.mulf %876, %880 : vector<2x32xf32>
    %882 = vector.extract_strided_slice %856 {offsets = [0, 0], sizes = [2, 32], strides = [1, 1]} : vector<2x128xf32> to vector<2x32xf32>
    %883 = arith.negf %882 : vector<2x32xf32>
    %884 = math.exp %883 : vector<2x32xf32>
    %cst_250 = arith.constant 1.000000e+00 : f32
    %885 = vector.broadcast %cst_250 : f32 to vector<2x32xf32>
    %886 = arith.addf %885, %884 : vector<2x32xf32>
    %887 = arith.divf %885, %886 : vector<2x32xf32>
    %888 = vector.extract_strided_slice %856 {offsets = [0, 32], sizes = [2, 32], strides = [1, 1]} : vector<2x128xf32> to vector<2x32xf32>
    %889 = arith.negf %888 : vector<2x32xf32>
    %890 = math.exp %889 : vector<2x32xf32>
    %cst_251 = arith.constant 1.000000e+00 : f32
    %891 = vector.broadcast %cst_251 : f32 to vector<2x32xf32>
    %892 = arith.addf %891, %890 : vector<2x32xf32>
    %893 = arith.divf %891, %892 : vector<2x32xf32>
    %894 = vector.extract_strided_slice %856 {offsets = [0, 64], sizes = [2, 32], strides = [1, 1]} : vector<2x128xf32> to vector<2x32xf32>
    %895 = math.tanh %894 : vector<2x32xf32>
    %896 = vector.extract_strided_slice %856 {offsets = [0, 96], sizes = [2, 32], strides = [1, 1]} : vector<2x128xf32> to vector<2x32xf32>
    %897 = arith.negf %896 : vector<2x32xf32>
    %898 = math.exp %897 : vector<2x32xf32>
    %cst_252 = arith.constant 1.000000e+00 : f32
    %899 = vector.broadcast %cst_252 : f32 to vector<2x32xf32>
    %900 = arith.addf %899, %898 : vector<2x32xf32>
    %901 = arith.divf %899, %900 : vector<2x32xf32>
    %902 = arith.mulf %893, %830 : vector<2x32xf32>
    %903 = arith.mulf %887, %895 : vector<2x32xf32>
    %904 = arith.addf %902, %903 : vector<2x32xf32>
    %905 = math.tanh %904 : vector<2x32xf32>
    %906 = arith.mulf %901, %905 : vector<2x32xf32>
    %907 = arith.index_cast %c3_i32_238 : i32 to index
    %c0_253 = arith.constant 0 : index
    %c0_254 = arith.constant 0 : index
    %908 = vector.load %arg9[%907, %c0_253, %c0_254] : memref<8x2x32xf32, #tpu.memory_space<vmem>>, vector<1x2x32xf32>
    %909 = vector.shape_cast %908 : vector<1x2x32xf32> to vector<2x32xf32>
    %910 = vector.shape_cast %881 : vector<2x32xf32> to vector<1x2x32xf32>
    tpu.vector_store %arg9[%907, %c0_253, %c0_254], %910 {strides = array<i32>} : memref<8x2x32xf32, #tpu.memory_space<vmem>>, vector<1x2x32xf32>,
    %911 = arith.index_cast %842 : i32 to index
    %c0_255 = arith.constant 0 : index
    %c0_256 = arith.constant 0 : index
    %912 = vector.load %arg10[%911, %c0_255, %c0_256] : memref<8x2x32xf32, #tpu.memory_space<vmem>>, vector<1x2x32xf32>
    %913 = vector.shape_cast %912 : vector<1x2x32xf32> to vector<2x32xf32>
    %914 = vector.shape_cast %906 : vector<2x32xf32> to vector<1x2x32xf32>
    tpu.vector_store %arg10[%911, %c0_255, %c0_256], %914 {strides = array<i32>} : memref<8x2x32xf32, #tpu.memory_space<vmem>>, vector<1x2x32xf32>,
    %915 = tpu.concatenate %881, %906 in 1 : vector<2x32xf32>, vector<2x32xf32> -> vector<2x64xf32>
    %c4_i32_257 = arith.constant 4 : i32
    %c7_i32_258 = arith.constant 7 : i32
    %916 = arith.subi %c7_i32_258, %c4_i32_257 : i32
    %c0_259 = arith.constant 0 : index
    %c0_260 = arith.constant 0 : index
    %917 = vector.load %arg5[%c0_259, %c0_260] : memref<64x256xf32, #tpu.memory_space<vmem>>, vector<64x256xf32>
    %cst_261 = arith.constant dense<0.000000e+00> : vector<2x256xf32>
    %918 = tpu.matmul %915, %917, %cst_261 {dimension_numbers = #tpu.dot_dimension_numbers<[1], [0], [0], [1], [0, 0, 1, 1], [], []>} : vector<2x64xf32>, vector<64x256xf32>, vector<2x256xf32> -> vector<2x256xf32>
    %919 = arith.index_cast %c4_i32_257 : i32 to index
    %c0_262 = arith.constant 0 : index
    %c0_263 = arith.constant 0 : index
    %920 = vector.load %arg8[%919, %c0_262, %c0_263] : memref<8x2x256xf32, #tpu.memory_space<vmem>>, vector<1x2x256xf32>
    %921 = vector.shape_cast %920 : vector<1x2x256xf32> to vector<2x256xf32>
    %922 = vector.extract_strided_slice %921 {offsets = [0, 0], sizes = [2, 128], strides = [1, 1]} : vector<2x256xf32> to vector<2x128xf32>
    %923 = vector.extract_strided_slice %918 {offsets = [0, 0], sizes = [2, 128], strides = [1, 1]} : vector<2x256xf32> to vector<2x128xf32>
    %924 = arith.addf %922, %923 : vector<2x128xf32>
    %925 = arith.index_cast %916 : i32 to index
    %c0_264 = arith.constant 0 : index
    %c0_265 = arith.constant 0 : index
    %926 = vector.load %arg8[%925, %c0_264, %c0_265] : memref<8x2x256xf32, #tpu.memory_space<vmem>>, vector<1x2x256xf32>
    %927 = vector.shape_cast %926 : vector<1x2x256xf32> to vector<2x256xf32>
    %928 = vector.extract_strided_slice %927 {offsets = [0, 128], sizes = [2, 128], strides = [1, 1]} : vector<2x256xf32> to vector<2x128xf32>
    %929 = vector.extract_strided_slice %918 {offsets = [0, 128], sizes = [2, 128], strides = [1, 1]} : vector<2x256xf32> to vector<2x128xf32>
    %930 = arith.addf %928, %929 : vector<2x128xf32>
    %931 = vector.extract_strided_slice %924 {offsets = [0, 0], sizes = [2, 32], strides = [1, 1]} : vector<2x128xf32> to vector<2x32xf32>
    %932 = arith.negf %931 : vector<2x32xf32>
    %933 = math.exp %932 : vector<2x32xf32>
    %cst_266 = arith.constant 1.000000e+00 : f32
    %934 = vector.broadcast %cst_266 : f32 to vector<2x32xf32>
    %935 = arith.addf %934, %933 : vector<2x32xf32>
    %936 = arith.divf %934, %935 : vector<2x32xf32>
    %937 = vector.extract_strided_slice %924 {offsets = [0, 32], sizes = [2, 32], strides = [1, 1]} : vector<2x128xf32> to vector<2x32xf32>
    %938 = arith.negf %937 : vector<2x32xf32>
    %939 = math.exp %938 : vector<2x32xf32>
    %cst_267 = arith.constant 1.000000e+00 : f32
    %940 = vector.broadcast %cst_267 : f32 to vector<2x32xf32>
    %941 = arith.addf %940, %939 : vector<2x32xf32>
    %942 = arith.divf %940, %941 : vector<2x32xf32>
    %943 = vector.extract_strided_slice %924 {offsets = [0, 64], sizes = [2, 32], strides = [1, 1]} : vector<2x128xf32> to vector<2x32xf32>
    %944 = math.tanh %943 : vector<2x32xf32>
    %945 = vector.extract_strided_slice %924 {offsets = [0, 96], sizes = [2, 32], strides = [1, 1]} : vector<2x128xf32> to vector<2x32xf32>
    %946 = arith.negf %945 : vector<2x32xf32>
    %947 = math.exp %946 : vector<2x32xf32>
    %cst_268 = arith.constant 1.000000e+00 : f32
    %948 = vector.broadcast %cst_268 : f32 to vector<2x32xf32>
    %949 = arith.addf %948, %947 : vector<2x32xf32>
    %950 = arith.divf %948, %949 : vector<2x32xf32>
    %951 = arith.mulf %942, %879 : vector<2x32xf32>
    %952 = arith.mulf %936, %944 : vector<2x32xf32>
    %953 = arith.addf %951, %952 : vector<2x32xf32>
    %954 = math.tanh %953 : vector<2x32xf32>
    %955 = arith.mulf %950, %954 : vector<2x32xf32>
    %956 = vector.extract_strided_slice %930 {offsets = [0, 0], sizes = [2, 32], strides = [1, 1]} : vector<2x128xf32> to vector<2x32xf32>
    %957 = arith.negf %956 : vector<2x32xf32>
    %958 = math.exp %957 : vector<2x32xf32>
    %cst_269 = arith.constant 1.000000e+00 : f32
    %959 = vector.broadcast %cst_269 : f32 to vector<2x32xf32>
    %960 = arith.addf %959, %958 : vector<2x32xf32>
    %961 = arith.divf %959, %960 : vector<2x32xf32>
    %962 = vector.extract_strided_slice %930 {offsets = [0, 32], sizes = [2, 32], strides = [1, 1]} : vector<2x128xf32> to vector<2x32xf32>
    %963 = arith.negf %962 : vector<2x32xf32>
    %964 = math.exp %963 : vector<2x32xf32>
    %cst_270 = arith.constant 1.000000e+00 : f32
    %965 = vector.broadcast %cst_270 : f32 to vector<2x32xf32>
    %966 = arith.addf %965, %964 : vector<2x32xf32>
    %967 = arith.divf %965, %966 : vector<2x32xf32>
    %968 = vector.extract_strided_slice %930 {offsets = [0, 64], sizes = [2, 32], strides = [1, 1]} : vector<2x128xf32> to vector<2x32xf32>
    %969 = math.tanh %968 : vector<2x32xf32>
    %970 = vector.extract_strided_slice %930 {offsets = [0, 96], sizes = [2, 32], strides = [1, 1]} : vector<2x128xf32> to vector<2x32xf32>
    %971 = arith.negf %970 : vector<2x32xf32>
    %972 = math.exp %971 : vector<2x32xf32>
    %cst_271 = arith.constant 1.000000e+00 : f32
    %973 = vector.broadcast %cst_271 : f32 to vector<2x32xf32>
    %974 = arith.addf %973, %972 : vector<2x32xf32>
    %975 = arith.divf %973, %974 : vector<2x32xf32>
    %976 = arith.mulf %967, %904 : vector<2x32xf32>
    %977 = arith.mulf %961, %969 : vector<2x32xf32>
    %978 = arith.addf %976, %977 : vector<2x32xf32>
    %979 = math.tanh %978 : vector<2x32xf32>
    %980 = arith.mulf %975, %979 : vector<2x32xf32>
    %981 = arith.index_cast %c4_i32_257 : i32 to index
    %c0_272 = arith.constant 0 : index
    %c0_273 = arith.constant 0 : index
    %982 = vector.load %arg9[%981, %c0_272, %c0_273] : memref<8x2x32xf32, #tpu.memory_space<vmem>>, vector<1x2x32xf32>
    %983 = vector.shape_cast %982 : vector<1x2x32xf32> to vector<2x32xf32>
    %984 = vector.shape_cast %955 : vector<2x32xf32> to vector<1x2x32xf32>
    tpu.vector_store %arg9[%981, %c0_272, %c0_273], %984 {strides = array<i32>} : memref<8x2x32xf32, #tpu.memory_space<vmem>>, vector<1x2x32xf32>,
    %985 = arith.index_cast %916 : i32 to index
    %c0_274 = arith.constant 0 : index
    %c0_275 = arith.constant 0 : index
    %986 = vector.load %arg10[%985, %c0_274, %c0_275] : memref<8x2x32xf32, #tpu.memory_space<vmem>>, vector<1x2x32xf32>
    %987 = vector.shape_cast %986 : vector<1x2x32xf32> to vector<2x32xf32>
    %988 = vector.shape_cast %980 : vector<2x32xf32> to vector<1x2x32xf32>
    tpu.vector_store %arg10[%985, %c0_274, %c0_275], %988 {strides = array<i32>} : memref<8x2x32xf32, #tpu.memory_space<vmem>>, vector<1x2x32xf32>,
    %989 = tpu.concatenate %955, %980 in 1 : vector<2x32xf32>, vector<2x32xf32> -> vector<2x64xf32>
    %c5_i32_276 = arith.constant 5 : i32
    %c7_i32_277 = arith.constant 7 : i32
    %990 = arith.subi %c7_i32_277, %c5_i32_276 : i32
    %c0_278 = arith.constant 0 : index
    %c0_279 = arith.constant 0 : index
    %991 = vector.load %arg5[%c0_278, %c0_279] : memref<64x256xf32, #tpu.memory_space<vmem>>, vector<64x256xf32>
    %cst_280 = arith.constant dense<0.000000e+00> : vector<2x256xf32>
    %992 = tpu.matmul %989, %991, %cst_280 {dimension_numbers = #tpu.dot_dimension_numbers<[1], [0], [0], [1], [0, 0, 1, 1], [], []>} : vector<2x64xf32>, vector<64x256xf32>, vector<2x256xf32> -> vector<2x256xf32>
    %993 = arith.index_cast %c5_i32_276 : i32 to index
    %c0_281 = arith.constant 0 : index
    %c0_282 = arith.constant 0 : index
    %994 = vector.load %arg8[%993, %c0_281, %c0_282] : memref<8x2x256xf32, #tpu.memory_space<vmem>>, vector<1x2x256xf32>
    %995 = vector.shape_cast %994 : vector<1x2x256xf32> to vector<2x256xf32>
    %996 = vector.extract_strided_slice %995 {offsets = [0, 0], sizes = [2, 128], strides = [1, 1]} : vector<2x256xf32> to vector<2x128xf32>
    %997 = vector.extract_strided_slice %992 {offsets = [0, 0], sizes = [2, 128], strides = [1, 1]} : vector<2x256xf32> to vector<2x128xf32>
    %998 = arith.addf %996, %997 : vector<2x128xf32>
    %999 = arith.index_cast %990 : i32 to index
    %c0_283 = arith.constant 0 : index
    %c0_284 = arith.constant 0 : index
    %1000 = vector.load %arg8[%999, %c0_283, %c0_284] : memref<8x2x256xf32, #tpu.memory_space<vmem>>, vector<1x2x256xf32>
    %1001 = vector.shape_cast %1000 : vector<1x2x256xf32> to vector<2x256xf32>
    %1002 = vector.extract_strided_slice %1001 {offsets = [0, 128], sizes = [2, 128], strides = [1, 1]} : vector<2x256xf32> to vector<2x128xf32>
    %1003 = vector.extract_strided_slice %992 {offsets = [0, 128], sizes = [2, 128], strides = [1, 1]} : vector<2x256xf32> to vector<2x128xf32>
    %1004 = arith.addf %1002, %1003 : vector<2x128xf32>
    %1005 = vector.extract_strided_slice %998 {offsets = [0, 0], sizes = [2, 32], strides = [1, 1]} : vector<2x128xf32> to vector<2x32xf32>
    %1006 = arith.negf %1005 : vector<2x32xf32>
    %1007 = math.exp %1006 : vector<2x32xf32>
    %cst_285 = arith.constant 1.000000e+00 : f32
    %1008 = vector.broadcast %cst_285 : f32 to vector<2x32xf32>
    %1009 = arith.addf %1008, %1007 : vector<2x32xf32>
    %1010 = arith.divf %1008, %1009 : vector<2x32xf32>
    %1011 = vector.extract_strided_slice %998 {offsets = [0, 32], sizes = [2, 32], strides = [1, 1]} : vector<2x128xf32> to vector<2x32xf32>
    %1012 = arith.negf %1011 : vector<2x32xf32>
    %1013 = math.exp %1012 : vector<2x32xf32>
    %cst_286 = arith.constant 1.000000e+00 : f32
    %1014 = vector.broadcast %cst_286 : f32 to vector<2x32xf32>
    %1015 = arith.addf %1014, %1013 : vector<2x32xf32>
    %1016 = arith.divf %1014, %1015 : vector<2x32xf32>
    %1017 = vector.extract_strided_slice %998 {offsets = [0, 64], sizes = [2, 32], strides = [1, 1]} : vector<2x128xf32> to vector<2x32xf32>
    %1018 = math.tanh %1017 : vector<2x32xf32>
    %1019 = vector.extract_strided_slice %998 {offsets = [0, 96], sizes = [2, 32], strides = [1, 1]} : vector<2x128xf32> to vector<2x32xf32>
    %1020 = arith.negf %1019 : vector<2x32xf32>
    %1021 = math.exp %1020 : vector<2x32xf32>
    %cst_287 = arith.constant 1.000000e+00 : f32
    %1022 = vector.broadcast %cst_287 : f32 to vector<2x32xf32>
    %1023 = arith.addf %1022, %1021 : vector<2x32xf32>
    %1024 = arith.divf %1022, %1023 : vector<2x32xf32>
    %1025 = arith.mulf %1016, %953 : vector<2x32xf32>
    %1026 = arith.mulf %1010, %1018 : vector<2x32xf32>
    %1027 = arith.addf %1025, %1026 : vector<2x32xf32>
    %1028 = math.tanh %1027 : vector<2x32xf32>
    %1029 = arith.mulf %1024, %1028 : vector<2x32xf32>
    %1030 = vector.extract_strided_slice %1004 {offsets = [0, 0], sizes = [2, 32], strides = [1, 1]} : vector<2x128xf32> to vector<2x32xf32>
    %1031 = arith.negf %1030 : vector<2x32xf32>
    %1032 = math.exp %1031 : vector<2x32xf32>
    %cst_288 = arith.constant 1.000000e+00 : f32
    %1033 = vector.broadcast %cst_288 : f32 to vector<2x32xf32>
    %1034 = arith.addf %1033, %1032 : vector<2x32xf32>
    %1035 = arith.divf %1033, %1034 : vector<2x32xf32>
    %1036 = vector.extract_strided_slice %1004 {offsets = [0, 32], sizes = [2, 32], strides = [1, 1]} : vector<2x128xf32> to vector<2x32xf32>
    %1037 = arith.negf %1036 : vector<2x32xf32>
    %1038 = math.exp %1037 : vector<2x32xf32>
    %cst_289 = arith.constant 1.000000e+00 : f32
    %1039 = vector.broadcast %cst_289 : f32 to vector<2x32xf32>
    %1040 = arith.addf %1039, %1038 : vector<2x32xf32>
    %1041 = arith.divf %1039, %1040 : vector<2x32xf32>
    %1042 = vector.extract_strided_slice %1004 {offsets = [0, 64], sizes = [2, 32], strides = [1, 1]} : vector<2x128xf32> to vector<2x32xf32>
    %1043 = math.tanh %1042 : vector<2x32xf32>
    %1044 = vector.extract_strided_slice %1004 {offsets = [0, 96], sizes = [2, 32], strides = [1, 1]} : vector<2x128xf32> to vector<2x32xf32>
    %1045 = arith.negf %1044 : vector<2x32xf32>
    %1046 = math.exp %1045 : vector<2x32xf32>
    %cst_290 = arith.constant 1.000000e+00 : f32
    %1047 = vector.broadcast %cst_290 : f32 to vector<2x32xf32>
    %1048 = arith.addf %1047, %1046 : vector<2x32xf32>
    %1049 = arith.divf %1047, %1048 : vector<2x32xf32>
    %1050 = arith.mulf %1041, %978 : vector<2x32xf32>
    %1051 = arith.mulf %1035, %1043 : vector<2x32xf32>
    %1052 = arith.addf %1050, %1051 : vector<2x32xf32>
    %1053 = math.tanh %1052 : vector<2x32xf32>
    %1054 = arith.mulf %1049, %1053 : vector<2x32xf32>
    %1055 = arith.index_cast %c5_i32_276 : i32 to index
    %c0_291 = arith.constant 0 : index
    %c0_292 = arith.constant 0 : index
    %1056 = vector.load %arg9[%1055, %c0_291, %c0_292] : memref<8x2x32xf32, #tpu.memory_space<vmem>>, vector<1x2x32xf32>
    %1057 = vector.shape_cast %1056 : vector<1x2x32xf32> to vector<2x32xf32>
    %1058 = vector.shape_cast %1029 : vector<2x32xf32> to vector<1x2x32xf32>
    tpu.vector_store %arg9[%1055, %c0_291, %c0_292], %1058 {strides = array<i32>} : memref<8x2x32xf32, #tpu.memory_space<vmem>>, vector<1x2x32xf32>,
    %1059 = arith.index_cast %990 : i32 to index
    %c0_293 = arith.constant 0 : index
    %c0_294 = arith.constant 0 : index
    %1060 = vector.load %arg10[%1059, %c0_293, %c0_294] : memref<8x2x32xf32, #tpu.memory_space<vmem>>, vector<1x2x32xf32>
    %1061 = vector.shape_cast %1060 : vector<1x2x32xf32> to vector<2x32xf32>
    %1062 = vector.shape_cast %1054 : vector<2x32xf32> to vector<1x2x32xf32>
    tpu.vector_store %arg10[%1059, %c0_293, %c0_294], %1062 {strides = array<i32>} : memref<8x2x32xf32, #tpu.memory_space<vmem>>, vector<1x2x32xf32>,
    %1063 = tpu.concatenate %1029, %1054 in 1 : vector<2x32xf32>, vector<2x32xf32> -> vector<2x64xf32>
    %c6_i32_295 = arith.constant 6 : i32
    %c7_i32_296 = arith.constant 7 : i32
    %1064 = arith.subi %c7_i32_296, %c6_i32_295 : i32
    %c0_297 = arith.constant 0 : index
    %c0_298 = arith.constant 0 : index
    %1065 = vector.load %arg5[%c0_297, %c0_298] : memref<64x256xf32, #tpu.memory_space<vmem>>, vector<64x256xf32>
    %cst_299 = arith.constant dense<0.000000e+00> : vector<2x256xf32>
    %1066 = tpu.matmul %1063, %1065, %cst_299 {dimension_numbers = #tpu.dot_dimension_numbers<[1], [0], [0], [1], [0, 0, 1, 1], [], []>} : vector<2x64xf32>, vector<64x256xf32>, vector<2x256xf32> -> vector<2x256xf32>
    %1067 = arith.index_cast %c6_i32_295 : i32 to index
    %c0_300 = arith.constant 0 : index
    %c0_301 = arith.constant 0 : index
    %1068 = vector.load %arg8[%1067, %c0_300, %c0_301] : memref<8x2x256xf32, #tpu.memory_space<vmem>>, vector<1x2x256xf32>
    %1069 = vector.shape_cast %1068 : vector<1x2x256xf32> to vector<2x256xf32>
    %1070 = vector.extract_strided_slice %1069 {offsets = [0, 0], sizes = [2, 128], strides = [1, 1]} : vector<2x256xf32> to vector<2x128xf32>
    %1071 = vector.extract_strided_slice %1066 {offsets = [0, 0], sizes = [2, 128], strides = [1, 1]} : vector<2x256xf32> to vector<2x128xf32>
    %1072 = arith.addf %1070, %1071 : vector<2x128xf32>
    %1073 = arith.index_cast %1064 : i32 to index
    %c0_302 = arith.constant 0 : index
    %c0_303 = arith.constant 0 : index
    %1074 = vector.load %arg8[%1073, %c0_302, %c0_303] : memref<8x2x256xf32, #tpu.memory_space<vmem>>, vector<1x2x256xf32>
    %1075 = vector.shape_cast %1074 : vector<1x2x256xf32> to vector<2x256xf32>
    %1076 = vector.extract_strided_slice %1075 {offsets = [0, 128], sizes = [2, 128], strides = [1, 1]} : vector<2x256xf32> to vector<2x128xf32>
    %1077 = vector.extract_strided_slice %1066 {offsets = [0, 128], sizes = [2, 128], strides = [1, 1]} : vector<2x256xf32> to vector<2x128xf32>
    %1078 = arith.addf %1076, %1077 : vector<2x128xf32>
    %1079 = vector.extract_strided_slice %1072 {offsets = [0, 0], sizes = [2, 32], strides = [1, 1]} : vector<2x128xf32> to vector<2x32xf32>
    %1080 = arith.negf %1079 : vector<2x32xf32>
    %1081 = math.exp %1080 : vector<2x32xf32>
    %cst_304 = arith.constant 1.000000e+00 : f32
    %1082 = vector.broadcast %cst_304 : f32 to vector<2x32xf32>
    %1083 = arith.addf %1082, %1081 : vector<2x32xf32>
    %1084 = arith.divf %1082, %1083 : vector<2x32xf32>
    %1085 = vector.extract_strided_slice %1072 {offsets = [0, 32], sizes = [2, 32], strides = [1, 1]} : vector<2x128xf32> to vector<2x32xf32>
    %1086 = arith.negf %1085 : vector<2x32xf32>
    %1087 = math.exp %1086 : vector<2x32xf32>
    %cst_305 = arith.constant 1.000000e+00 : f32
    %1088 = vector.broadcast %cst_305 : f32 to vector<2x32xf32>
    %1089 = arith.addf %1088, %1087 : vector<2x32xf32>
    %1090 = arith.divf %1088, %1089 : vector<2x32xf32>
    %1091 = vector.extract_strided_slice %1072 {offsets = [0, 64], sizes = [2, 32], strides = [1, 1]} : vector<2x128xf32> to vector<2x32xf32>
    %1092 = math.tanh %1091 : vector<2x32xf32>
    %1093 = vector.extract_strided_slice %1072 {offsets = [0, 96], sizes = [2, 32], strides = [1, 1]} : vector<2x128xf32> to vector<2x32xf32>
    %1094 = arith.negf %1093 : vector<2x32xf32>
    %1095 = math.exp %1094 : vector<2x32xf32>
    %cst_306 = arith.constant 1.000000e+00 : f32
    %1096 = vector.broadcast %cst_306 : f32 to vector<2x32xf32>
    %1097 = arith.addf %1096, %1095 : vector<2x32xf32>
    %1098 = arith.divf %1096, %1097 : vector<2x32xf32>
    %1099 = arith.mulf %1090, %1027 : vector<2x32xf32>
    %1100 = arith.mulf %1084, %1092 : vector<2x32xf32>
    %1101 = arith.addf %1099, %1100 : vector<2x32xf32>
    %1102 = math.tanh %1101 : vector<2x32xf32>
    %1103 = arith.mulf %1098, %1102 : vector<2x32xf32>
    %1104 = vector.extract_strided_slice %1078 {offsets = [0, 0], sizes = [2, 32], strides = [1, 1]} : vector<2x128xf32> to vector<2x32xf32>
    %1105 = arith.negf %1104 : vector<2x32xf32>
    %1106 = math.exp %1105 : vector<2x32xf32>
    %cst_307 = arith.constant 1.000000e+00 : f32
    %1107 = vector.broadcast %cst_307 : f32 to vector<2x32xf32>
    %1108 = arith.addf %1107, %1106 : vector<2x32xf32>
    %1109 = arith.divf %1107, %1108 : vector<2x32xf32>
    %1110 = vector.extract_strided_slice %1078 {offsets = [0, 32], sizes = [2, 32], strides = [1, 1]} : vector<2x128xf32> to vector<2x32xf32>
    %1111 = arith.negf %1110 : vector<2x32xf32>
    %1112 = math.exp %1111 : vector<2x32xf32>
    %cst_308 = arith.constant 1.000000e+00 : f32
    %1113 = vector.broadcast %cst_308 : f32 to vector<2x32xf32>
    %1114 = arith.addf %1113, %1112 : vector<2x32xf32>
    %1115 = arith.divf %1113, %1114 : vector<2x32xf32>
    %1116 = vector.extract_strided_slice %1078 {offsets = [0, 64], sizes = [2, 32], strides = [1, 1]} : vector<2x128xf32> to vector<2x32xf32>
    %1117 = math.tanh %1116 : vector<2x32xf32>
    %1118 = vector.extract_strided_slice %1078 {offsets = [0, 96], sizes = [2, 32], strides = [1, 1]} : vector<2x128xf32> to vector<2x32xf32>
    %1119 = arith.negf %1118 : vector<2x32xf32>
    %1120 = math.exp %1119 : vector<2x32xf32>
    %cst_309 = arith.constant 1.000000e+00 : f32
    %1121 = vector.broadcast %cst_309 : f32 to vector<2x32xf32>
    %1122 = arith.addf %1121, %1120 : vector<2x32xf32>
    %1123 = arith.divf %1121, %1122 : vector<2x32xf32>
    %1124 = arith.mulf %1115, %1052 : vector<2x32xf32>
    %1125 = arith.mulf %1109, %1117 : vector<2x32xf32>
    %1126 = arith.addf %1124, %1125 : vector<2x32xf32>
    %1127 = math.tanh %1126 : vector<2x32xf32>
    %1128 = arith.mulf %1123, %1127 : vector<2x32xf32>
    %1129 = arith.index_cast %c6_i32_295 : i32 to index
    %c0_310 = arith.constant 0 : index
    %c0_311 = arith.constant 0 : index
    %1130 = vector.load %arg9[%1129, %c0_310, %c0_311] : memref<8x2x32xf32, #tpu.memory_space<vmem>>, vector<1x2x32xf32>
    %1131 = vector.shape_cast %1130 : vector<1x2x32xf32> to vector<2x32xf32>
    %1132 = vector.shape_cast %1103 : vector<2x32xf32> to vector<1x2x32xf32>
    tpu.vector_store %arg9[%1129, %c0_310, %c0_311], %1132 {strides = array<i32>} : memref<8x2x32xf32, #tpu.memory_space<vmem>>, vector<1x2x32xf32>,
    %1133 = arith.index_cast %1064 : i32 to index
    %c0_312 = arith.constant 0 : index
    %c0_313 = arith.constant 0 : index
    %1134 = vector.load %arg10[%1133, %c0_312, %c0_313] : memref<8x2x32xf32, #tpu.memory_space<vmem>>, vector<1x2x32xf32>
    %1135 = vector.shape_cast %1134 : vector<1x2x32xf32> to vector<2x32xf32>
    %1136 = vector.shape_cast %1128 : vector<2x32xf32> to vector<1x2x32xf32>
    tpu.vector_store %arg10[%1133, %c0_312, %c0_313], %1136 {strides = array<i32>} : memref<8x2x32xf32, #tpu.memory_space<vmem>>, vector<1x2x32xf32>,
    %1137 = tpu.concatenate %1103, %1128 in 1 : vector<2x32xf32>, vector<2x32xf32> -> vector<2x64xf32>
    %c7_i32_314 = arith.constant 7 : i32
    %c7_i32_315 = arith.constant 7 : i32
    %1138 = arith.subi %c7_i32_315, %c7_i32_314 : i32
    %c0_316 = arith.constant 0 : index
    %c0_317 = arith.constant 0 : index
    %1139 = vector.load %arg5[%c0_316, %c0_317] : memref<64x256xf32, #tpu.memory_space<vmem>>, vector<64x256xf32>
    %cst_318 = arith.constant dense<0.000000e+00> : vector<2x256xf32>
    %1140 = tpu.matmul %1137, %1139, %cst_318 {dimension_numbers = #tpu.dot_dimension_numbers<[1], [0], [0], [1], [0, 0, 1, 1], [], []>} : vector<2x64xf32>, vector<64x256xf32>, vector<2x256xf32> -> vector<2x256xf32>
    %1141 = arith.index_cast %c7_i32_314 : i32 to index
    %c0_319 = arith.constant 0 : index
    %c0_320 = arith.constant 0 : index
    %1142 = vector.load %arg8[%1141, %c0_319, %c0_320] : memref<8x2x256xf32, #tpu.memory_space<vmem>>, vector<1x2x256xf32>
    %1143 = vector.shape_cast %1142 : vector<1x2x256xf32> to vector<2x256xf32>
    %1144 = vector.extract_strided_slice %1143 {offsets = [0, 0], sizes = [2, 128], strides = [1, 1]} : vector<2x256xf32> to vector<2x128xf32>
    %1145 = vector.extract_strided_slice %1140 {offsets = [0, 0], sizes = [2, 128], strides = [1, 1]} : vector<2x256xf32> to vector<2x128xf32>
    %1146 = arith.addf %1144, %1145 : vector<2x128xf32>
    %1147 = arith.index_cast %1138 : i32 to index
    %c0_321 = arith.constant 0 : index
    %c0_322 = arith.constant 0 : index
    %1148 = vector.load %arg8[%1147, %c0_321, %c0_322] : memref<8x2x256xf32, #tpu.memory_space<vmem>>, vector<1x2x256xf32>
    %1149 = vector.shape_cast %1148 : vector<1x2x256xf32> to vector<2x256xf32>
    %1150 = vector.extract_strided_slice %1149 {offsets = [0, 128], sizes = [2, 128], strides = [1, 1]} : vector<2x256xf32> to vector<2x128xf32>
    %1151 = vector.extract_strided_slice %1140 {offsets = [0, 128], sizes = [2, 128], strides = [1, 1]} : vector<2x256xf32> to vector<2x128xf32>
    %1152 = arith.addf %1150, %1151 : vector<2x128xf32>
    %1153 = vector.extract_strided_slice %1146 {offsets = [0, 0], sizes = [2, 32], strides = [1, 1]} : vector<2x128xf32> to vector<2x32xf32>
    %1154 = arith.negf %1153 : vector<2x32xf32>
    %1155 = math.exp %1154 : vector<2x32xf32>
    %cst_323 = arith.constant 1.000000e+00 : f32
    %1156 = vector.broadcast %cst_323 : f32 to vector<2x32xf32>
    %1157 = arith.addf %1156, %1155 : vector<2x32xf32>
    %1158 = arith.divf %1156, %1157 : vector<2x32xf32>
    %1159 = vector.extract_strided_slice %1146 {offsets = [0, 32], sizes = [2, 32], strides = [1, 1]} : vector<2x128xf32> to vector<2x32xf32>
    %1160 = arith.negf %1159 : vector<2x32xf32>
    %1161 = math.exp %1160 : vector<2x32xf32>
    %cst_324 = arith.constant 1.000000e+00 : f32
    %1162 = vector.broadcast %cst_324 : f32 to vector<2x32xf32>
    %1163 = arith.addf %1162, %1161 : vector<2x32xf32>
    %1164 = arith.divf %1162, %1163 : vector<2x32xf32>
    %1165 = vector.extract_strided_slice %1146 {offsets = [0, 64], sizes = [2, 32], strides = [1, 1]} : vector<2x128xf32> to vector<2x32xf32>
    %1166 = math.tanh %1165 : vector<2x32xf32>
    %1167 = vector.extract_strided_slice %1146 {offsets = [0, 96], sizes = [2, 32], strides = [1, 1]} : vector<2x128xf32> to vector<2x32xf32>
    %1168 = arith.negf %1167 : vector<2x32xf32>
    %1169 = math.exp %1168 : vector<2x32xf32>
    %cst_325 = arith.constant 1.000000e+00 : f32
    %1170 = vector.broadcast %cst_325 : f32 to vector<2x32xf32>
    %1171 = arith.addf %1170, %1169 : vector<2x32xf32>
    %1172 = arith.divf %1170, %1171 : vector<2x32xf32>
    %1173 = arith.mulf %1164, %1101 : vector<2x32xf32>
    %1174 = arith.mulf %1158, %1166 : vector<2x32xf32>
    %1175 = arith.addf %1173, %1174 : vector<2x32xf32>
    %1176 = math.tanh %1175 : vector<2x32xf32>
    %1177 = arith.mulf %1172, %1176 : vector<2x32xf32>
    %1178 = vector.extract_strided_slice %1152 {offsets = [0, 0], sizes = [2, 32], strides = [1, 1]} : vector<2x128xf32> to vector<2x32xf32>
    %1179 = arith.negf %1178 : vector<2x32xf32>
    %1180 = math.exp %1179 : vector<2x32xf32>
    %cst_326 = arith.constant 1.000000e+00 : f32
    %1181 = vector.broadcast %cst_326 : f32 to vector<2x32xf32>
    %1182 = arith.addf %1181, %1180 : vector<2x32xf32>
    %1183 = arith.divf %1181, %1182 : vector<2x32xf32>
    %1184 = vector.extract_strided_slice %1152 {offsets = [0, 32], sizes = [2, 32], strides = [1, 1]} : vector<2x128xf32> to vector<2x32xf32>
    %1185 = arith.negf %1184 : vector<2x32xf32>
    %1186 = math.exp %1185 : vector<2x32xf32>
    %cst_327 = arith.constant 1.000000e+00 : f32
    %1187 = vector.broadcast %cst_327 : f32 to vector<2x32xf32>
    %1188 = arith.addf %1187, %1186 : vector<2x32xf32>
    %1189 = arith.divf %1187, %1188 : vector<2x32xf32>
    %1190 = vector.extract_strided_slice %1152 {offsets = [0, 64], sizes = [2, 32], strides = [1, 1]} : vector<2x128xf32> to vector<2x32xf32>
    %1191 = math.tanh %1190 : vector<2x32xf32>
    %1192 = vector.extract_strided_slice %1152 {offsets = [0, 96], sizes = [2, 32], strides = [1, 1]} : vector<2x128xf32> to vector<2x32xf32>
    %1193 = arith.negf %1192 : vector<2x32xf32>
    %1194 = math.exp %1193 : vector<2x32xf32>
    %cst_328 = arith.constant 1.000000e+00 : f32
    %1195 = vector.broadcast %cst_328 : f32 to vector<2x32xf32>
    %1196 = arith.addf %1195, %1194 : vector<2x32xf32>
    %1197 = arith.divf %1195, %1196 : vector<2x32xf32>
    %1198 = arith.mulf %1189, %1126 : vector<2x32xf32>
    %1199 = arith.mulf %1183, %1191 : vector<2x32xf32>
    %1200 = arith.addf %1198, %1199 : vector<2x32xf32>
    %1201 = math.tanh %1200 : vector<2x32xf32>
    %1202 = arith.mulf %1197, %1201 : vector<2x32xf32>
    %1203 = arith.index_cast %c7_i32_314 : i32 to index
    %c0_329 = arith.constant 0 : index
    %c0_330 = arith.constant 0 : index
    %1204 = vector.load %arg9[%1203, %c0_329, %c0_330] : memref<8x2x32xf32, #tpu.memory_space<vmem>>, vector<1x2x32xf32>
    %1205 = vector.shape_cast %1204 : vector<1x2x32xf32> to vector<2x32xf32>
    %1206 = vector.shape_cast %1177 : vector<2x32xf32> to vector<1x2x32xf32>
    tpu.vector_store %arg9[%1203, %c0_329, %c0_330], %1206 {strides = array<i32>} : memref<8x2x32xf32, #tpu.memory_space<vmem>>, vector<1x2x32xf32>,
    %1207 = arith.index_cast %1138 : i32 to index
    %c0_331 = arith.constant 0 : index
    %c0_332 = arith.constant 0 : index
    %1208 = vector.load %arg10[%1207, %c0_331, %c0_332] : memref<8x2x32xf32, #tpu.memory_space<vmem>>, vector<1x2x32xf32>
    %1209 = vector.shape_cast %1208 : vector<1x2x32xf32> to vector<2x32xf32>
    %1210 = vector.shape_cast %1202 : vector<2x32xf32> to vector<1x2x32xf32>
    tpu.vector_store %arg10[%1207, %c0_331, %c0_332], %1210 {strides = array<i32>} : memref<8x2x32xf32, #tpu.memory_space<vmem>>, vector<1x2x32xf32>,
    %1211 = tpu.concatenate %1177, %1202 in 1 : vector<2x32xf32>, vector<2x32xf32> -> vector<2x64xf32>
    %c8_i32_333 = arith.constant 8 : i32
    %c0_334 = arith.constant 0 : index
    %c0_335 = arith.constant 0 : index
    %c0_336 = arith.constant 0 : index
    %1212 = vector.load %arg9[%c0_334, %c0_335, %c0_336] : memref<8x2x32xf32, #tpu.memory_space<vmem>>, vector<8x2x32xf32>
    %c0_337 = arith.constant 0 : index
    %c0_338 = arith.constant 0 : index
    %c0_339 = arith.constant 0 : index
    %1213 = vector.load %arg7[%c0_337, %c0_338, %c0_339] : memref<8x2x64xf32, #tpu.memory_space<vmem>>, vector<8x2x32xf32>
    tpu.vector_store %arg7[%c0_337, %c0_338, %c0_339], %1212 {strides = array<i32>} : memref<8x2x64xf32, #tpu.memory_space<vmem>>, vector<8x2x32xf32>,
    %c0_340 = arith.constant 0 : index
    %c0_341 = arith.constant 0 : index
    %c0_342 = arith.constant 0 : index
    %1214 = vector.load %arg10[%c0_340, %c0_341, %c0_342] : memref<8x2x32xf32, #tpu.memory_space<vmem>>, vector<8x2x32xf32>
    %c0_343 = arith.constant 0 : index
    %c0_344 = arith.constant 0 : index
    %c32_345 = arith.constant 32 : index
    %1215 = vector.load %arg7[%c0_343, %c0_344, %c32_345] : memref<8x2x64xf32, #tpu.memory_space<vmem>>, vector<8x2x32xf32>
    tpu.vector_store %arg7[%c0_343, %c0_344, %c32_345], %1214 {strides = array<i32>} : memref<8x2x64xf32, #tpu.memory_space<vmem>>, vector<8x2x32xf32>,
    return
  }
}

</mosaic_0001>

<llo_original>
// kernel: bilstm_forward.1
$region0: #{bilstm_forward.1}
  #allocation0 [shape = 'u32[]', space=smem, size = 0x4, offset = 0x4, fixed_abs, tag = 'smem constant byte address 0x4 - core index']
  #allocation1 [shape = 'u32[72,128]{1,0:T(1,128)}', space=vmem, size = 0x9000, scoped, tag = 'internal scratch']
  #allocation2 [shape = 'f32[8,2,256]{2,1,0:T(2,128)}', space=vmem, size = 0x4000, scoped, tag = 'scratch operand']
  #allocation3 [shape = 'f32[8,2,32]{2,1,0:T(2,128)}', space=vmem, size = 0x2000, scoped, tag = 'scratch operand']
  #allocation4 [shape = 'f32[8,2,32]{2,1,0:T(2,128)}', space=vmem, size = 0x2000, scoped, tag = 'scratch operand']
  %s0 = inlined_call_operand.vmem [shape: f32[8,2,32], index: 0, kind: input, shape index: {}]
  %s1 = inlined_call_operand.vmem [shape: f32[32,256], index: 1, kind: input, shape index: {}]
  %s2 = inlined_call_operand.vmem [shape: f32[64,256], index: 2, kind: input, shape index: {}]
  %s3 = inlined_call_operand.vmem [shape: f32[1,256], index: 3, kind: input, shape index: {}]
  %s4 = inlined_call_operand.vmem [shape: f32[64,256], index: 4, kind: input, shape index: {}]
  %s5 = inlined_call_operand.vmem [shape: f32[64,256], index: 5, kind: input, shape index: {}]
  %s6 = inlined_call_operand.vmem [shape: f32[1,256], index: 6, kind: input, shape index: {}]
  %s7 = inlined_call_operand.vmem [shape: f32[8,2,64], index: 7, kind: output, shape index: {}]
  %s8 = sld [smem:[#allocation0]]
  $region38: #{bilstm_forward.1} parent=0
    _
  %s10 = ssub.s32 1, %s8
  %s11 = scalar_select 0, %s10, %s8
  // Predicated region
  $region2: #{bilstm_forward.1} parent=0 // pred_check
    _
  $region3: #{bilstm_forward.1} parent=0 // pred_check_branch
    %13 = sbr.rel (0) target = $region5
  $region4: #{bilstm_forward.1} parent=0 // pred_region
    _
  $region5: #{bilstm_forward.1} parent=0 // pred_fallthru
    _
  // Predicated region
  $region6: #{bilstm_forward.1} parent=0 // pred_check
    _
  $region7: #{bilstm_forward.1} parent=0 // pred_check_branch
    %15 = sbr.rel (0) target = $region9
  $region8: #{bilstm_forward.1} parent=0 // pred_region
    _
  $region9: #{bilstm_forward.1} parent=0 // pred_fallthru
    _
  // Predicated region
  $region10: #{bilstm_forward.1} parent=0 // pred_check
    _
  $region11: #{bilstm_forward.1} parent=0 // pred_check_branch
    %17 = sbr.rel (0) target = $region13
  $region12: #{bilstm_forward.1} parent=0 // pred_region
    _
  $region13: #{bilstm_forward.1} parent=0 // pred_fallthru
    _
  // Predicated region
  $region14: #{bilstm_forward.1} parent=0 // pred_check
    _
  $region15: #{bilstm_forward.1} parent=0 // pred_check_branch
    %19 = sbr.rel (0) target = $region17
  $region16: #{bilstm_forward.1} parent=0 // pred_region
    _
  $region17: #{bilstm_forward.1} parent=0 // pred_fallthru
    _
  // Predicated region
  $region18: #{bilstm_forward.1} parent=0 // pred_check
    _
  $region19: #{bilstm_forward.1} parent=0 // pred_check_branch
    %21 = sbr.rel (0) target = $region21
  $region20: #{bilstm_forward.1} parent=0 // pred_region
    _
  $region21: #{bilstm_forward.1} parent=0 // pred_fallthru
    _
  // Predicated region
  $region22: #{bilstm_forward.1} parent=0 // pred_check
    _
  $region23: #{bilstm_forward.1} parent=0 // pred_check_branch
    %23 = sbr.rel (0) target = $region25
  $region24: #{bilstm_forward.1} parent=0 // pred_region
    _
  $region25: #{bilstm_forward.1} parent=0 // pred_fallthru
    _
  // Predicated region
  $region26: #{bilstm_forward.1} parent=0 // pred_check
    _
  $region27: #{bilstm_forward.1} parent=0 // pred_check_branch
    %25 = sbr.rel (0) target = $region29
  $region28: #{bilstm_forward.1} parent=0 // pred_region
    _
  $region29: #{bilstm_forward.1} parent=0 // pred_fallthru
    _
  %v26 = vld [vmem:[%s0] sm:$0x3]
  %v27 = vld [vmem:[%s0 + $0x2] sm:$0x3]
  %v28 = vld [vmem:[%s0 + $0x4] sm:$0x3]
  %v29 = vld [vmem:[%s0 + $0x6] sm:$0x3]
  %v30 = vld [vmem:[%s0 + $0x8] sm:$0x3]
  %v31 = vld [vmem:[%s0 + $0xa] sm:$0x3]
  %v32 = vld [vmem:[%s0 + $0xc] sm:$0x3]
  %v33 = vld [vmem:[%s0 + $0xe] sm:$0x3]
  %v34 = vld [vmem:[%s1] sm:$0xff]
  %v35 = vld [vmem:[%s1 + $0x8] sm:$0xff]
  %v36 = vld [vmem:[%s1 + $0x10] sm:$0xff]
  %v37 = vld [vmem:[%s1 + $0x18] sm:$0xff]
  %v38 = vld [vmem:[%s1 + $0x20] sm:$0xff]
  %v39 = vld [vmem:[%s1 + $0x28] sm:$0xff]
  %v40 = vld [vmem:[%s1 + $0x30] sm:$0xff]
  %v41 = vld [vmem:[%s1 + $0x38] sm:$0xff]
  %v42 = vld [vmem:[%s3] sm:$0x3]
  %v44 = vperm.slane %v42, 0
  %v45 = vperm.slane %v42, 1
  %56 = vst [vmem:[#allocation1] ss:$4 sm:$0xff] %v26
  %s57 = scalar_lea.vmem [#allocation1], 1
  %58 = vst [vmem:[%s57] ss:$4 sm:$0xff] %v27
  %s59 = scalar_lea.vmem [#allocation1], 2
  %60 = vst [vmem:[%s59] ss:$4 sm:$0xff] %v28
  %s61 = scalar_lea.vmem [#allocation1], 3
  %62 = vst [vmem:[%s61] ss:$4 sm:$0xff] %v29
  %s63 = scalar_lea.vmem [#allocation1], 32
  %64 = vst [vmem:[%s63] ss:$4 sm:$0xff] %v30
  %s65 = scalar_lea.vmem [#allocation1], 33
  %66 = vst [vmem:[%s65] ss:$4 sm:$0xff] %v31
  %s67 = scalar_lea.vmem [#allocation1], 34
  %68 = vst [vmem:[%s67] ss:$4 sm:$0xff] %v32
  %s69 = scalar_lea.vmem [#allocation1], 35
  %70 = vst [vmem:[%s69] ss:$4 sm:$0xff] %v33
  %v71 = vld.sshfl [vmem:[#allocation1] sm:$0xff pattern:$0x73625140]
  %v72 = vld.sshfl [vmem:[#allocation1 + $0x20] sm:$0xff pattern:$0x73625140]
  %vm73 = vcmask 261120
  %v74 = vsel %vm73, %v71, 0
  %v76 = vsel %vm73, %v72, 0
  %78 = vmatpush.msra.mxu0 0.0
  %79 = vmatpush.msra.mxu0 0.0
  %80 = vmatpush.msra.mxu0 0.0
  %81 = vmatpush.msra.mxu0 0.0
  %82 = vmatpush.msra.mxu0 0.0
  %83 = vmatpush.msra.mxu0 0.0
  %84 = vmatpush.msra.mxu0 0.0
  %85 = vmatpush.msra.mxu0 0.0
  %86 = vmatpush.msra.mxu0 0.0
  %87 = vmatpush.msra.mxu0 0.0
  %88 = vmatpush.msra.mxu0 0.0
  %89 = vmatpush.msra.mxu0 0.0
  %90 = vmatpush.msra.mxu0 %v40
  %91 = vmatpush.msra.mxu0 %v38
  %92 = vmatpush.msra.mxu0 %v36
  %93 = vmatpush.msra.mxu0 %v34
  %94 = vmatmul.f32.gmra.mxu0 %v74
  %v95 = vpop.f32.mrf.mxu0
  %v96 = vadd.f32 %v44, %v95
  %97 = vmatmul.f32.gmra.mxu0 %v76
  %v98 = vpop.f32.mrf.mxu0
  %v99 = vadd.f32 %v44, %v98
  %100 = vdwg.mxu0
  %101 = vmatpush.msra.mxu0 0.0
  %102 = vmatpush.msra.mxu0 0.0
  %103 = vmatpush.msra.mxu0 0.0
  %104 = vmatpush.msra.mxu0 0.0
  %105 = vmatpush.msra.mxu0 0.0
  %106 = vmatpush.msra.mxu0 0.0
  %107 = vmatpush.msra.mxu0 0.0
  %108 = vmatpush.msra.mxu0 0.0
  %109 = vmatpush.msra.mxu0 0.0
  %110 = vmatpush.msra.mxu0 0.0
  %111 = vmatpush.msra.mxu0 0.0
  %112 = vmatpush.msra.mxu0 0.0
  %113 = vmatpush.msra.mxu0 %v41
  %114 = vmatpush.msra.mxu0 %v39
  %115 = vmatpush.msra.mxu0 %v37
  %116 = vmatpush.msra.mxu0 %v35
  %117 = vmatmul.f32.gmra.mxu0 %v74
  %v118 = vpop.f32.mrf.mxu0
  %v119 = vadd.f32 %v45, %v118
  %120 = vmatmul.f32.gmra.mxu0 %v76
  %v121 = vpop.f32.mrf.mxu0
  %v122 = vadd.f32 %v45, %v121
  %123 = vdwg.mxu0
  %v128 = vrot.slane %v119, 6
  %v129 = vrot.slane %v122, 6
  %vm130 = vcmask 1041408
  %v131 = vsel %vm130, %v96, %v128
  %vm132 = vcmask 1043458
  %v133 = vsel %vm132, %v96, %v128
  %v134 = vrot.slane %v133, 2
  %vm135 = vcmask 1045508
  %v136 = vsel %vm135, %v96, %v128
  %v137 = vrot.slane %v136, 4
  %vm138 = vcmask 1045504
  %v139 = vsel %vm138, %v128, %v96
  %v140 = vrot.slane %v139, 6
  %v141 = vsel %vm130, %v99, %v129
  %v142 = vsel %vm132, %v99, %v129
  %v143 = vrot.slane %v142, 2
  %v144 = vsel %vm135, %v99, %v129
  %v145 = vrot.slane %v144, 4
  %v146 = vsel %vm138, %v129, %v99
  %v147 = vrot.slane %v146, 6
  %156 = vst [vmem:[#allocation2] sm:$0xf] %v131
  %157 = vst [vmem:[#allocation2 + $0x4] sm:$0xf] %v134
  %158 = vst [vmem:[#allocation2 + $0x8] sm:$0xf] %v137
  %159 = vst [vmem:[#allocation2 + $0xc] sm:$0xf] %v140
  %160 = vst [vmem:[#allocation2 + $0x10] sm:$0xf] %v141
  %161 = vst [vmem:[#allocation2 + $0x14] sm:$0xf] %v143
  %162 = vst [vmem:[#allocation2 + $0x18] sm:$0xf] %v145
  %163 = vst [vmem:[#allocation2 + $0x1c] sm:$0xf] %v147
  %v164 = vld [vmem:[%s2] sm:$0xff]
  %v165 = vld [vmem:[%s2 + $0x8] sm:$0xff]
  %v166 = vld [vmem:[%s2 + $0x10] sm:$0xff]
  %v167 = vld [vmem:[%s2 + $0x18] sm:$0xff]
  %v168 = vld [vmem:[%s2 + $0x20] sm:$0xff]
  %v169 = vld [vmem:[%s2 + $0x28] sm:$0xff]
  %v170 = vld [vmem:[%s2 + $0x30] sm:$0xff]
  %v171 = vld [vmem:[%s2 + $0x38] sm:$0xff]
  %v172 = vld [vmem:[%s2 + $0x40] sm:$0xff]
  %v173 = vld [vmem:[%s2 + $0x48] sm:$0xff]
  %v174 = vld [vmem:[%s2 + $0x50] sm:$0xff]
  %v175 = vld [vmem:[%s2 + $0x58] sm:$0xff]
  %v176 = vld [vmem:[%s2 + $0x60] sm:$0xff]
  %v177 = vld [vmem:[%s2 + $0x68] sm:$0xff]
  %v178 = vld [vmem:[%s2 + $0x70] sm:$0xff]
  %v179 = vld [vmem:[%s2 + $0x78] sm:$0xff]
  %vm180 = vcmask 523264
  %v182 = vsel %vm180, 0.0, 0
  %184 = vmatpush.msra.mxu0 0.0
  %185 = vmatpush.msra.mxu0 0.0
  %186 = vmatpush.msra.mxu0 0.0
  %187 = vmatpush.msra.mxu0 0.0
  %188 = vmatpush.msra.mxu0 0.0
  %189 = vmatpush.msra.mxu0 0.0
  %190 = vmatpush.msra.mxu0 0.0
  %191 = vmatpush.msra.mxu0 0.0
  %192 = vmatpush.msra.mxu0 %v178
  %193 = vmatpush.msra.mxu0 %v176
  %194 = vmatpush.msra.mxu0 %v174
  %195 = vmatpush.msra.mxu0 %v172
  %196 = vmatpush.msra.mxu0 %v170
  %197 = vmatpush.msra.mxu0 %v168
  %198 = vmatpush.msra.mxu0 %v166
  %199 = vmatpush.msra.mxu0 %v164
  %200 = vmatmul.f32.gmra.mxu0 %v182
  %v201 = vpop.f32.mrf.mxu0
  %v202 = vadd.f32 0.0, %v201
  %203 = vdwg.mxu0
  %204 = vmatpush.msra.mxu0 0.0
  %205 = vmatpush.msra.mxu0 0.0
  %206 = vmatpush.msra.mxu0 0.0
  %207 = vmatpush.msra.mxu0 0.0
  %208 = vmatpush.msra.mxu0 0.0
  %209 = vmatpush.msra.mxu0 0.0
  %210 = vmatpush.msra.mxu0 0.0
  %211 = vmatpush.msra.mxu0 0.0
  %212 = vmatpush.msra.mxu0 %v179
  %213 = vmatpush.msra.mxu0 %v177
  %214 = vmatpush.msra.mxu0 %v175
  %215 = vmatpush.msra.mxu0 %v173
  %216 = vmatpush.msra.mxu0 %v171
  %217 = vmatpush.msra.mxu0 %v169
  %218 = vmatpush.msra.mxu0 %v167
  %219 = vmatpush.msra.mxu0 %v165
  %220 = vmatmul.f32.gmra.mxu0 %v182
  %v221 = vpop.f32.mrf.mxu0
  %v222 = vadd.f32 0.0, %v221
  %223 = vdwg.mxu0
  %v224 = vld [vmem:[#allocation2] sm:$0xf]
  %v225 = vadd.f32 %v224, %v202
  %s226 = scalar_lea.vmem [#allocation2], 28
  %v227 = vld [vmem:[%s226] sm:$0xf]
  %v229 = vrot.slane %v227, 2
  %v231 = vadd.f32 %v229, %v222
  %v232 = vxor.u32 %v225, 2147483648
  %v233 = vmul.f32 %v232, 1.442695
  %v234 = vpow.pop %v233
  %v235 = vadd.f32 %v234, 1.0
  %v236 = vrcp.pop %v235
  %v237 = vmul.f32 %v235, %v236
  %v238 = vsub.f32 1.0, %v237
  %v239 = vmul.f32 %v236, %v238
  %v240 = vadd.f32 %v236, %v239
  %vm241 = vweird.f32 %v235
  %vm242 = vweird.f32 %v236
  %vm243 = vmor %vm241, %vm242
  %v244 = vsel %vm243, %v236, %v240
  %v245 = vand.u32 2147483647, %v235
  %vm246 = vcmp.eq.f32.partialorder %v245, 8.507059e+37
  %v247 = vand.u32 %v235, 2147483648
  %v248 = vor.u32 1.1754944e-38, %v247
  %v249 = vsel %vm246, %v248, %v244
  %v250 = vmul.f32 1.0, %v249
  %v251 = vtanh.pop %v225
  %v252 = vmul.f32 %v250, 0.0
  %254 = vrot.lane.b32.xlu0 %v251, 64
  %v255 = vpop.permute.xlu0 %254
  %v257 = vmul.f32 %v250, %v255
  %259 = vrot.lane.b32.xlu0 %v257, 32
  %v260 = vpop.permute.xlu0 %259
  %v262 = vadd.f32 %v252, %v260
  %v263 = vtanh.pop %v262
  %265 = vrot.lane.b32.xlu0 %v263, 64
  %v266 = vpop.permute.xlu0 %265
  %v268 = vmul.f32 %v250, %v266
  %v269 = vxor.u32 %v231, 2147483648
  %v270 = vmul.f32 %v269, 1.442695
  %v271 = vpow.pop %v270
  %v272 = vadd.f32 %v271, 1.0
  %v273 = vrcp.pop %v272
  %v274 = vmul.f32 %v272, %v273
  %v275 = vsub.f32 1.0, %v274
  %v276 = vmul.f32 %v273, %v275
  %v277 = vadd.f32 %v273, %v276
  %vm278 = vweird.f32 %v272
  %vm279 = vweird.f32 %v273
  %vm280 = vmor %vm278, %vm279
  %v281 = vsel %vm280, %v273, %v277
  %v282 = vand.u32 2147483647, %v272
  %vm283 = vcmp.eq.f32.partialorder %v282, 8.507059e+37
  %v284 = vand.u32 %v272, 2147483648
  %v285 = vor.u32 1.1754944e-38, %v284
  %v286 = vsel %vm283, %v285, %v281
  %v287 = vmul.f32 1.0, %v286
  %v288 = vtanh.pop %v231
  %v289 = vmul.f32 %v287, 0.0
  %291 = vrot.lane.b32.xlu0 %v288, 64
  %v292 = vpop.permute.xlu0 %291
  %v294 = vmul.f32 %v287, %v292
  %296 = vrot.lane.b32.xlu0 %v294, 32
  %v297 = vpop.permute.xlu0 %296
  %v299 = vadd.f32 %v289, %v297
  %v300 = vtanh.pop %v299
  %302 = vrot.lane.b32.xlu0 %v300, 64
  %v303 = vpop.permute.xlu0 %302
  %v305 = vmul.f32 %v287, %v303
  %307 = vst [vmem:[#allocation1] ss:$4 sm:$0xff] %v268
  %v308 = vld.sshfl [vmem:[#allocation1] sm:$0xff pattern:$0x73625140]
  %309 = vrot.lane.b32.xlu0 %v308, 32
  %v310 = vpop.permute.xlu0 %309
  %vm312 = vcmask 254976
  %313 = vst.msk [vmem:[#allocation3] sm:$0x3] %vm312, %v310
  %315 = vst [vmem:[#allocation1] ss:$4 sm:$0xff] %v305
  %v316 = vld.sshfl [vmem:[#allocation1] sm:$0xff pattern:$0x73625140]
  %317 = vrot.lane.b32.xlu0 %v316, 32
  %v318 = vpop.permute.xlu0 %317
  %s320 = scalar_lea.vmem [#allocation4], 14
  %321 = vst.msk [vmem:[%s320] sm:$0x3] %vm312, %v318
  %322 = vst [vmem:[#allocation1] ss:$4 sm:$0xff] %v268
  %v323 = vld.sshfl [vmem:[#allocation1] sm:$0xff pattern:$0x73625140]
  %324 = vrot.lane.b32.xlu0 %v323, 32
  %v325 = vpop.permute.xlu0 %324
  %327 = vst [vmem:[#allocation1] ss:$4 sm:$0xff] %v305
  %v328 = vld.sshfl [vmem:[#allocation1] sm:$0xff pattern:$0x73625140]
  %329 = vrot.lane.b32.xlu0 %v328, 64
  %v330 = vpop.permute.xlu0 %329
  %v332 = vsel %vm73, %v325, %v330
  %v333 = vld [vmem:[%s2] sm:$0xff]
  %v334 = vld [vmem:[%s2 + $0x8] sm:$0xff]
  %v335 = vld [vmem:[%s2 + $0x10] sm:$0xff]
  %v336 = vld [vmem:[%s2 + $0x18] sm:$0xff]
  %v337 = vld [vmem:[%s2 + $0x20] sm:$0xff]
  %v338 = vld [vmem:[%s2 + $0x28] sm:$0xff]
  %v339 = vld [vmem:[%s2 + $0x30] sm:$0xff]
  %v340 = vld [vmem:[%s2 + $0x38] sm:$0xff]
  %v341 = vld [vmem:[%s2 + $0x40] sm:$0xff]
  %v342 = vld [vmem:[%s2 + $0x48] sm:$0xff]
  %v343 = vld [vmem:[%s2 + $0x50] sm:$0xff]
  %v344 = vld [vmem:[%s2 + $0x58] sm:$0xff]
  %v345 = vld [vmem:[%s2 + $0x60] sm:$0xff]
  %v346 = vld [vmem:[%s2 + $0x68] sm:$0xff]
  %v347 = vld [vmem:[%s2 + $0x70] sm:$0xff]
  %v348 = vld [vmem:[%s2 + $0x78] sm:$0xff]
  %v350 = vsel %vm180, %v332, 0
  %352 = vmatpush.msra.mxu0 0.0
  %353 = vmatpush.msra.mxu0 0.0
  %354 = vmatpush.msra.mxu0 0.0
  %355 = vmatpush.msra.mxu0 0.0
  %356 = vmatpush.msra.mxu0 0.0
  %357 = vmatpush.msra.mxu0 0.0
  %358 = vmatpush.msra.mxu0 0.0
  %359 = vmatpush.msra.mxu0 0.0
  %360 = vmatpush.msra.mxu0 %v347
  %361 = vmatpush.msra.mxu0 %v345
  %362 = vmatpush.msra.mxu0 %v343
  %363 = vmatpush.msra.mxu0 %v341
  %364 = vmatpush.msra.mxu0 %v339
  %365 = vmatpush.msra.mxu0 %v337
  %366 = vmatpush.msra.mxu0 %v335
  %367 = vmatpush.msra.mxu0 %v333
  %368 = vmatmul.f32.gmra.mxu0 %v350
  %v369 = vpop.f32.mrf.mxu0
  %v370 = vadd.f32 0.0, %v369
  %371 = vdwg.mxu0
  %372 = vmatpush.msra.mxu0 0.0
  %373 = vmatpush.msra.mxu0 0.0
  %374 = vmatpush.msra.mxu0 0.0
  %375 = vmatpush.msra.mxu0 0.0
  %376 = vmatpush.msra.mxu0 0.0
  %377 = vmatpush.msra.mxu0 0.0
  %378 = vmatpush.msra.mxu0 0.0
  %379 = vmatpush.msra.mxu0 0.0
  %380 = vmatpush.msra.mxu0 %v348
  %381 = vmatpush.msra.mxu0 %v346
  %382 = vmatpush.msra.mxu0 %v344
  %383 = vmatpush.msra.mxu0 %v342
  %384 = vmatpush.msra.mxu0 %v340
  %385 = vmatpush.msra.mxu0 %v338
  %386 = vmatpush.msra.mxu0 %v336
  %387 = vmatpush.msra.mxu0 %v334
  %388 = vmatmul.f32.gmra.mxu0 %v350
  %v389 = vpop.f32.mrf.mxu0
  %v390 = vadd.f32 0.0, %v389
  %391 = vdwg.mxu0
  %s392 = scalar_lea.vmem [#allocation2], 4
  %v393 = vld [vmem:[%s392] sm:$0xf]
  %v394 = vadd.f32 %v393, %v370
  %s395 = scalar_lea.vmem [#allocation2], 24
  %v396 = vld [vmem:[%s395] sm:$0xf]
  %v398 = vrot.slane %v396, 2
  %v400 = vadd.f32 %v398, %v390
  %v401 = vxor.u32 %v394, 2147483648
  %v402 = vmul.f32 %v401, 1.442695
  %v403 = vpow.pop %v402
  %v404 = vadd.f32 %v403, 1.0
  %v405 = vrcp.pop %v404
  %v406 = vmul.f32 %v404, %v405
  %v407 = vsub.f32 1.0, %v406
  %v408 = vmul.f32 %v405, %v407
  %v409 = vadd.f32 %v405, %v408
  %vm410 = vweird.f32 %v404
  %vm411 = vweird.f32 %v405
  %vm412 = vmor %vm410, %vm411
  %v413 = vsel %vm412, %v405, %v409
  %v414 = vand.u32 2147483647, %v404
  %vm415 = vcmp.eq.f32.partialorder %v414, 8.507059e+37
  %v416 = vand.u32 %v404, 2147483648
  %v417 = vor.u32 1.1754944e-38, %v416
  %v418 = vsel %vm415, %v417, %v413
  %v419 = vmul.f32 1.0, %v418
  %v420 = vtanh.pop %v394
  %v421 = vmul.f32 %v419, %v262
  %423 = vrot.lane.b32.xlu0 %v420, 64
  %v424 = vpop.permute.xlu0 %423
  %v426 = vmul.f32 %v419, %v424
  %428 = vrot.lane.b32.xlu0 %v426, 32
  %v429 = vpop.permute.xlu0 %428
  %v431 = vadd.f32 %v421, %v429
  %v432 = vtanh.pop %v431
  %434 = vrot.lane.b32.xlu0 %v432, 64
  %v435 = vpop.permute.xlu0 %434
  %v437 = vmul.f32 %v419, %v435
  %v438 = vxor.u32 %v400, 2147483648
  %v439 = vmul.f32 %v438, 1.442695
  %v440 = vpow.pop %v439
  %v441 = vadd.f32 %v440, 1.0
  %v442 = vrcp.pop %v441
  %v443 = vmul.f32 %v441, %v442
  %v444 = vsub.f32 1.0, %v443
  %v445 = vmul.f32 %v442, %v444
  %v446 = vadd.f32 %v442, %v445
  %vm447 = vweird.f32 %v441
  %vm448 = vweird.f32 %v442
  %vm449 = vmor %vm447, %vm448
  %v450 = vsel %vm449, %v442, %v446
  %v451 = vand.u32 2147483647, %v441
  %vm452 = vcmp.eq.f32.partialorder %v451, 8.507059e+37
  %v453 = vand.u32 %v441, 2147483648
  %v454 = vor.u32 1.1754944e-38, %v453
  %v455 = vsel %vm452, %v454, %v450
  %v456 = vmul.f32 1.0, %v455
  %v457 = vtanh.pop %v400
  %v458 = vmul.f32 %v456, %v299
  %460 = vrot.lane.b32.xlu0 %v457, 64
  %v461 = vpop.permute.xlu0 %460
  %v463 = vmul.f32 %v456, %v461
  %465 = vrot.lane.b32.xlu0 %v463, 32
  %v466 = vpop.permute.xlu0 %465
  %v468 = vadd.f32 %v458, %v466
  %v469 = vtanh.pop %v468
  %471 = vrot.lane.b32.xlu0 %v469, 64
  %v472 = vpop.permute.xlu0 %471
  %v474 = vmul.f32 %v456, %v472
  %476 = vst [vmem:[#allocation1] ss:$4 sm:$0xff] %v437
  %v477 = vld.sshfl [vmem:[#allocation1] sm:$0xff pattern:$0x73625140]
  %478 = vrot.lane.b32.xlu0 %v477, 32
  %v479 = vpop.permute.xlu0 %478
  %s481 = scalar_lea.vmem [#allocation3], 2
  %482 = vst.msk [vmem:[%s481] sm:$0x3] %vm312, %v479
  %484 = vst [vmem:[#allocation1] ss:$4 sm:$0xff] %v474
  %v485 = vld.sshfl [vmem:[#allocation1] sm:$0xff pattern:$0x73625140]
  %486 = vrot.lane.b32.xlu0 %v485, 32
  %v487 = vpop.permute.xlu0 %486
  %s489 = scalar_lea.vmem [#allocation4], 12
  %490 = vst.msk [vmem:[%s489] sm:$0x3] %vm312, %v487
  %491 = vst [vmem:[#allocation1] ss:$4 sm:$0xff] %v437
  %v492 = vld.sshfl [vmem:[#allocation1] sm:$0xff pattern:$0x73625140]
  %493 = vrot.lane.b32.xlu0 %v492, 32
  %v494 = vpop.permute.xlu0 %493
  %496 = vst [vmem:[#allocation1] ss:$4 sm:$0xff] %v474
  %v497 = vld.sshfl [vmem:[#allocation1] sm:$0xff pattern:$0x73625140]
  %498 = vrot.lane.b32.xlu0 %v497, 64
  %v499 = vpop.permute.xlu0 %498
  %v501 = vsel %vm73, %v494, %v499
  %v502 = vld [vmem:[%s2] sm:$0xff]
  %v503 = vld [vmem:[%s2 + $0x8] sm:$0xff]
  %v504 = vld [vmem:[%s2 + $0x10] sm:$0xff]
  %v505 = vld [vmem:[%s2 + $0x18] sm:$0xff]
  %v506 = vld [vmem:[%s2 + $0x20] sm:$0xff]
  %v507 = vld [vmem:[%s2 + $0x28] sm:$0xff]
  %v508 = vld [vmem:[%s2 + $0x30] sm:$0xff]
  %v509 = vld [vmem:[%s2 + $0x38] sm:$0xff]
  %v510 = vld [vmem:[%s2 + $0x40] sm:$0xff]
  %v511 = vld [vmem:[%s2 + $0x48] sm:$0xff]
  %v512 = vld [vmem:[%s2 + $0x50] sm:$0xff]
  %v513 = vld [vmem:[%s2 + $0x58] sm:$0xff]
  %v514 = vld [vmem:[%s2 + $0x60] sm:$0xff]
  %v515 = vld [vmem:[%s2 + $0x68] sm:$0xff]
  %v516 = vld [vmem:[%s2 + $0x70] sm:$0xff]
  %v517 = vld [vmem:[%s2 + $0x78] sm:$0xff]
  %v519 = vsel %vm180, %v501, 0
  %521 = vmatpush.msra.mxu0 0.0
  %522 = vmatpush.msra.mxu0 0.0
  %523 = vmatpush.msra.mxu0 0.0
  %524 = vmatpush.msra.mxu0 0.0
  %525 = vmatpush.msra.mxu0 0.0
  %526 = vmatpush.msra.mxu0 0.0
  %527 = vmatpush.msra.mxu0 0.0
  %528 = vmatpush.msra.mxu0 0.0
  %529 = vmatpush.msra.mxu0 %v516
  %530 = vmatpush.msra.mxu0 %v514
  %531 = vmatpush.msra.mxu0 %v512
  %532 = vmatpush.msra.mxu0 %v510
  %533 = vmatpush.msra.mxu0 %v508
  %534 = vmatpush.msra.mxu0 %v506
  %535 = vmatpush.msra.mxu0 %v504
  %536 = vmatpush.msra.mxu0 %v502
  %537 = vmatmul.f32.gmra.mxu0 %v519
  %v538 = vpop.f32.mrf.mxu0
  %v539 = vadd.f32 0.0, %v538
  %540 = vdwg.mxu0
  %541 = vmatpush.msra.mxu0 0.0
  %542 = vmatpush.msra.mxu0 0.0
  %543 = vmatpush.msra.mxu0 0.0
  %544 = vmatpush.msra.mxu0 0.0
  %545 = vmatpush.msra.mxu0 0.0
  %546 = vmatpush.msra.mxu0 0.0
  %547 = vmatpush.msra.mxu0 0.0
  %548 = vmatpush.msra.mxu0 0.0
  %549 = vmatpush.msra.mxu0 %v517
  %550 = vmatpush.msra.mxu0 %v515
  %551 = vmatpush.msra.mxu0 %v513
  %552 = vmatpush.msra.mxu0 %v511
  %553 = vmatpush.msra.mxu0 %v509
  %554 = vmatpush.msra.mxu0 %v507
  %555 = vmatpush.msra.mxu0 %v505
  %556 = vmatpush.msra.mxu0 %v503
  %557 = vmatmul.f32.gmra.mxu0 %v519
  %v558 = vpop.f32.mrf.mxu0
  %v559 = vadd.f32 0.0, %v558
  %560 = vdwg.mxu0
  %s561 = scalar_lea.vmem [#allocation2], 8
  %v562 = vld [vmem:[%s561] sm:$0xf]
  %v563 = vadd.f32 %v562, %v539
  %s564 = scalar_lea.vmem [#allocation2], 20
  %v565 = vld [vmem:[%s564] sm:$0xf]
  %v567 = vrot.slane %v565, 2
  %v569 = vadd.f32 %v567, %v559
  %v570 = vxor.u32 %v563, 2147483648
  %v571 = vmul.f32 %v570, 1.442695
  %v572 = vpow.pop %v571
  %v573 = vadd.f32 %v572, 1.0
  %v574 = vrcp.pop %v573
  %v575 = vmul.f32 %v573, %v574
  %v576 = vsub.f32 1.0, %v575
  %v577 = vmul.f32 %v574, %v576
  %v578 = vadd.f32 %v574, %v577
  %vm579 = vweird.f32 %v573
  %vm580 = vweird.f32 %v574
  %vm581 = vmor %vm579, %vm580
  %v582 = vsel %vm581, %v574, %v578
  %v583 = vand.u32 2147483647, %v573
  %vm584 = vcmp.eq.f32.partialorder %v583, 8.507059e+37
  %v585 = vand.u32 %v573, 2147483648
  %v586 = vor.u32 1.1754944e-38, %v585
  %v587 = vsel %vm584, %v586, %v582
  %v588 = vmul.f32 1.0, %v587
  %v589 = vtanh.pop %v563
  %v590 = vmul.f32 %v588, %v431
  %592 = vrot.lane.b32.xlu0 %v589, 64
  %v593 = vpop.permute.xlu0 %592
  %v595 = vmul.f32 %v588, %v593
  %597 = vrot.lane.b32.xlu0 %v595, 32
  %v598 = vpop.permute.xlu0 %597
  %v600 = vadd.f32 %v590, %v598
  %v601 = vtanh.pop %v600
  %603 = vrot.lane.b32.xlu0 %v601, 64
  %v604 = vpop.permute.xlu0 %603
  %v606 = vmul.f32 %v588, %v604
  %v607 = vxor.u32 %v569, 2147483648
  %v608 = vmul.f32 %v607, 1.442695
  %v609 = vpow.pop %v608
  %v610 = vadd.f32 %v609, 1.0
  %v611 = vrcp.pop %v610
  %v612 = vmul.f32 %v610, %v611
  %v613 = vsub.f32 1.0, %v612
  %v614 = vmul.f32 %v611, %v613
  %v615 = vadd.f32 %v611, %v614
  %vm616 = vweird.f32 %v610
  %vm617 = vweird.f32 %v611
  %vm618 = vmor %vm616, %vm617
  %v619 = vsel %vm618, %v611, %v615
  %v620 = vand.u32 2147483647, %v610
  %vm621 = vcmp.eq.f32.partialorder %v620, 8.507059e+37
  %v622 = vand.u32 %v610, 2147483648
  %v623 = vor.u32 1.1754944e-38, %v622
  %v624 = vsel %vm621, %v623, %v619
  %v625 = vmul.f32 1.0, %v624
  %v626 = vtanh.pop %v569
  %v627 = vmul.f32 %v625, %v468
  %629 = vrot.lane.b32.xlu0 %v626, 64
  %v630 = vpop.permute.xlu0 %629
  %v632 = vmul.f32 %v625, %v630
  %634 = vrot.lane.b32.xlu0 %v632, 32
  %v635 = vpop.permute.xlu0 %634
  %v637 = vadd.f32 %v627, %v635
  %v638 = vtanh.pop %v637
  %640 = vrot.lane.b32.xlu0 %v638, 64
  %v641 = vpop.permute.xlu0 %640
  %v643 = vmul.f32 %v625, %v641
  %645 = vst [vmem:[#allocation1] ss:$4 sm:$0xff] %v606
  %v646 = vld.sshfl [vmem:[#allocation1] sm:$0xff pattern:$0x73625140]
  %647 = vrot.lane.b32.xlu0 %v646, 32
  %v648 = vpop.permute.xlu0 %647
  %s650 = scalar_lea.vmem [#allocation3], 4
  %651 = vst.msk [vmem:[%s650] sm:$0x3] %vm312, %v648
  %653 = vst [vmem:[#allocation1] ss:$4 sm:$0xff] %v643
  %v654 = vld.sshfl [vmem:[#allocation1] sm:$0xff pattern:$0x73625140]
  %655 = vrot.lane.b32.xlu0 %v654, 32
  %v656 = vpop.permute.xlu0 %655
  %s658 = scalar_lea.vmem [#allocation4], 10
  %659 = vst.msk [vmem:[%s658] sm:$0x3] %vm312, %v656
  %660 = vst [vmem:[#allocation1] ss:$4 sm:$0xff] %v606
  %v661 = vld.sshfl [vmem:[#allocation1] sm:$0xff pattern:$0x73625140]
  %662 = vrot.lane.b32.xlu0 %v661, 32
  %v663 = vpop.permute.xlu0 %662
  %665 = vst [vmem:[#allocation1] ss:$4 sm:$0xff] %v643
  %v666 = vld.sshfl [vmem:[#allocation1] sm:$0xff pattern:$0x73625140]
  %667 = vrot.lane.b32.xlu0 %v666, 64
  %v668 = vpop.permute.xlu0 %667
  %v670 = vsel %vm73, %v663, %v668
  %v671 = vld [vmem:[%s2] sm:$0xff]
  %v672 = vld [vmem:[%s2 + $0x8] sm:$0xff]
  %v673 = vld [vmem:[%s2 + $0x10] sm:$0xff]
  %v674 = vld [vmem:[%s2 + $0x18] sm:$0xff]
  %v675 = vld [vmem:[%s2 + $0x20] sm:$0xff]
  %v676 = vld [vmem:[%s2 + $0x28] sm:$0xff]
  %v677 = vld [vmem:[%s2 + $0x30] sm:$0xff]
  %v678 = vld [vmem:[%s2 + $0x38] sm:$0xff]
  %v679 = vld [vmem:[%s2 + $0x40] sm:$0xff]
  %v680 = vld [vmem:[%s2 + $0x48] sm:$0xff]
  %v681 = vld [vmem:[%s2 + $0x50] sm:$0xff]
  %v682 = vld [vmem:[%s2 + $0x58] sm:$0xff]
  %v683 = vld [vmem:[%s2 + $0x60] sm:$0xff]
  %v684 = vld [vmem:[%s2 + $0x68] sm:$0xff]
  %v685 = vld [vmem:[%s2 + $0x70] sm:$0xff]
  %v686 = vld [vmem:[%s2 + $0x78] sm:$0xff]
  %v688 = vsel %vm180, %v670, 0
  %690 = vmatpush.msra.mxu0 0.0
  %691 = vmatpush.msra.mxu0 0.0
  %692 = vmatpush.msra.mxu0 0.0
  %693 = vmatpush.msra.mxu0 0.0
  %694 = vmatpush.msra.mxu0 0.0
  %695 = vmatpush.msra.mxu0 0.0
  %696 = vmatpush.msra.mxu0 0.0
  %697 = vmatpush.msra.mxu0 0.0
  %698 = vmatpush.msra.mxu0 %v685
  %699 = vmatpush.msra.mxu0 %v683
  %700 = vmatpush.msra.mxu0 %v681
  %701 = vmatpush.msra.mxu0 %v679
  %702 = vmatpush.msra.mxu0 %v677
  %703 = vmatpush.msra.mxu0 %v675
  %704 = vmatpush.msra.mxu0 %v673
  %705 = vmatpush.msra.mxu0 %v671
  %706 = vmatmul.f32.gmra.mxu0 %v688
  %v707 = vpop.f32.mrf.mxu0
  %v708 = vadd.f32 0.0, %v707
  %709 = vdwg.mxu0
  %710 = vmatpush.msra.mxu0 0.0
  %711 = vmatpush.msra.mxu0 0.0
  %712 = vmatpush.msra.mxu0 0.0
  %713 = vmatpush.msra.mxu0 0.0
  %714 = vmatpush.msra.mxu0 0.0
  %715 = vmatpush.msra.mxu0 0.0
  %716 = vmatpush.msra.mxu0 0.0
  %717 = vmatpush.msra.mxu0 0.0
  %718 = vmatpush.msra.mxu0 %v686
  %719 = vmatpush.msra.mxu0 %v684
  %720 = vmatpush.msra.mxu0 %v682
  %721 = vmatpush.msra.mxu0 %v680
  %722 = vmatpush.msra.mxu0 %v678
  %723 = vmatpush.msra.mxu0 %v676
  %724 = vmatpush.msra.mxu0 %v674
  %725 = vmatpush.msra.mxu0 %v672
  %726 = vmatmul.f32.gmra.mxu0 %v688
  %v727 = vpop.f32.mrf.mxu0
  %v728 = vadd.f32 0.0, %v727
  %729 = vdwg.mxu0
  %s730 = scalar_lea.vmem [#allocation2], 12
  %v731 = vld [vmem:[%s730] sm:$0xf]
  %v732 = vadd.f32 %v731, %v708
  %s733 = scalar_lea.vmem [#allocation2], 16
  %v734 = vld [vmem:[%s733] sm:$0xf]
  %v736 = vrot.slane %v734, 2
  %v738 = vadd.f32 %v736, %v728
  %v739 = vxor.u32 %v732, 2147483648
  %v740 = vmul.f32 %v739, 1.442695
  %v741 = vpow.pop %v740
  %v742 = vadd.f32 %v741, 1.0
  %v743 = vrcp.pop %v742
  %v744 = vmul.f32 %v742, %v743
  %v745 = vsub.f32 1.0, %v744
  %v746 = vmul.f32 %v743, %v745
  %v747 = vadd.f32 %v743, %v746
  %vm748 = vweird.f32 %v742
  %vm749 = vweird.f32 %v743
  %vm750 = vmor %vm748, %vm749
  %v751 = vsel %vm750, %v743, %v747
  %v752 = vand.u32 2147483647, %v742
  %vm753 = vcmp.eq.f32.partialorder %v752, 8.507059e+37
  %v754 = vand.u32 %v742, 2147483648
  %v755 = vor.u32 1.1754944e-38, %v754
  %v756 = vsel %vm753, %v755, %v751
  %v757 = vmul.f32 1.0, %v756
  %v758 = vtanh.pop %v732
  %v759 = vmul.f32 %v757, %v600
  %761 = vrot.lane.b32.xlu0 %v758, 64
  %v762 = vpop.permute.xlu0 %761
  %v764 = vmul.f32 %v757, %v762
  %766 = vrot.lane.b32.xlu0 %v764, 32
  %v767 = vpop.permute.xlu0 %766
  %v769 = vadd.f32 %v759, %v767
  %v770 = vtanh.pop %v769
  %772 = vrot.lane.b32.xlu0 %v770, 64
  %v773 = vpop.permute.xlu0 %772
  %v775 = vmul.f32 %v757, %v773
  %v776 = vxor.u32 %v738, 2147483648
  %v777 = vmul.f32 %v776, 1.442695
  %v778 = vpow.pop %v777
  %v779 = vadd.f32 %v778, 1.0
  %v780 = vrcp.pop %v779
  %v781 = vmul.f32 %v779, %v780
  %v782 = vsub.f32 1.0, %v781
  %v783 = vmul.f32 %v780, %v782
  %v784 = vadd.f32 %v780, %v783
  %vm785 = vweird.f32 %v779
  %vm786 = vweird.f32 %v780
  %vm787 = vmor %vm785, %vm786
  %v788 = vsel %vm787, %v780, %v784
  %v789 = vand.u32 2147483647, %v779
  %vm790 = vcmp.eq.f32.partialorder %v789, 8.507059e+37
  %v791 = vand.u32 %v779, 2147483648
  %v792 = vor.u32 1.1754944e-38, %v791
  %v793 = vsel %vm790, %v792, %v788
  %v794 = vmul.f32 1.0, %v793
  %v795 = vtanh.pop %v738
  %v796 = vmul.f32 %v794, %v637
  %798 = vrot.lane.b32.xlu0 %v795, 64
  %v799 = vpop.permute.xlu0 %798
  %v801 = vmul.f32 %v794, %v799
  %803 = vrot.lane.b32.xlu0 %v801, 32
  %v804 = vpop.permute.xlu0 %803
  %v806 = vadd.f32 %v796, %v804
  %v807 = vtanh.pop %v806
  %809 = vrot.lane.b32.xlu0 %v807, 64
  %v810 = vpop.permute.xlu0 %809
  %v812 = vmul.f32 %v794, %v810
  %814 = vst [vmem:[#allocation1] ss:$4 sm:$0xff] %v775
  %v815 = vld.sshfl [vmem:[#allocation1] sm:$0xff pattern:$0x73625140]
  %816 = vrot.lane.b32.xlu0 %v815, 32
  %v817 = vpop.permute.xlu0 %816
  %s819 = scalar_lea.vmem [#allocation3], 6
  %820 = vst.msk [vmem:[%s819] sm:$0x3] %vm312, %v817
  %822 = vst [vmem:[#allocation1] ss:$4 sm:$0xff] %v812
  %v823 = vld.sshfl [vmem:[#allocation1] sm:$0xff pattern:$0x73625140]
  %824 = vrot.lane.b32.xlu0 %v823, 32
  %v825 = vpop.permute.xlu0 %824
  %s827 = scalar_lea.vmem [#allocation4], 8
  %828 = vst.msk [vmem:[%s827] sm:$0x3] %vm312, %v825
  %829 = vst [vmem:[#allocation1] ss:$4 sm:$0xff] %v775
  %v830 = vld.sshfl [vmem:[#allocation1] sm:$0xff pattern:$0x73625140]
  %831 = vrot.lane.b32.xlu0 %v830, 32
  %v832 = vpop.permute.xlu0 %831
  %834 = vst [vmem:[#allocation1] ss:$4 sm:$0xff] %v812
  %v835 = vld.sshfl [vmem:[#allocation1] sm:$0xff pattern:$0x73625140]
  %836 = vrot.lane.b32.xlu0 %v835, 64
  %v837 = vpop.permute.xlu0 %836
  %v839 = vsel %vm73, %v832, %v837
  %v840 = vld [vmem:[%s2] sm:$0xff]
  %v841 = vld [vmem:[%s2 + $0x8] sm:$0xff]
  %v842 = vld [vmem:[%s2 + $0x10] sm:$0xff]
  %v843 = vld [vmem:[%s2 + $0x18] sm:$0xff]
  %v844 = vld [vmem:[%s2 + $0x20] sm:$0xff]
  %v845 = vld [vmem:[%s2 + $0x28] sm:$0xff]
  %v846 = vld [vmem:[%s2 + $0x30] sm:$0xff]
  %v847 = vld [vmem:[%s2 + $0x38] sm:$0xff]
  %v848 = vld [vmem:[%s2 + $0x40] sm:$0xff]
  %v849 = vld [vmem:[%s2 + $0x48] sm:$0xff]
  %v850 = vld [vmem:[%s2 + $0x50] sm:$0xff]
  %v851 = vld [vmem:[%s2 + $0x58] sm:$0xff]
  %v852 = vld [vmem:[%s2 + $0x60] sm:$0xff]
  %v853 = vld [vmem:[%s2 + $0x68] sm:$0xff]
  %v854 = vld [vmem:[%s2 + $0x70] sm:$0xff]
  %v855 = vld [vmem:[%s2 + $0x78] sm:$0xff]
  %v857 = vsel %vm180, %v839, 0
  %859 = vmatpush.msra.mxu0 0.0
  %860 = vmatpush.msra.mxu0 0.0
  %861 = vmatpush.msra.mxu0 0.0
  %862 = vmatpush.msra.mxu0 0.0
  %863 = vmatpush.msra.mxu0 0.0
  %864 = vmatpush.msra.mxu0 0.0
  %865 = vmatpush.msra.mxu0 0.0
  %866 = vmatpush.msra.mxu0 0.0
  %867 = vmatpush.msra.mxu0 %v854
  %868 = vmatpush.msra.mxu0 %v852
  %869 = vmatpush.msra.mxu0 %v850
  %870 = vmatpush.msra.mxu0 %v848
  %871 = vmatpush.msra.mxu0 %v846
  %872 = vmatpush.msra.mxu0 %v844
  %873 = vmatpush.msra.mxu0 %v842
  %874 = vmatpush.msra.mxu0 %v840
  %875 = vmatmul.f32.gmra.mxu0 %v857
  %v876 = vpop.f32.mrf.mxu0
  %v877 = vadd.f32 0.0, %v876
  %878 = vdwg.mxu0
  %879 = vmatpush.msra.mxu0 0.0
  %880 = vmatpush.msra.mxu0 0.0
  %881 = vmatpush.msra.mxu0 0.0
  %882 = vmatpush.msra.mxu0 0.0
  %883 = vmatpush.msra.mxu0 0.0
  %884 = vmatpush.msra.mxu0 0.0
  %885 = vmatpush.msra.mxu0 0.0
  %886 = vmatpush.msra.mxu0 0.0
  %887 = vmatpush.msra.mxu0 %v855
  %888 = vmatpush.msra.mxu0 %v853
  %889 = vmatpush.msra.mxu0 %v851
  %890 = vmatpush.msra.mxu0 %v849
  %891 = vmatpush.msra.mxu0 %v847
  %892 = vmatpush.msra.mxu0 %v845
  %893 = vmatpush.msra.mxu0 %v843
  %894 = vmatpush.msra.mxu0 %v841
  %895 = vmatmul.f32.gmra.mxu0 %v857
  %v896 = vpop.f32.mrf.mxu0
  %v897 = vadd.f32 0.0, %v896
  %898 = vdwg.mxu0
  %v899 = vld [vmem:[%s733] sm:$0xf]
  %v900 = vadd.f32 %v899, %v877
  %v901 = vld [vmem:[%s730] sm:$0xf]
  %v903 = vrot.slane %v901, 2
  %v905 = vadd.f32 %v903, %v897
  %v906 = vxor.u32 %v900, 2147483648
  %v907 = vmul.f32 %v906, 1.442695
  %v908 = vpow.pop %v907
  %v909 = vadd.f32 %v908, 1.0
  %v910 = vrcp.pop %v909
  %v911 = vmul.f32 %v909, %v910
  %v912 = vsub.f32 1.0, %v911
  %v913 = vmul.f32 %v910, %v912
  %v914 = vadd.f32 %v910, %v913
  %vm915 = vweird.f32 %v909
  %vm916 = vweird.f32 %v910
  %vm917 = vmor %vm915, %vm916
  %v918 = vsel %vm917, %v910, %v914
  %v919 = vand.u32 2147483647, %v909
  %vm920 = vcmp.eq.f32.partialorder %v919, 8.507059e+37
  %v921 = vand.u32 %v909, 2147483648
  %v922 = vor.u32 1.1754944e-38, %v921
  %v923 = vsel %vm920, %v922, %v918
  %v924 = vmul.f32 1.0, %v923
  %v925 = vtanh.pop %v900
  %v926 = vmul.f32 %v924, %v769
  %928 = vrot.lane.b32.xlu0 %v925, 64
  %v929 = vpop.permute.xlu0 %928
  %v931 = vmul.f32 %v924, %v929
  %933 = vrot.lane.b32.xlu0 %v931, 32
  %v934 = vpop.permute.xlu0 %933
  %v936 = vadd.f32 %v926, %v934
  %v937 = vtanh.pop %v936
  %939 = vrot.lane.b32.xlu0 %v937, 64
  %v940 = vpop.permute.xlu0 %939
  %v942 = vmul.f32 %v924, %v940
  %v943 = vxor.u32 %v905, 2147483648
  %v944 = vmul.f32 %v943, 1.442695
  %v945 = vpow.pop %v944
  %v946 = vadd.f32 %v945, 1.0
  %v947 = vrcp.pop %v946
  %v948 = vmul.f32 %v946, %v947
  %v949 = vsub.f32 1.0, %v948
  %v950 = vmul.f32 %v947, %v949
  %v951 = vadd.f32 %v947, %v950
  %vm952 = vweird.f32 %v946
  %vm953 = vweird.f32 %v947
  %vm954 = vmor %vm952, %vm953
  %v955 = vsel %vm954, %v947, %v951
  %v956 = vand.u32 2147483647, %v946
  %vm957 = vcmp.eq.f32.partialorder %v956, 8.507059e+37
  %v958 = vand.u32 %v946, 2147483648
  %v959 = vor.u32 1.1754944e-38, %v958
  %v960 = vsel %vm957, %v959, %v955
  %v961 = vmul.f32 1.0, %v960
  %v962 = vtanh.pop %v905
  %v963 = vmul.f32 %v961, %v806
  %965 = vrot.lane.b32.xlu0 %v962, 64
  %v966 = vpop.permute.xlu0 %965
  %v968 = vmul.f32 %v961, %v966
  %970 = vrot.lane.b32.xlu0 %v968, 32
  %v971 = vpop.permute.xlu0 %970
  %v973 = vadd.f32 %v963, %v971
  %v974 = vtanh.pop %v973
  %976 = vrot.lane.b32.xlu0 %v974, 64
  %v977 = vpop.permute.xlu0 %976
  %v979 = vmul.f32 %v961, %v977
  %981 = vst [vmem:[#allocation1] ss:$4 sm:$0xff] %v942
  %v982 = vld.sshfl [vmem:[#allocation1] sm:$0xff pattern:$0x73625140]
  %983 = vrot.lane.b32.xlu0 %v982, 32
  %v984 = vpop.permute.xlu0 %983
  %s986 = scalar_lea.vmem [#allocation3], 8
  %987 = vst.msk [vmem:[%s986] sm:$0x3] %vm312, %v984
  %989 = vst [vmem:[#allocation1] ss:$4 sm:$0xff] %v979
  %v990 = vld.sshfl [vmem:[#allocation1] sm:$0xff pattern:$0x73625140]
  %991 = vrot.lane.b32.xlu0 %v990, 32
  %v992 = vpop.permute.xlu0 %991
  %s994 = scalar_lea.vmem [#allocation4], 6
  %995 = vst.msk [vmem:[%s994] sm:$0x3] %vm312, %v992
  %996 = vst [vmem:[#allocation1] ss:$4 sm:$0xff] %v942
  %v997 = vld.sshfl [vmem:[#allocation1] sm:$0xff pattern:$0x73625140]
  %998 = vrot.lane.b32.xlu0 %v997, 32
  %v999 = vpop.permute.xlu0 %998
  %1001 = vst [vmem:[#allocation1] ss:$4 sm:$0xff] %v979
  %v1002 = vld.sshfl [vmem:[#allocation1] sm:$0xff pattern:$0x73625140]
  %1003 = vrot.lane.b32.xlu0 %v1002, 64
  %v1004 = vpop.permute.xlu0 %1003
  %v1006 = vsel %vm73, %v999, %v1004
  %v1007 = vld [vmem:[%s2] sm:$0xff]
  %v1008 = vld [vmem:[%s2 + $0x8] sm:$0xff]
  %v1009 = vld [vmem:[%s2 + $0x10] sm:$0xff]
  %v1010 = vld [vmem:[%s2 + $0x18] sm:$0xff]
  %v1011 = vld [vmem:[%s2 + $0x20] sm:$0xff]
  %v1012 = vld [vmem:[%s2 + $0x28] sm:$0xff]
  %v1013 = vld [vmem:[%s2 + $0x30] sm:$0xff]
  %v1014 = vld [vmem:[%s2 + $0x38] sm:$0xff]
  %v1015 = vld [vmem:[%s2 + $0x40] sm:$0xff]
  %v1016 = vld [vmem:[%s2 + $0x48] sm:$0xff]
  %v1017 = vld [vmem:[%s2 + $0x50] sm:$0xff]
  %v1018 = vld [vmem:[%s2 + $0x58] sm:$0xff]
  %v1019 = vld [vmem:[%s2 + $0x60] sm:$0xff]
  %v1020 = vld [vmem:[%s2 + $0x68] sm:$0xff]
  %v1021 = vld [vmem:[%s2 + $0x70] sm:$0xff]
  %v1022 = vld [vmem:[%s2 + $0x78] sm:$0xff]
  %v1024 = vsel %vm180, %v1006, 0
  %1026 = vmatpush.msra.mxu0 0.0
  %1027 = vmatpush.msra.mxu0 0.0
  %1028 = vmatpush.msra.mxu0 0.0
  %1029 = vmatpush.msra.mxu0 0.0
  %1030 = vmatpush.msra.mxu0 0.0
  %1031 = vmatpush.msra.mxu0 0.0
  %1032 = vmatpush.msra.mxu0 0.0
  %1033 = vmatpush.msra.mxu0 0.0
  %1034 = vmatpush.msra.mxu0 %v1021
  %1035 = vmatpush.msra.mxu0 %v1019
  %1036 = vmatpush.msra.mxu0 %v1017
  %1037 = vmatpush.msra.mxu0 %v1015
  %1038 = vmatpush.msra.mxu0 %v1013
  %1039 = vmatpush.msra.mxu0 %v1011
  %1040 = vmatpush.msra.mxu0 %v1009
  %1041 = vmatpush.msra.mxu0 %v1007
  %1042 = vmatmul.f32.gmra.mxu0 %v1024
  %v1043 = vpop.f32.mrf.mxu0
  %v1044 = vadd.f32 0.0, %v1043
  %1045 = vdwg.mxu0
  %1046 = vmatpush.msra.mxu0 0.0
  %1047 = vmatpush.msra.mxu0 0.0
  %1048 = vmatpush.msra.mxu0 0.0
  %1049 = vmatpush.msra.mxu0 0.0
  %1050 = vmatpush.msra.mxu0 0.0
  %1051 = vmatpush.msra.mxu0 0.0
  %1052 = vmatpush.msra.mxu0 0.0
  %1053 = vmatpush.msra.mxu0 0.0
  %1054 = vmatpush.msra.mxu0 %v1022
  %1055 = vmatpush.msra.mxu0 %v1020
  %1056 = vmatpush.msra.mxu0 %v1018
  %1057 = vmatpush.msra.mxu0 %v1016
  %1058 = vmatpush.msra.mxu0 %v1014
  %1059 = vmatpush.msra.mxu0 %v1012
  %1060 = vmatpush.msra.mxu0 %v1010
  %1061 = vmatpush.msra.mxu0 %v1008
  %1062 = vmatmul.f32.gmra.mxu0 %v1024
  %v1063 = vpop.f32.mrf.mxu0
  %v1064 = vadd.f32 0.0, %v1063
  %1065 = vdwg.mxu0
  %v1066 = vld [vmem:[%s564] sm:$0xf]
  %v1067 = vadd.f32 %v1066, %v1044
  %v1068 = vld [vmem:[%s561] sm:$0xf]
  %v1070 = vrot.slane %v1068, 2
  %v1072 = vadd.f32 %v1070, %v1064
  %v1073 = vxor.u32 %v1067, 2147483648
  %v1074 = vmul.f32 %v1073, 1.442695
  %v1075 = vpow.pop %v1074
  %v1076 = vadd.f32 %v1075, 1.0
  %v1077 = vrcp.pop %v1076
  %v1078 = vmul.f32 %v1076, %v1077
  %v1079 = vsub.f32 1.0, %v1078
  %v1080 = vmul.f32 %v1077, %v1079
  %v1081 = vadd.f32 %v1077, %v1080
  %vm1082 = vweird.f32 %v1076
  %vm1083 = vweird.f32 %v1077
  %vm1084 = vmor %vm1082, %vm1083
  %v1085 = vsel %vm1084, %v1077, %v1081
  %v1086 = vand.u32 2147483647, %v1076
  %vm1087 = vcmp.eq.f32.partialorder %v1086, 8.507059e+37
  %v1088 = vand.u32 %v1076, 2147483648
  %v1089 = vor.u32 1.1754944e-38, %v1088
  %v1090 = vsel %vm1087, %v1089, %v1085
  %v1091 = vmul.f32 1.0, %v1090
  %v1092 = vtanh.pop %v1067
  %v1093 = vmul.f32 %v1091, %v936
  %1095 = vrot.lane.b32.xlu0 %v1092, 64
  %v1096 = vpop.permute.xlu0 %1095
  %v1098 = vmul.f32 %v1091, %v1096
  %1100 = vrot.lane.b32.xlu0 %v1098, 32
  %v1101 = vpop.permute.xlu0 %1100
  %v1103 = vadd.f32 %v1093, %v1101
  %v1104 = vtanh.pop %v1103
  %1106 = vrot.lane.b32.xlu0 %v1104, 64
  %v1107 = vpop.permute.xlu0 %1106
  %v1109 = vmul.f32 %v1091, %v1107
  %v1110 = vxor.u32 %v1072, 2147483648
  %v1111 = vmul.f32 %v1110, 1.442695
  %v1112 = vpow.pop %v1111
  %v1113 = vadd.f32 %v1112, 1.0
  %v1114 = vrcp.pop %v1113
  %v1115 = vmul.f32 %v1113, %v1114
  %v1116 = vsub.f32 1.0, %v1115
  %v1117 = vmul.f32 %v1114, %v1116
  %v1118 = vadd.f32 %v1114, %v1117
  %vm1119 = vweird.f32 %v1113
  %vm1120 = vweird.f32 %v1114
  %vm1121 = vmor %vm1119, %vm1120
  %v1122 = vsel %vm1121, %v1114, %v1118
  %v1123 = vand.u32 2147483647, %v1113
  %vm1124 = vcmp.eq.f32.partialorder %v1123, 8.507059e+37
  %v1125 = vand.u32 %v1113, 2147483648
  %v1126 = vor.u32 1.1754944e-38, %v1125
  %v1127 = vsel %vm1124, %v1126, %v1122
  %v1128 = vmul.f32 1.0, %v1127
  %v1129 = vtanh.pop %v1072
  %v1130 = vmul.f32 %v1128, %v973
  %1132 = vrot.lane.b32.xlu0 %v1129, 64
  %v1133 = vpop.permute.xlu0 %1132
  %v1135 = vmul.f32 %v1128, %v1133
  %1137 = vrot.lane.b32.xlu0 %v1135, 32
  %v1138 = vpop.permute.xlu0 %1137
  %v1140 = vadd.f32 %v1130, %v1138
  %v1141 = vtanh.pop %v1140
  %1143 = vrot.lane.b32.xlu0 %v1141, 64
  %v1144 = vpop.permute.xlu0 %1143
  %v1146 = vmul.f32 %v1128, %v1144
  %1148 = vst [vmem:[#allocation1] ss:$4 sm:$0xff] %v1109
  %v1149 = vld.sshfl [vmem:[#allocation1] sm:$0xff pattern:$0x73625140]
  %1150 = vrot.lane.b32.xlu0 %v1149, 32
  %v1151 = vpop.permute.xlu0 %1150
  %s1153 = scalar_lea.vmem [#allocation3], 10
  %1154 = vst.msk [vmem:[%s1153] sm:$0x3] %vm312, %v1151
  %1156 = vst [vmem:[#allocation1] ss:$4 sm:$0xff] %v1146
  %v1157 = vld.sshfl [vmem:[#allocation1] sm:$0xff pattern:$0x73625140]
  %1158 = vrot.lane.b32.xlu0 %v1157, 32
  %v1159 = vpop.permute.xlu0 %1158
  %s1161 = scalar_lea.vmem [#allocation4], 4
  %1162 = vst.msk [vmem:[%s1161] sm:$0x3] %vm312, %v1159
  %1163 = vst [vmem:[#allocation1] ss:$4 sm:$0xff] %v1109
  %v1164 = vld.sshfl [vmem:[#allocation1] sm:$0xff pattern:$0x73625140]
  %1165 = vrot.lane.b32.xlu0 %v1164, 32
  %v1166 = vpop.permute.xlu0 %1165
  %1168 = vst [vmem:[#allocation1] ss:$4 sm:$0xff] %v1146
  %v1169 = vld.sshfl [vmem:[#allocation1] sm:$0xff pattern:$0x73625140]
  %1170 = vrot.lane.b32.xlu0 %v1169, 64
  %v1171 = vpop.permute.xlu0 %1170
  %v1173 = vsel %vm73, %v1166, %v1171
  %v1174 = vld [vmem:[%s2] sm:$0xff]
  %v1175 = vld [vmem:[%s2 + $0x8] sm:$0xff]
  %v1176 = vld [vmem:[%s2 + $0x10] sm:$0xff]
  %v1177 = vld [vmem:[%s2 + $0x18] sm:$0xff]
  %v1178 = vld [vmem:[%s2 + $0x20] sm:$0xff]
  %v1179 = vld [vmem:[%s2 + $0x28] sm:$0xff]
  %v1180 = vld [vmem:[%s2 + $0x30] sm:$0xff]
  %v1181 = vld [vmem:[%s2 + $0x38] sm:$0xff]
  %v1182 = vld [vmem:[%s2 + $0x40] sm:$0xff]
  %v1183 = vld [vmem:[%s2 + $0x48] sm:$0xff]
  %v1184 = vld [vmem:[%s2 + $0x50] sm:$0xff]
  %v1185 = vld [vmem:[%s2 + $0x58] sm:$0xff]
  %v1186 = vld [vmem:[%s2 + $0x60] sm:$0xff]
  %v1187 = vld [vmem:[%s2 + $0x68] sm:$0xff]
  %v1188 = vld [vmem:[%s2 + $0x70] sm:$0xff]
  %v1189 = vld [vmem:[%s2 + $0x78] sm:$0xff]
  %v1191 = vsel %vm180, %v1173, 0
  %1193 = vmatpush.msra.mxu0 0.0
  %1194 = vmatpush.msra.mxu0 0.0
  %1195 = vmatpush.msra.mxu0 0.0
  %1196 = vmatpush.msra.mxu0 0.0
  %1197 = vmatpush.msra.mxu0 0.0
  %1198 = vmatpush.msra.mxu0 0.0
  %1199 = vmatpush.msra.mxu0 0.0
  %1200 = vmatpush.msra.mxu0 0.0
  %1201 = vmatpush.msra.mxu0 %v1188
  %1202 = vmatpush.msra.mxu0 %v1186
  %1203 = vmatpush.msra.mxu0 %v1184
  %1204 = vmatpush.msra.mxu0 %v1182
  %1205 = vmatpush.msra.mxu0 %v1180
  %1206 = vmatpush.msra.mxu0 %v1178
  %1207 = vmatpush.msra.mxu0 %v1176
  %1208 = vmatpush.msra.mxu0 %v1174
  %1209 = vmatmul.f32.gmra.mxu0 %v1191
  %v1210 = vpop.f32.mrf.mxu0
  %v1211 = vadd.f32 0.0, %v1210
  %1212 = vdwg.mxu0
  %1213 = vmatpush.msra.mxu0 0.0
  %1214 = vmatpush.msra.mxu0 0.0
  %1215 = vmatpush.msra.mxu0 0.0
  %1216 = vmatpush.msra.mxu0 0.0
  %1217 = vmatpush.msra.mxu0 0.0
  %1218 = vmatpush.msra.mxu0 0.0
  %1219 = vmatpush.msra.mxu0 0.0
  %1220 = vmatpush.msra.mxu0 0.0
  %1221 = vmatpush.msra.mxu0 %v1189
  %1222 = vmatpush.msra.mxu0 %v1187
  %1223 = vmatpush.msra.mxu0 %v1185
  %1224 = vmatpush.msra.mxu0 %v1183
  %1225 = vmatpush.msra.mxu0 %v1181
  %1226 = vmatpush.msra.mxu0 %v1179
  %1227 = vmatpush.msra.mxu0 %v1177
  %1228 = vmatpush.msra.mxu0 %v1175
  %1229 = vmatmul.f32.gmra.mxu0 %v1191
  %v1230 = vpop.f32.mrf.mxu0
  %v1231 = vadd.f32 0.0, %v1230
  %1232 = vdwg.mxu0
  %v1233 = vld [vmem:[%s395] sm:$0xf]
  %v1234 = vadd.f32 %v1233, %v1211
  %v1235 = vld [vmem:[%s392] sm:$0xf]
  %v1237 = vrot.slane %v1235, 2
  %v1239 = vadd.f32 %v1237, %v1231
  %v1240 = vxor.u32 %v1234, 2147483648
  %v1241 = vmul.f32 %v1240, 1.442695
  %v1242 = vpow.pop %v1241
  %v1243 = vadd.f32 %v1242, 1.0
  %v1244 = vrcp.pop %v1243
  %v1245 = vmul.f32 %v1243, %v1244
  %v1246 = vsub.f32 1.0, %v1245
  %v1247 = vmul.f32 %v1244, %v1246
  %v1248 = vadd.f32 %v1244, %v1247
  %vm1249 = vweird.f32 %v1243
  %vm1250 = vweird.f32 %v1244
  %vm1251 = vmor %vm1249, %vm1250
  %v1252 = vsel %vm1251, %v1244, %v1248
  %v1253 = vand.u32 2147483647, %v1243
  %vm1254 = vcmp.eq.f32.partialorder %v1253, 8.507059e+37
  %v1255 = vand.u32 %v1243, 2147483648
  %v1256 = vor.u32 1.1754944e-38, %v1255
  %v1257 = vsel %vm1254, %v1256, %v1252
  %v1258 = vmul.f32 1.0, %v1257
  %v1259 = vtanh.pop %v1234
  %v1260 = vmul.f32 %v1258, %v1103
  %1262 = vrot.lane.b32.xlu0 %v1259, 64
  %v1263 = vpop.permute.xlu0 %1262
  %v1265 = vmul.f32 %v1258, %v1263
  %1267 = vrot.lane.b32.xlu0 %v1265, 32
  %v1268 = vpop.permute.xlu0 %1267
  %v1270 = vadd.f32 %v1260, %v1268
  %v1271 = vtanh.pop %v1270
  %1273 = vrot.lane.b32.xlu0 %v1271, 64
  %v1274 = vpop.permute.xlu0 %1273
  %v1276 = vmul.f32 %v1258, %v1274
  %v1277 = vxor.u32 %v1239, 2147483648
  %v1278 = vmul.f32 %v1277, 1.442695
  %v1279 = vpow.pop %v1278
  %v1280 = vadd.f32 %v1279, 1.0
  %v1281 = vrcp.pop %v1280
  %v1282 = vmul.f32 %v1280, %v1281
  %v1283 = vsub.f32 1.0, %v1282
  %v1284 = vmul.f32 %v1281, %v1283
  %v1285 = vadd.f32 %v1281, %v1284
  %vm1286 = vweird.f32 %v1280
  %vm1287 = vweird.f32 %v1281
  %vm1288 = vmor %vm1286, %vm1287
  %v1289 = vsel %vm1288, %v1281, %v1285
  %v1290 = vand.u32 2147483647, %v1280
  %vm1291 = vcmp.eq.f32.partialorder %v1290, 8.507059e+37
  %v1292 = vand.u32 %v1280, 2147483648
  %v1293 = vor.u32 1.1754944e-38, %v1292
  %v1294 = vsel %vm1291, %v1293, %v1289
  %v1295 = vmul.f32 1.0, %v1294
  %v1296 = vtanh.pop %v1239
  %v1297 = vmul.f32 %v1295, %v1140
  %1299 = vrot.lane.b32.xlu0 %v1296, 64
  %v1300 = vpop.permute.xlu0 %1299
  %v1302 = vmul.f32 %v1295, %v1300
  %1304 = vrot.lane.b32.xlu0 %v1302, 32
  %v1305 = vpop.permute.xlu0 %1304
  %v1307 = vadd.f32 %v1297, %v1305
  %v1308 = vtanh.pop %v1307
  %1310 = vrot.lane.b32.xlu0 %v1308, 64
  %v1311 = vpop.permute.xlu0 %1310
  %v1313 = vmul.f32 %v1295, %v1311
  %1315 = vst [vmem:[#allocation1] ss:$4 sm:$0xff] %v1276
  %v1316 = vld.sshfl [vmem:[#allocation1] sm:$0xff pattern:$0x73625140]
  %1317 = vrot.lane.b32.xlu0 %v1316, 32
  %v1318 = vpop.permute.xlu0 %1317
  %s1320 = scalar_lea.vmem [#allocation3], 12
  %1321 = vst.msk [vmem:[%s1320] sm:$0x3] %vm312, %v1318
  %1323 = vst [vmem:[#allocation1] ss:$4 sm:$0xff] %v1313
  %v1324 = vld.sshfl [vmem:[#allocation1] sm:$0xff pattern:$0x73625140]
  %1325 = vrot.lane.b32.xlu0 %v1324, 32
  %v1326 = vpop.permute.xlu0 %1325
  %s1328 = scalar_lea.vmem [#allocation4], 2
  %1329 = vst.msk [vmem:[%s1328] sm:$0x3] %vm312, %v1326
  %1330 = vst [vmem:[#allocation1] ss:$4 sm:$0xff] %v1276
  %v1331 = vld.sshfl [vmem:[#allocation1] sm:$0xff pattern:$0x73625140]
  %1332 = vrot.lane.b32.xlu0 %v1331, 32
  %v1333 = vpop.permute.xlu0 %1332
  %1335 = vst [vmem:[#allocation1] ss:$4 sm:$0xff] %v1313
  %v1336 = vld.sshfl [vmem:[#allocation1] sm:$0xff pattern:$0x73625140]
  %1337 = vrot.lane.b32.xlu0 %v1336, 64
  %v1338 = vpop.permute.xlu0 %1337
  %v1340 = vsel %vm73, %v1333, %v1338
  %v1341 = vld [vmem:[%s2] sm:$0xff]
  %v1342 = vld [vmem:[%s2 + $0x8] sm:$0xff]
  %v1343 = vld [vmem:[%s2 + $0x10] sm:$0xff]
  %v1344 = vld [vmem:[%s2 + $0x18] sm:$0xff]
  %v1345 = vld [vmem:[%s2 + $0x20] sm:$0xff]
  %v1346 = vld [vmem:[%s2 + $0x28] sm:$0xff]
  %v1347 = vld [vmem:[%s2 + $0x30] sm:$0xff]
  %v1348 = vld [vmem:[%s2 + $0x38] sm:$0xff]
  %v1349 = vld [vmem:[%s2 + $0x40] sm:$0xff]
  %v1350 = vld [vmem:[%s2 + $0x48] sm:$0xff]
  %v1351 = vld [vmem:[%s2 + $0x50] sm:$0xff]
  %v1352 = vld [vmem:[%s2 + $0x58] sm:$0xff]
  %v1353 = vld [vmem:[%s2 + $0x60] sm:$0xff]
  %v1354 = vld [vmem:[%s2 + $0x68] sm:$0xff]
  %v1355 = vld [vmem:[%s2 + $0x70] sm:$0xff]
  %v1356 = vld [vmem:[%s2 + $0x78] sm:$0xff]
  %v1358 = vsel %vm180, %v1340, 0
  %1360 = vmatpush.msra.mxu0 0.0
  %1361 = vmatpush.msra.mxu0 0.0
  %1362 = vmatpush.msra.mxu0 0.0
  %1363 = vmatpush.msra.mxu0 0.0
  %1364 = vmatpush.msra.mxu0 0.0
  %1365 = vmatpush.msra.mxu0 0.0
  %1366 = vmatpush.msra.mxu0 0.0
  %1367 = vmatpush.msra.mxu0 0.0
  %1368 = vmatpush.msra.mxu0 %v1355
  %1369 = vmatpush.msra.mxu0 %v1353
  %1370 = vmatpush.msra.mxu0 %v1351
  %1371 = vmatpush.msra.mxu0 %v1349
  %1372 = vmatpush.msra.mxu0 %v1347
  %1373 = vmatpush.msra.mxu0 %v1345
  %1374 = vmatpush.msra.mxu0 %v1343
  %1375 = vmatpush.msra.mxu0 %v1341
  %1376 = vmatmul.f32.gmra.mxu0 %v1358
  %v1377 = vpop.f32.mrf.mxu0
  %v1378 = vadd.f32 0.0, %v1377
  %1379 = vdwg.mxu0
  %1380 = vmatpush.msra.mxu0 0.0
  %1381 = vmatpush.msra.mxu0 0.0
  %1382 = vmatpush.msra.mxu0 0.0
  %1383 = vmatpush.msra.mxu0 0.0
  %1384 = vmatpush.msra.mxu0 0.0
  %1385 = vmatpush.msra.mxu0 0.0
  %1386 = vmatpush.msra.mxu0 0.0
  %1387 = vmatpush.msra.mxu0 0.0
  %1388 = vmatpush.msra.mxu0 %v1356
  %1389 = vmatpush.msra.mxu0 %v1354
  %1390 = vmatpush.msra.mxu0 %v1352
  %1391 = vmatpush.msra.mxu0 %v1350
  %1392 = vmatpush.msra.mxu0 %v1348
  %1393 = vmatpush.msra.mxu0 %v1346
  %1394 = vmatpush.msra.mxu0 %v1344
  %1395 = vmatpush.msra.mxu0 %v1342
  %1396 = vmatmul.f32.gmra.mxu0 %v1358
  %v1397 = vpop.f32.mrf.mxu0
  %v1398 = vadd.f32 0.0, %v1397
  %1399 = vdwg.mxu0
  %v1400 = vld [vmem:[%s226] sm:$0xf]
  %v1401 = vadd.f32 %v1400, %v1378
  %v1402 = vld [vmem:[#allocation2] sm:$0xf]
  %v1404 = vrot.slane %v1402, 2
  %v1406 = vadd.f32 %v1404, %v1398
  %v1407 = vxor.u32 %v1401, 2147483648
  %v1408 = vmul.f32 %v1407, 1.442695
  %v1409 = vpow.pop %v1408
  %v1410 = vadd.f32 %v1409, 1.0
  %v1411 = vrcp.pop %v1410
  %v1412 = vmul.f32 %v1410, %v1411
  %v1413 = vsub.f32 1.0, %v1412
  %v1414 = vmul.f32 %v1411, %v1413
  %v1415 = vadd.f32 %v1411, %v1414
  %vm1416 = vweird.f32 %v1410
  %vm1417 = vweird.f32 %v1411
  %vm1418 = vmor %vm1416, %vm1417
  %v1419 = vsel %vm1418, %v1411, %v1415
  %v1420 = vand.u32 2147483647, %v1410
  %vm1421 = vcmp.eq.f32.partialorder %v1420, 8.507059e+37
  %v1422 = vand.u32 %v1410, 2147483648
  %v1423 = vor.u32 1.1754944e-38, %v1422
  %v1424 = vsel %vm1421, %v1423, %v1419
  %v1425 = vmul.f32 1.0, %v1424
  %v1426 = vtanh.pop %v1401
  %v1427 = vmul.f32 %v1425, %v1270
  %1429 = vrot.lane.b32.xlu0 %v1426, 64
  %v1430 = vpop.permute.xlu0 %1429
  %v1432 = vmul.f32 %v1425, %v1430
  %1434 = vrot.lane.b32.xlu0 %v1432, 32
  %v1435 = vpop.permute.xlu0 %1434
  %v1437 = vadd.f32 %v1427, %v1435
  %v1438 = vtanh.pop %v1437
  %1440 = vrot.lane.b32.xlu0 %v1438, 64
  %v1441 = vpop.permute.xlu0 %1440
  %v1443 = vmul.f32 %v1425, %v1441
  %v1444 = vxor.u32 %v1406, 2147483648
  %v1445 = vmul.f32 %v1444, 1.442695
  %v1446 = vpow.pop %v1445
  %v1447 = vadd.f32 %v1446, 1.0
  %v1448 = vrcp.pop %v1447
  %v1449 = vmul.f32 %v1447, %v1448
  %v1450 = vsub.f32 1.0, %v1449
  %v1451 = vmul.f32 %v1448, %v1450
  %v1452 = vadd.f32 %v1448, %v1451
  %vm1453 = vweird.f32 %v1447
  %vm1454 = vweird.f32 %v1448
  %vm1455 = vmor %vm1453, %vm1454
  %v1456 = vsel %vm1455, %v1448, %v1452
  %v1457 = vand.u32 2147483647, %v1447
  %vm1458 = vcmp.eq.f32.partialorder %v1457, 8.507059e+37
  %v1459 = vand.u32 %v1447, 2147483648
  %v1460 = vor.u32 1.1754944e-38, %v1459
  %v1461 = vsel %vm1458, %v1460, %v1456
  %v1462 = vmul.f32 1.0, %v1461
  %v1463 = vtanh.pop %v1406
  %v1464 = vmul.f32 %v1462, %v1307
  %1466 = vrot.lane.b32.xlu0 %v1463, 64
  %v1467 = vpop.permute.xlu0 %1466
  %v1469 = vmul.f32 %v1462, %v1467
  %1471 = vrot.lane.b32.xlu0 %v1469, 32
  %v1472 = vpop.permute.xlu0 %1471
  %v1474 = vadd.f32 %v1464, %v1472
  %v1475 = vtanh.pop %v1474
  %1477 = vrot.lane.b32.xlu0 %v1475, 64
  %v1478 = vpop.permute.xlu0 %1477
  %v1480 = vmul.f32 %v1462, %v1478
  %1482 = vst [vmem:[#allocation1] ss:$4 sm:$0xff] %v1443
  %v1483 = vld.sshfl [vmem:[#allocation1] sm:$0xff pattern:$0x73625140]
  %1484 = vrot.lane.b32.xlu0 %v1483, 32
  %v1485 = vpop.permute.xlu0 %1484
  %s1487 = scalar_lea.vmem [#allocation3], 14
  %1488 = vst.msk [vmem:[%s1487] sm:$0x3] %vm312, %v1485
  %1490 = vst [vmem:[#allocation1] ss:$4 sm:$0xff] %v1480
  %v1491 = vld.sshfl [vmem:[#allocation1] sm:$0xff pattern:$0x73625140]
  %1492 = vrot.lane.b32.xlu0 %v1491, 32
  %v1493 = vpop.permute.xlu0 %1492
  %1495 = vst.msk [vmem:[#allocation4] sm:$0x3] %vm312, %v1493
  %v1496 = vld [vmem:[#allocation3] sm:$0x3]
  %v1497 = vld [vmem:[#allocation3 + $0x2] sm:$0x3]
  %v1498 = vld [vmem:[#allocation3 + $0x4] sm:$0x3]
  %v1499 = vld [vmem:[#allocation3 + $0x6] sm:$0x3]
  %v1500 = vld [vmem:[#allocation3 + $0x8] sm:$0x3]
  %v1501 = vld [vmem:[#allocation3 + $0xa] sm:$0x3]
  %v1502 = vld [vmem:[#allocation3 + $0xc] sm:$0x3]
  %v1503 = vld [vmem:[#allocation3 + $0xe] sm:$0x3]
  %1504 = vst.msk [vmem:[%s7] sm:$0x3] %vm312, %v1496
  %1505 = vst.msk [vmem:[%s7 + $0x2] sm:$0x3] %vm312, %v1497
  %1506 = vst.msk [vmem:[%s7 + $0x4] sm:$0x3] %vm312, %v1498
  %1507 = vst.msk [vmem:[%s7 + $0x6] sm:$0x3] %vm312, %v1499
  %1508 = vst.msk [vmem:[%s7 + $0x8] sm:$0x3] %vm312, %v1500
  %1509 = vst.msk [vmem:[%s7 + $0xa] sm:$0x3] %vm312, %v1501
  %1510 = vst.msk [vmem:[%s7 + $0xc] sm:$0x3] %vm312, %v1502
  %1511 = vst.msk [vmem:[%s7 + $0xe] sm:$0x3] %vm312, %v1503
  %v1512 = vld [vmem:[#allocation4] sm:$0x3]
  %v1513 = vld [vmem:[#allocation4 + $0x2] sm:$0x3]
  %v1514 = vld [vmem:[#allocation4 + $0x4] sm:$0x3]
  %v1515 = vld [vmem:[#allocation4 + $0x6] sm:$0x3]
  %v1516 = vld [vmem:[#allocation4 + $0x8] sm:$0x3]
  %v1517 = vld [vmem:[#allocation4 + $0xa] sm:$0x3]
  %v1518 = vld [vmem:[#allocation4 + $0xc] sm:$0x3]
  %v1519 = vld [vmem:[#allocation4 + $0xe] sm:$0x3]
  %1528 = vrot.lane.b32.xlu0 %v1512, 32
  %v1529 = vpop.permute.xlu0 %1528
  %1530 = vrot.lane.b32.xlu0 %v1513, 32
  %v1531 = vpop.permute.xlu0 %1530
  %1532 = vrot.lane.b32.xlu0 %v1514, 32
  %v1533 = vpop.permute.xlu0 %1532
  %1534 = vrot.lane.b32.xlu0 %v1515, 32
  %v1535 = vpop.permute.xlu0 %1534
  %1536 = vrot.lane.b32.xlu0 %v1516, 32
  %v1537 = vpop.permute.xlu0 %1536
  %1538 = vrot.lane.b32.xlu0 %v1517, 32
  %v1539 = vpop.permute.xlu0 %1538
  %1540 = vrot.lane.b32.xlu0 %v1518, 32
  %v1541 = vpop.permute.xlu0 %1540
  %1542 = vrot.lane.b32.xlu0 %v1519, 32
  %v1543 = vpop.permute.xlu0 %1542
  %vm1552 = vcmask 517376
  %1553 = vst.msk [vmem:[%s7] sm:$0x3] %vm1552, %v1529
  %1554 = vst.msk [vmem:[%s7 + $0x2] sm:$0x3] %vm1552, %v1531
  %1555 = vst.msk [vmem:[%s7 + $0x4] sm:$0x3] %vm1552, %v1533
  %1556 = vst.msk [vmem:[%s7 + $0x6] sm:$0x3] %vm1552, %v1535
  %1557 = vst.msk [vmem:[%s7 + $0x8] sm:$0x3] %vm1552, %v1537
  %1558 = vst.msk [vmem:[%s7 + $0xa] sm:$0x3] %vm1552, %v1539
  %1559 = vst.msk [vmem:[%s7 + $0xc] sm:$0x3] %vm1552, %v1541
  %1560 = vst.msk [vmem:[%s7 + $0xe] sm:$0x3] %vm1552, %v1543
  %v1561 = vld [vmem:[%s7] sm:$0x3]
  %v1562 = vld [vmem:[%s7 + $0x2] sm:$0x3]
  %v1563 = vld [vmem:[%s7 + $0x4] sm:$0x3]
  %v1564 = vld [vmem:[%s7 + $0x6] sm:$0x3]
  %v1565 = vld [vmem:[%s7 + $0x8] sm:$0x3]
  %v1566 = vld [vmem:[%s7 + $0xa] sm:$0x3]
  %v1567 = vld [vmem:[%s7 + $0xc] sm:$0x3]
  %v1568 = vld [vmem:[%s7 + $0xe] sm:$0x3]
  %v1569 = vld [vmem:[%s4] sm:$0xff]
  %v1570 = vld [vmem:[%s4 + $0x8] sm:$0xff]
  %v1571 = vld [vmem:[%s4 + $0x10] sm:$0xff]
  %v1572 = vld [vmem:[%s4 + $0x18] sm:$0xff]
  %v1573 = vld [vmem:[%s4 + $0x20] sm:$0xff]
  %v1574 = vld [vmem:[%s4 + $0x28] sm:$0xff]
  %v1575 = vld [vmem:[%s4 + $0x30] sm:$0xff]
  %v1576 = vld [vmem:[%s4 + $0x38] sm:$0xff]
  %v1577 = vld [vmem:[%s4 + $0x40] sm:$0xff]
  %v1578 = vld [vmem:[%s4 + $0x48] sm:$0xff]
  %v1579 = vld [vmem:[%s4 + $0x50] sm:$0xff]
  %v1580 = vld [vmem:[%s4 + $0x58] sm:$0xff]
  %v1581 = vld [vmem:[%s4 + $0x60] sm:$0xff]
  %v1582 = vld [vmem:[%s4 + $0x68] sm:$0xff]
  %v1583 = vld [vmem:[%s4 + $0x70] sm:$0xff]
  %v1584 = vld [vmem:[%s4 + $0x78] sm:$0xff]
  %v1585 = vld [vmem:[%s6] sm:$0x3]
  %v1587 = vperm.slane %v1585, 0
  %v1588 = vperm.slane %v1585, 1
  %1599 = vst [vmem:[#allocation1] ss:$4 sm:$0xff] %v1561
  %s1600 = scalar_lea.vmem [#allocation1], 1
  %1601 = vst [vmem:[%s1600] ss:$4 sm:$0xff] %v1562
  %s1602 = scalar_lea.vmem [#allocation1], 2
  %1603 = vst [vmem:[%s1602] ss:$4 sm:$0xff] %v1563
  %s1604 = scalar_lea.vmem [#allocation1], 3
  %1605 = vst [vmem:[%s1604] ss:$4 sm:$0xff] %v1564
  %s1606 = scalar_lea.vmem [#allocation1], 32
  %1607 = vst [vmem:[%s1606] ss:$4 sm:$0xff] %v1565
  %s1608 = scalar_lea.vmem [#allocation1], 33
  %1609 = vst [vmem:[%s1608] ss:$4 sm:$0xff] %v1566
  %s1610 = scalar_lea.vmem [#allocation1], 34
  %1611 = vst [vmem:[%s1610] ss:$4 sm:$0xff] %v1567
  %s1612 = scalar_lea.vmem [#allocation1], 35
  %1613 = vst [vmem:[%s1612] ss:$4 sm:$0xff] %v1568
  %v1614 = vld.sshfl [vmem:[#allocation1] sm:$0xff pattern:$0x73625140]
  %v1615 = vld.sshfl [vmem:[#allocation1 + $0x20] sm:$0xff pattern:$0x73625140]
  %v1616 = vsel %vm180, %v1614, 0
  %v1618 = vsel %vm180, %v1615, 0
  %1620 = vmatpush.msra.mxu0 0.0
  %1621 = vmatpush.msra.mxu0 0.0
  %1622 = vmatpush.msra.mxu0 0.0
  %1623 = vmatpush.msra.mxu0 0.0
  %1624 = vmatpush.msra.mxu0 0.0
  %1625 = vmatpush.msra.mxu0 0.0
  %1626 = vmatpush.msra.mxu0 0.0
  %1627 = vmatpush.msra.mxu0 0.0
  %1628 = vmatpush.msra.mxu0 %v1583
  %1629 = vmatpush.msra.mxu0 %v1581
  %1630 = vmatpush.msra.mxu0 %v1579
  %1631 = vmatpush.msra.mxu0 %v1577
  %1632 = vmatpush.msra.mxu0 %v1575
  %1633 = vmatpush.msra.mxu0 %v1573
  %1634 = vmatpush.msra.mxu0 %v1571
  %1635 = vmatpush.msra.mxu0 %v1569
  %1636 = vmatmul.f32.gmra.mxu0 %v1616
  %v1637 = vpop.f32.mrf.mxu0
  %v1638 = vadd.f32 %v1587, %v1637
  %1639 = vmatmul.f32.gmra.mxu0 %v1618
  %v1640 = vpop.f32.mrf.mxu0
  %v1641 = vadd.f32 %v1587, %v1640
  %1642 = vdwg.mxu0
  %1643 = vmatpush.msra.mxu0 0.0
  %1644 = vmatpush.msra.mxu0 0.0
  %1645 = vmatpush.msra.mxu0 0.0
  %1646 = vmatpush.msra.mxu0 0.0
  %1647 = vmatpush.msra.mxu0 0.0
  %1648 = vmatpush.msra.mxu0 0.0
  %1649 = vmatpush.msra.mxu0 0.0
  %1650 = vmatpush.msra.mxu0 0.0
  %1651 = vmatpush.msra.mxu0 %v1584
  %1652 = vmatpush.msra.mxu0 %v1582
  %1653 = vmatpush.msra.mxu0 %v1580
  %1654 = vmatpush.msra.mxu0 %v1578
  %1655 = vmatpush.msra.mxu0 %v1576
  %1656 = vmatpush.msra.mxu0 %v1574
  %1657 = vmatpush.msra.mxu0 %v1572
  %1658 = vmatpush.msra.mxu0 %v1570
  %1659 = vmatmul.f32.gmra.mxu0 %v1616
  %v1660 = vpop.f32.mrf.mxu0
  %v1661 = vadd.f32 %v1588, %v1660
  %1662 = vmatmul.f32.gmra.mxu0 %v1618
  %v1663 = vpop.f32.mrf.mxu0
  %v1664 = vadd.f32 %v1588, %v1663
  %1665 = vdwg.mxu0
  %v1670 = vrot.slane %v1661, 6
  %v1671 = vrot.slane %v1664, 6
  %v1672 = vsel %vm130, %v1638, %v1670
  %v1673 = vsel %vm132, %v1638, %v1670
  %v1674 = vrot.slane %v1673, 2
  %v1675 = vsel %vm135, %v1638, %v1670
  %v1676 = vrot.slane %v1675, 4
  %v1677 = vsel %vm138, %v1670, %v1638
  %v1678 = vrot.slane %v1677, 6
  %v1679 = vsel %vm130, %v1641, %v1671
  %v1680 = vsel %vm132, %v1641, %v1671
  %v1681 = vrot.slane %v1680, 2
  %v1682 = vsel %vm135, %v1641, %v1671
  %v1683 = vrot.slane %v1682, 4
  %v1684 = vsel %vm138, %v1671, %v1641
  %v1685 = vrot.slane %v1684, 6
  %1694 = vst [vmem:[#allocation2] sm:$0xf] %v1672
  %1695 = vst [vmem:[#allocation2 + $0x4] sm:$0xf] %v1674
  %1696 = vst [vmem:[#allocation2 + $0x8] sm:$0xf] %v1676
  %1697 = vst [vmem:[#allocation2 + $0xc] sm:$0xf] %v1678
  %1698 = vst [vmem:[#allocation2 + $0x10] sm:$0xf] %v1679
  %1699 = vst [vmem:[#allocation2 + $0x14] sm:$0xf] %v1681
  %1700 = vst [vmem:[#allocation2 + $0x18] sm:$0xf] %v1683
  %1701 = vst [vmem:[#allocation2 + $0x1c] sm:$0xf] %v1685
  %v1702 = vld [vmem:[%s5] sm:$0xff]
  %v1703 = vld [vmem:[%s5 + $0x8] sm:$0xff]
  %v1704 = vld [vmem:[%s5 + $0x10] sm:$0xff]
  %v1705 = vld [vmem:[%s5 + $0x18] sm:$0xff]
  %v1706 = vld [vmem:[%s5 + $0x20] sm:$0xff]
  %v1707 = vld [vmem:[%s5 + $0x28] sm:$0xff]
  %v1708 = vld [vmem:[%s5 + $0x30] sm:$0xff]
  %v1709 = vld [vmem:[%s5 + $0x38] sm:$0xff]
  %v1710 = vld [vmem:[%s5 + $0x40] sm:$0xff]
  %v1711 = vld [vmem:[%s5 + $0x48] sm:$0xff]
  %v1712 = vld [vmem:[%s5 + $0x50] sm:$0xff]
  %v1713 = vld [vmem:[%s5 + $0x58] sm:$0xff]
  %v1714 = vld [vmem:[%s5 + $0x60] sm:$0xff]
  %v1715 = vld [vmem:[%s5 + $0x68] sm:$0xff]
  %v1716 = vld [vmem:[%s5 + $0x70] sm:$0xff]
  %v1717 = vld [vmem:[%s5 + $0x78] sm:$0xff]
  %1718 = vmatpush.msra.mxu0 0.0
  %1719 = vmatpush.msra.mxu0 0.0
  %1720 = vmatpush.msra.mxu0 0.0
  %1721 = vmatpush.msra.mxu0 0.0
  %1722 = vmatpush.msra.mxu0 0.0
  %1723 = vmatpush.msra.mxu0 0.0
  %1724 = vmatpush.msra.mxu0 0.0
  %1725 = vmatpush.msra.mxu0 0.0
  %1726 = vmatpush.msra.mxu0 %v1716
  %1727 = vmatpush.msra.mxu0 %v1714
  %1728 = vmatpush.msra.mxu0 %v1712
  %1729 = vmatpush.msra.mxu0 %v1710
  %1730 = vmatpush.msra.mxu0 %v1708
  %1731 = vmatpush.msra.mxu0 %v1706
  %1732 = vmatpush.msra.mxu0 %v1704
  %1733 = vmatpush.msra.mxu0 %v1702
  %1734 = vmatmul.f32.gmra.mxu0 %v182
  %v1735 = vpop.f32.mrf.mxu0
  %v1736 = vadd.f32 0.0, %v1735
  %1737 = vdwg.mxu0
  %1738 = vmatpush.msra.mxu0 0.0
  %1739 = vmatpush.msra.mxu0 0.0
  %1740 = vmatpush.msra.mxu0 0.0
  %1741 = vmatpush.msra.mxu0 0.0
  %1742 = vmatpush.msra.mxu0 0.0
  %1743 = vmatpush.msra.mxu0 0.0
  %1744 = vmatpush.msra.mxu0 0.0
  %1745 = vmatpush.msra.mxu0 0.0
  %1746 = vmatpush.msra.mxu0 %v1717
  %1747 = vmatpush.msra.mxu0 %v1715
  %1748 = vmatpush.msra.mxu0 %v1713
  %1749 = vmatpush.msra.mxu0 %v1711
  %1750 = vmatpush.msra.mxu0 %v1709
  %1751 = vmatpush.msra.mxu0 %v1707
  %1752 = vmatpush.msra.mxu0 %v1705
  %1753 = vmatpush.msra.mxu0 %v1703
  %1754 = vmatmul.f32.gmra.mxu0 %v182
  %v1755 = vpop.f32.mrf.mxu0
  %v1756 = vadd.f32 0.0, %v1755
  %1757 = vdwg.mxu0
  %v1758 = vld [vmem:[#allocation2] sm:$0xf]
  %v1759 = vadd.f32 %v1758, %v1736
  %v1760 = vld [vmem:[%s226] sm:$0xf]
  %v1762 = vrot.slane %v1760, 2
  %v1764 = vadd.f32 %v1762, %v1756
  %v1765 = vxor.u32 %v1759, 2147483648
  %v1766 = vmul.f32 %v1765, 1.442695
  %v1767 = vpow.pop %v1766
  %v1768 = vadd.f32 %v1767, 1.0
  %v1769 = vrcp.pop %v1768
  %v1770 = vmul.f32 %v1768, %v1769
  %v1771 = vsub.f32 1.0, %v1770
  %v1772 = vmul.f32 %v1769, %v1771
  %v1773 = vadd.f32 %v1769, %v1772
  %vm1774 = vweird.f32 %v1768
  %vm1775 = vweird.f32 %v1769
  %vm1776 = vmor %vm1774, %vm1775
  %v1777 = vsel %vm1776, %v1769, %v1773
  %v1778 = vand.u32 2147483647, %v1768
  %vm1779 = vcmp.eq.f32.partialorder %v1778, 8.507059e+37
  %v1780 = vand.u32 %v1768, 2147483648
  %v1781 = vor.u32 1.1754944e-38, %v1780
  %v1782 = vsel %vm1779, %v1781, %v1777
  %v1783 = vmul.f32 1.0, %v1782
  %v1784 = vtanh.pop %v1759
  %v1785 = vmul.f32 %v1783, 0.0
  %1787 = vrot.lane.b32.xlu0 %v1784, 64
  %v1788 = vpop.permute.xlu0 %1787
  %v1790 = vmul.f32 %v1783, %v1788
  %1792 = vrot.lane.b32.xlu0 %v1790, 32
  %v1793 = vpop.permute.xlu0 %1792
  %v1795 = vadd.f32 %v1785, %v1793
  %v1796 = vtanh.pop %v1795
  %1798 = vrot.lane.b32.xlu0 %v1796, 64
  %v1799 = vpop.permute.xlu0 %1798
  %v1801 = vmul.f32 %v1783, %v1799
  %v1802 = vxor.u32 %v1764, 2147483648
  %v1803 = vmul.f32 %v1802, 1.442695
  %v1804 = vpow.pop %v1803
  %v1805 = vadd.f32 %v1804, 1.0
  %v1806 = vrcp.pop %v1805
  %v1807 = vmul.f32 %v1805, %v1806
  %v1808 = vsub.f32 1.0, %v1807
  %v1809 = vmul.f32 %v1806, %v1808
  %v1810 = vadd.f32 %v1806, %v1809
  %vm1811 = vweird.f32 %v1805
  %vm1812 = vweird.f32 %v1806
  %vm1813 = vmor %vm1811, %vm1812
  %v1814 = vsel %vm1813, %v1806, %v1810
  %v1815 = vand.u32 2147483647, %v1805
  %vm1816 = vcmp.eq.f32.partialorder %v1815, 8.507059e+37
  %v1817 = vand.u32 %v1805, 2147483648
  %v1818 = vor.u32 1.1754944e-38, %v1817
  %v1819 = vsel %vm1816, %v1818, %v1814
  %v1820 = vmul.f32 1.0, %v1819
  %v1821 = vtanh.pop %v1764
  %v1822 = vmul.f32 %v1820, 0.0
  %1824 = vrot.lane.b32.xlu0 %v1821, 64
  %v1825 = vpop.permute.xlu0 %1824
  %v1827 = vmul.f32 %v1820, %v1825
  %1829 = vrot.lane.b32.xlu0 %v1827, 32
  %v1830 = vpop.permute.xlu0 %1829
  %v1832 = vadd.f32 %v1822, %v1830
  %v1833 = vtanh.pop %v1832
  %1835 = vrot.lane.b32.xlu0 %v1833, 64
  %v1836 = vpop.permute.xlu0 %1835
  %v1838 = vmul.f32 %v1820, %v1836
  %1840 = vst [vmem:[#allocation1] ss:$4 sm:$0xff] %v1801
  %v1841 = vld.sshfl [vmem:[#allocation1] sm:$0xff pattern:$0x73625140]
  %1842 = vrot.lane.b32.xlu0 %v1841, 32
  %v1843 = vpop.permute.xlu0 %1842
  %1845 = vst.msk [vmem:[#allocation3] sm:$0x3] %vm312, %v1843
  %1847 = vst [vmem:[#allocation1] ss:$4 sm:$0xff] %v1838
  %v1848 = vld.sshfl [vmem:[#allocation1] sm:$0xff pattern:$0x73625140]
  %1849 = vrot.lane.b32.xlu0 %v1848, 32
  %v1850 = vpop.permute.xlu0 %1849
  %1852 = vst.msk [vmem:[%s320] sm:$0x3] %vm312, %v1850
  %1853 = vst [vmem:[#allocation1] ss:$4 sm:$0xff] %v1801
  %v1854 = vld.sshfl [vmem:[#allocation1] sm:$0xff pattern:$0x73625140]
  %1855 = vrot.lane.b32.xlu0 %v1854, 32
  %v1856 = vpop.permute.xlu0 %1855
  %1858 = vst [vmem:[#allocation1] ss:$4 sm:$0xff] %v1838
  %v1859 = vld.sshfl [vmem:[#allocation1] sm:$0xff pattern:$0x73625140]
  %1860 = vrot.lane.b32.xlu0 %v1859, 64
  %v1861 = vpop.permute.xlu0 %1860
  %v1863 = vsel %vm73, %v1856, %v1861
  %v1864 = vld [vmem:[%s5] sm:$0xff]
  %v1865 = vld [vmem:[%s5 + $0x8] sm:$0xff]
  %v1866 = vld [vmem:[%s5 + $0x10] sm:$0xff]
  %v1867 = vld [vmem:[%s5 + $0x18] sm:$0xff]
  %v1868 = vld [vmem:[%s5 + $0x20] sm:$0xff]
  %v1869 = vld [vmem:[%s5 + $0x28] sm:$0xff]
  %v1870 = vld [vmem:[%s5 + $0x30] sm:$0xff]
  %v1871 = vld [vmem:[%s5 + $0x38] sm:$0xff]
  %v1872 = vld [vmem:[%s5 + $0x40] sm:$0xff]
  %v1873 = vld [vmem:[%s5 + $0x48] sm:$0xff]
  %v1874 = vld [vmem:[%s5 + $0x50] sm:$0xff]
  %v1875 = vld [vmem:[%s5 + $0x58] sm:$0xff]
  %v1876 = vld [vmem:[%s5 + $0x60] sm:$0xff]
  %v1877 = vld [vmem:[%s5 + $0x68] sm:$0xff]
  %v1878 = vld [vmem:[%s5 + $0x70] sm:$0xff]
  %v1879 = vld [vmem:[%s5 + $0x78] sm:$0xff]
  %v1881 = vsel %vm180, %v1863, 0
  %1883 = vmatpush.msra.mxu0 0.0
  %1884 = vmatpush.msra.mxu0 0.0
  %1885 = vmatpush.msra.mxu0 0.0
  %1886 = vmatpush.msra.mxu0 0.0
  %1887 = vmatpush.msra.mxu0 0.0
  %1888 = vmatpush.msra.mxu0 0.0
  %1889 = vmatpush.msra.mxu0 0.0
  %1890 = vmatpush.msra.mxu0 0.0
  %1891 = vmatpush.msra.mxu0 %v1878
  %1892 = vmatpush.msra.mxu0 %v1876
  %1893 = vmatpush.msra.mxu0 %v1874
  %1894 = vmatpush.msra.mxu0 %v1872
  %1895 = vmatpush.msra.mxu0 %v1870
  %1896 = vmatpush.msra.mxu0 %v1868
  %1897 = vmatpush.msra.mxu0 %v1866
  %1898 = vmatpush.msra.mxu0 %v1864
  %1899 = vmatmul.f32.gmra.mxu0 %v1881
  %v1900 = vpop.f32.mrf.mxu0
  %v1901 = vadd.f32 0.0, %v1900
  %1902 = vdwg.mxu0
  %1903 = vmatpush.msra.mxu0 0.0
  %1904 = vmatpush.msra.mxu0 0.0
  %1905 = vmatpush.msra.mxu0 0.0
  %1906 = vmatpush.msra.mxu0 0.0
  %1907 = vmatpush.msra.mxu0 0.0
  %1908 = vmatpush.msra.mxu0 0.0
  %1909 = vmatpush.msra.mxu0 0.0
  %1910 = vmatpush.msra.mxu0 0.0
  %1911 = vmatpush.msra.mxu0 %v1879
  %1912 = vmatpush.msra.mxu0 %v1877
  %1913 = vmatpush.msra.mxu0 %v1875
  %1914 = vmatpush.msra.mxu0 %v1873
  %1915 = vmatpush.msra.mxu0 %v1871
  %1916 = vmatpush.msra.mxu0 %v1869
  %1917 = vmatpush.msra.mxu0 %v1867
  %1918 = vmatpush.msra.mxu0 %v1865
  %1919 = vmatmul.f32.gmra.mxu0 %v1881
  %v1920 = vpop.f32.mrf.mxu0
  %v1921 = vadd.f32 0.0, %v1920
  %1922 = vdwg.mxu0
  %v1923 = vld [vmem:[%s392] sm:$0xf]
  %v1924 = vadd.f32 %v1923, %v1901
  %v1925 = vld [vmem:[%s395] sm:$0xf]
  %v1927 = vrot.slane %v1925, 2
  %v1929 = vadd.f32 %v1927, %v1921
  %v1930 = vxor.u32 %v1924, 2147483648
  %v1931 = vmul.f32 %v1930, 1.442695
  %v1932 = vpow.pop %v1931
  %v1933 = vadd.f32 %v1932, 1.0
  %v1934 = vrcp.pop %v1933
  %v1935 = vmul.f32 %v1933, %v1934
  %v1936 = vsub.f32 1.0, %v1935
  %v1937 = vmul.f32 %v1934, %v1936
  %v1938 = vadd.f32 %v1934, %v1937
  %vm1939 = vweird.f32 %v1933
  %vm1940 = vweird.f32 %v1934
  %vm1941 = vmor %vm1939, %vm1940
  %v1942 = vsel %vm1941, %v1934, %v1938
  %v1943 = vand.u32 2147483647, %v1933
  %vm1944 = vcmp.eq.f32.partialorder %v1943, 8.507059e+37
  %v1945 = vand.u32 %v1933, 2147483648
  %v1946 = vor.u32 1.1754944e-38, %v1945
  %v1947 = vsel %vm1944, %v1946, %v1942
  %v1948 = vmul.f32 1.0, %v1947
  %v1949 = vtanh.pop %v1924
  %v1950 = vmul.f32 %v1948, %v1795
  %1952 = vrot.lane.b32.xlu0 %v1949, 64
  %v1953 = vpop.permute.xlu0 %1952
  %v1955 = vmul.f32 %v1948, %v1953
  %1957 = vrot.lane.b32.xlu0 %v1955, 32
  %v1958 = vpop.permute.xlu0 %1957
  %v1960 = vadd.f32 %v1950, %v1958
  %v1961 = vtanh.pop %v1960
  %1963 = vrot.lane.b32.xlu0 %v1961, 64
  %v1964 = vpop.permute.xlu0 %1963
  %v1966 = vmul.f32 %v1948, %v1964
  %v1967 = vxor.u32 %v1929, 2147483648
  %v1968 = vmul.f32 %v1967, 1.442695
  %v1969 = vpow.pop %v1968
  %v1970 = vadd.f32 %v1969, 1.0
  %v1971 = vrcp.pop %v1970
  %v1972 = vmul.f32 %v1970, %v1971
  %v1973 = vsub.f32 1.0, %v1972
  %v1974 = vmul.f32 %v1971, %v1973
  %v1975 = vadd.f32 %v1971, %v1974
  %vm1976 = vweird.f32 %v1970
  %vm1977 = vweird.f32 %v1971
  %vm1978 = vmor %vm1976, %vm1977
  %v1979 = vsel %vm1978, %v1971, %v1975
  %v1980 = vand.u32 2147483647, %v1970
  %vm1981 = vcmp.eq.f32.partialorder %v1980, 8.507059e+37
  %v1982 = vand.u32 %v1970, 2147483648
  %v1983 = vor.u32 1.1754944e-38, %v1982
  %v1984 = vsel %vm1981, %v1983, %v1979
  %v1985 = vmul.f32 1.0, %v1984
  %v1986 = vtanh.pop %v1929
  %v1987 = vmul.f32 %v1985, %v1832
  %1989 = vrot.lane.b32.xlu0 %v1986, 64
  %v1990 = vpop.permute.xlu0 %1989
  %v1992 = vmul.f32 %v1985, %v1990
  %1994 = vrot.lane.b32.xlu0 %v1992, 32
  %v1995 = vpop.permute.xlu0 %1994
  %v1997 = vadd.f32 %v1987, %v1995
  %v1998 = vtanh.pop %v1997
  %2000 = vrot.lane.b32.xlu0 %v1998, 64
  %v2001 = vpop.permute.xlu0 %2000
  %v2003 = vmul.f32 %v1985, %v2001
  %2005 = vst [vmem:[#allocation1] ss:$4 sm:$0xff] %v1966
  %v2006 = vld.sshfl [vmem:[#allocation1] sm:$0xff pattern:$0x73625140]
  %2007 = vrot.lane.b32.xlu0 %v2006, 32
  %v2008 = vpop.permute.xlu0 %2007
  %2010 = vst.msk [vmem:[%s481] sm:$0x3] %vm312, %v2008
  %2012 = vst [vmem:[#allocation1] ss:$4 sm:$0xff] %v2003
  %v2013 = vld.sshfl [vmem:[#allocation1] sm:$0xff pattern:$0x73625140]
  %2014 = vrot.lane.b32.xlu0 %v2013, 32
  %v2015 = vpop.permute.xlu0 %2014
  %2017 = vst.msk [vmem:[%s489] sm:$0x3] %vm312, %v2015
  %2018 = vst [vmem:[#allocation1] ss:$4 sm:$0xff] %v1966
  %v2019 = vld.sshfl [vmem:[#allocation1] sm:$0xff pattern:$0x73625140]
  %2020 = vrot.lane.b32.xlu0 %v2019, 32
  %v2021 = vpop.permute.xlu0 %2020
  %2023 = vst [vmem:[#allocation1] ss:$4 sm:$0xff] %v2003
  %v2024 = vld.sshfl [vmem:[#allocation1] sm:$0xff pattern:$0x73625140]
  %2025 = vrot.lane.b32.xlu0 %v2024, 64
  %v2026 = vpop.permute.xlu0 %2025
  %v2028 = vsel %vm73, %v2021, %v2026
  %v2029 = vld [vmem:[%s5] sm:$0xff]
  %v2030 = vld [vmem:[%s5 + $0x8] sm:$0xff]
  %v2031 = vld [vmem:[%s5 + $0x10] sm:$0xff]
  %v2032 = vld [vmem:[%s5 + $0x18] sm:$0xff]
  %v2033 = vld [vmem:[%s5 + $0x20] sm:$0xff]
  %v2034 = vld [vmem:[%s5 + $0x28] sm:$0xff]
  %v2035 = vld [vmem:[%s5 + $0x30] sm:$0xff]
  %v2036 = vld [vmem:[%s5 + $0x38] sm:$0xff]
  %v2037 = vld [vmem:[%s5 + $0x40] sm:$0xff]
  %v2038 = vld [vmem:[%s5 + $0x48] sm:$0xff]
  %v2039 = vld [vmem:[%s5 + $0x50] sm:$0xff]
  %v2040 = vld [vmem:[%s5 + $0x58] sm:$0xff]
  %v2041 = vld [vmem:[%s5 + $0x60] sm:$0xff]
  %v2042 = vld [vmem:[%s5 + $0x68] sm:$0xff]
  %v2043 = vld [vmem:[%s5 + $0x70] sm:$0xff]
  %v2044 = vld [vmem:[%s5 + $0x78] sm:$0xff]
  %v2046 = vsel %vm180, %v2028, 0
  %2048 = vmatpush.msra.mxu0 0.0
  %2049 = vmatpush.msra.mxu0 0.0
  %2050 = vmatpush.msra.mxu0 0.0
  %2051 = vmatpush.msra.mxu0 0.0
  %2052 = vmatpush.msra.mxu0 0.0
  %2053 = vmatpush.msra.mxu0 0.0
  %2054 = vmatpush.msra.mxu0 0.0
  %2055 = vmatpush.msra.mxu0 0.0
  %2056 = vmatpush.msra.mxu0 %v2043
  %2057 = vmatpush.msra.mxu0 %v2041
  %2058 = vmatpush.msra.mxu0 %v2039
  %2059 = vmatpush.msra.mxu0 %v2037
  %2060 = vmatpush.msra.mxu0 %v2035
  %2061 = vmatpush.msra.mxu0 %v2033
  %2062 = vmatpush.msra.mxu0 %v2031
  %2063 = vmatpush.msra.mxu0 %v2029
  %2064 = vmatmul.f32.gmra.mxu0 %v2046
  %v2065 = vpop.f32.mrf.mxu0
  %v2066 = vadd.f32 0.0, %v2065
  %2067 = vdwg.mxu0
  %2068 = vmatpush.msra.mxu0 0.0
  %2069 = vmatpush.msra.mxu0 0.0
  %2070 = vmatpush.msra.mxu0 0.0
  %2071 = vmatpush.msra.mxu0 0.0
  %2072 = vmatpush.msra.mxu0 0.0
  %2073 = vmatpush.msra.mxu0 0.0
  %2074 = vmatpush.msra.mxu0 0.0
  %2075 = vmatpush.msra.mxu0 0.0
  %2076 = vmatpush.msra.mxu0 %v2044
  %2077 = vmatpush.msra.mxu0 %v2042
  %2078 = vmatpush.msra.mxu0 %v2040
  %2079 = vmatpush.msra.mxu0 %v2038
  %2080 = vmatpush.msra.mxu0 %v2036
  %2081 = vmatpush.msra.mxu0 %v2034
  %2082 = vmatpush.msra.mxu0 %v2032
  %2083 = vmatpush.msra.mxu0 %v2030
  %2084 = vmatmul.f32.gmra.mxu0 %v2046
  %v2085 = vpop.f32.mrf.mxu0
  %v2086 = vadd.f32 0.0, %v2085
  %2087 = vdwg.mxu0
  %v2088 = vld [vmem:[%s561] sm:$0xf]
  %v2089 = vadd.f32 %v2088, %v2066
  %v2090 = vld [vmem:[%s564] sm:$0xf]
  %v2092 = vrot.slane %v2090, 2
  %v2094 = vadd.f32 %v2092, %v2086
  %v2095 = vxor.u32 %v2089, 2147483648
  %v2096 = vmul.f32 %v2095, 1.442695
  %v2097 = vpow.pop %v2096
  %v2098 = vadd.f32 %v2097, 1.0
  %v2099 = vrcp.pop %v2098
  %v2100 = vmul.f32 %v2098, %v2099
  %v2101 = vsub.f32 1.0, %v2100
  %v2102 = vmul.f32 %v2099, %v2101
  %v2103 = vadd.f32 %v2099, %v2102
  %vm2104 = vweird.f32 %v2098
  %vm2105 = vweird.f32 %v2099
  %vm2106 = vmor %vm2104, %vm2105
  %v2107 = vsel %vm2106, %v2099, %v2103
  %v2108 = vand.u32 2147483647, %v2098
  %vm2109 = vcmp.eq.f32.partialorder %v2108, 8.507059e+37
  %v2110 = vand.u32 %v2098, 2147483648
  %v2111 = vor.u32 1.1754944e-38, %v2110
  %v2112 = vsel %vm2109, %v2111, %v2107
  %v2113 = vmul.f32 1.0, %v2112
  %v2114 = vtanh.pop %v2089
  %v2115 = vmul.f32 %v2113, %v1960
  %2117 = vrot.lane.b32.xlu0 %v2114, 64
  %v2118 = vpop.permute.xlu0 %2117
  %v2120 = vmul.f32 %v2113, %v2118
  %2122 = vrot.lane.b32.xlu0 %v2120, 32
  %v2123 = vpop.permute.xlu0 %2122
  %v2125 = vadd.f32 %v2115, %v2123
  %v2126 = vtanh.pop %v2125
  %2128 = vrot.lane.b32.xlu0 %v2126, 64
  %v2129 = vpop.permute.xlu0 %2128
  %v2131 = vmul.f32 %v2113, %v2129
  %v2132 = vxor.u32 %v2094, 2147483648
  %v2133 = vmul.f32 %v2132, 1.442695
  %v2134 = vpow.pop %v2133
  %v2135 = vadd.f32 %v2134, 1.0
  %v2136 = vrcp.pop %v2135
  %v2137 = vmul.f32 %v2135, %v2136
  %v2138 = vsub.f32 1.0, %v2137
  %v2139 = vmul.f32 %v2136, %v2138
  %v2140 = vadd.f32 %v2136, %v2139
  %vm2141 = vweird.f32 %v2135
  %vm2142 = vweird.f32 %v2136
  %vm2143 = vmor %vm2141, %vm2142
  %v2144 = vsel %vm2143, %v2136, %v2140
  %v2145 = vand.u32 2147483647, %v2135
  %vm2146 = vcmp.eq.f32.partialorder %v2145, 8.507059e+37
  %v2147 = vand.u32 %v2135, 2147483648
  %v2148 = vor.u32 1.1754944e-38, %v2147
  %v2149 = vsel %vm2146, %v2148, %v2144
  %v2150 = vmul.f32 1.0, %v2149
  %v2151 = vtanh.pop %v2094
  %v2152 = vmul.f32 %v2150, %v1997
  %2154 = vrot.lane.b32.xlu0 %v2151, 64
  %v2155 = vpop.permute.xlu0 %2154
  %v2157 = vmul.f32 %v2150, %v2155
  %2159 = vrot.lane.b32.xlu0 %v2157, 32
  %v2160 = vpop.permute.xlu0 %2159
  %v2162 = vadd.f32 %v2152, %v2160
  %v2163 = vtanh.pop %v2162
  %2165 = vrot.lane.b32.xlu0 %v2163, 64
  %v2166 = vpop.permute.xlu0 %2165
  %v2168 = vmul.f32 %v2150, %v2166
  %2170 = vst [vmem:[#allocation1] ss:$4 sm:$0xff] %v2131
  %v2171 = vld.sshfl [vmem:[#allocation1] sm:$0xff pattern:$0x73625140]
  %2172 = vrot.lane.b32.xlu0 %v2171, 32
  %v2173 = vpop.permute.xlu0 %2172
  %2175 = vst.msk [vmem:[%s650] sm:$0x3] %vm312, %v2173
  %2177 = vst [vmem:[#allocation1] ss:$4 sm:$0xff] %v2168
  %v2178 = vld.sshfl [vmem:[#allocation1] sm:$0xff pattern:$0x73625140]
  %2179 = vrot.lane.b32.xlu0 %v2178, 32
  %v2180 = vpop.permute.xlu0 %2179
  %2182 = vst.msk [vmem:[%s658] sm:$0x3] %vm312, %v2180
  %2183 = vst [vmem:[#allocation1] ss:$4 sm:$0xff] %v2131
  %v2184 = vld.sshfl [vmem:[#allocation1] sm:$0xff pattern:$0x73625140]
  %2185 = vrot.lane.b32.xlu0 %v2184, 32
  %v2186 = vpop.permute.xlu0 %2185
  %2188 = vst [vmem:[#allocation1] ss:$4 sm:$0xff] %v2168
  %v2189 = vld.sshfl [vmem:[#allocation1] sm:$0xff pattern:$0x73625140]
  %2190 = vrot.lane.b32.xlu0 %v2189, 64
  %v2191 = vpop.permute.xlu0 %2190
  %v2193 = vsel %vm73, %v2186, %v2191
  %v2194 = vld [vmem:[%s5] sm:$0xff]
  %v2195 = vld [vmem:[%s5 + $0x8] sm:$0xff]
  %v2196 = vld [vmem:[%s5 + $0x10] sm:$0xff]
  %v2197 = vld [vmem:[%s5 + $0x18] sm:$0xff]
  %v2198 = vld [vmem:[%s5 + $0x20] sm:$0xff]
  %v2199 = vld [vmem:[%s5 + $0x28] sm:$0xff]
  %v2200 = vld [vmem:[%s5 + $0x30] sm:$0xff]
  %v2201 = vld [vmem:[%s5 + $0x38] sm:$0xff]
  %v2202 = vld [vmem:[%s5 + $0x40] sm:$0xff]
  %v2203 = vld [vmem:[%s5 + $0x48] sm:$0xff]
  %v2204 = vld [vmem:[%s5 + $0x50] sm:$0xff]
  %v2205 = vld [vmem:[%s5 + $0x58] sm:$0xff]
  %v2206 = vld [vmem:[%s5 + $0x60] sm:$0xff]
  %v2207 = vld [vmem:[%s5 + $0x68] sm:$0xff]
  %v2208 = vld [vmem:[%s5 + $0x70] sm:$0xff]
  %v2209 = vld [vmem:[%s5 + $0x78] sm:$0xff]
  %v2211 = vsel %vm180, %v2193, 0
  %2213 = vmatpush.msra.mxu0 0.0
  %2214 = vmatpush.msra.mxu0 0.0
  %2215 = vmatpush.msra.mxu0 0.0
  %2216 = vmatpush.msra.mxu0 0.0
  %2217 = vmatpush.msra.mxu0 0.0
  %2218 = vmatpush.msra.mxu0 0.0
  %2219 = vmatpush.msra.mxu0 0.0
  %2220 = vmatpush.msra.mxu0 0.0
  %2221 = vmatpush.msra.mxu0 %v2208
  %2222 = vmatpush.msra.mxu0 %v2206
  %2223 = vmatpush.msra.mxu0 %v2204
  %2224 = vmatpush.msra.mxu0 %v2202
  %2225 = vmatpush.msra.mxu0 %v2200
  %2226 = vmatpush.msra.mxu0 %v2198
  %2227 = vmatpush.msra.mxu0 %v2196
  %2228 = vmatpush.msra.mxu0 %v2194
  %2229 = vmatmul.f32.gmra.mxu0 %v2211
  %v2230 = vpop.f32.mrf.mxu0
  %v2231 = vadd.f32 0.0, %v2230
  %2232 = vdwg.mxu0
  %2233 = vmatpush.msra.mxu0 0.0
  %2234 = vmatpush.msra.mxu0 0.0
  %2235 = vmatpush.msra.mxu0 0.0
  %2236 = vmatpush.msra.mxu0 0.0
  %2237 = vmatpush.msra.mxu0 0.0
  %2238 = vmatpush.msra.mxu0 0.0
  %2239 = vmatpush.msra.mxu0 0.0
  %2240 = vmatpush.msra.mxu0 0.0
  %2241 = vmatpush.msra.mxu0 %v2209
  %2242 = vmatpush.msra.mxu0 %v2207
  %2243 = vmatpush.msra.mxu0 %v2205
  %2244 = vmatpush.msra.mxu0 %v2203
  %2245 = vmatpush.msra.mxu0 %v2201
  %2246 = vmatpush.msra.mxu0 %v2199
  %2247 = vmatpush.msra.mxu0 %v2197
  %2248 = vmatpush.msra.mxu0 %v2195
  %2249 = vmatmul.f32.gmra.mxu0 %v2211
  %v2250 = vpop.f32.mrf.mxu0
  %v2251 = vadd.f32 0.0, %v2250
  %2252 = vdwg.mxu0
  %v2253 = vld [vmem:[%s730] sm:$0xf]
  %v2254 = vadd.f32 %v2253, %v2231
  %v2255 = vld [vmem:[%s733] sm:$0xf]
  %v2257 = vrot.slane %v2255, 2
  %v2259 = vadd.f32 %v2257, %v2251
  %v2260 = vxor.u32 %v2254, 2147483648
  %v2261 = vmul.f32 %v2260, 1.442695
  %v2262 = vpow.pop %v2261
  %v2263 = vadd.f32 %v2262, 1.0
  %v2264 = vrcp.pop %v2263
  %v2265 = vmul.f32 %v2263, %v2264
  %v2266 = vsub.f32 1.0, %v2265
  %v2267 = vmul.f32 %v2264, %v2266
  %v2268 = vadd.f32 %v2264, %v2267
  %vm2269 = vweird.f32 %v2263
  %vm2270 = vweird.f32 %v2264
  %vm2271 = vmor %vm2269, %vm2270
  %v2272 = vsel %vm2271, %v2264, %v2268
  %v2273 = vand.u32 2147483647, %v2263
  %vm2274 = vcmp.eq.f32.partialorder %v2273, 8.507059e+37
  %v2275 = vand.u32 %v2263, 2147483648
  %v2276 = vor.u32 1.1754944e-38, %v2275
  %v2277 = vsel %vm2274, %v2276, %v2272
  %v2278 = vmul.f32 1.0, %v2277
  %v2279 = vtanh.pop %v2254
  %v2280 = vmul.f32 %v2278, %v2125
  %2282 = vrot.lane.b32.xlu0 %v2279, 64
  %v2283 = vpop.permute.xlu0 %2282
  %v2285 = vmul.f32 %v2278, %v2283
  %2287 = vrot.lane.b32.xlu0 %v2285, 32
  %v2288 = vpop.permute.xlu0 %2287
  %v2290 = vadd.f32 %v2280, %v2288
  %v2291 = vtanh.pop %v2290
  %2293 = vrot.lane.b32.xlu0 %v2291, 64
  %v2294 = vpop.permute.xlu0 %2293
  %v2296 = vmul.f32 %v2278, %v2294
  %v2297 = vxor.u32 %v2259, 2147483648
  %v2298 = vmul.f32 %v2297, 1.442695
  %v2299 = vpow.pop %v2298
  %v2300 = vadd.f32 %v2299, 1.0
  %v2301 = vrcp.pop %v2300
  %v2302 = vmul.f32 %v2300, %v2301
  %v2303 = vsub.f32 1.0, %v2302
  %v2304 = vmul.f32 %v2301, %v2303
  %v2305 = vadd.f32 %v2301, %v2304
  %vm2306 = vweird.f32 %v2300
  %vm2307 = vweird.f32 %v2301
  %vm2308 = vmor %vm2306, %vm2307
  %v2309 = vsel %vm2308, %v2301, %v2305
  %v2310 = vand.u32 2147483647, %v2300
  %vm2311 = vcmp.eq.f32.partialorder %v2310, 8.507059e+37
  %v2312 = vand.u32 %v2300, 2147483648
  %v2313 = vor.u32 1.1754944e-38, %v2312
  %v2314 = vsel %vm2311, %v2313, %v2309
  %v2315 = vmul.f32 1.0, %v2314
  %v2316 = vtanh.pop %v2259
  %v2317 = vmul.f32 %v2315, %v2162
  %2319 = vrot.lane.b32.xlu0 %v2316, 64
  %v2320 = vpop.permute.xlu0 %2319
  %v2322 = vmul.f32 %v2315, %v2320
  %2324 = vrot.lane.b32.xlu0 %v2322, 32
  %v2325 = vpop.permute.xlu0 %2324
  %v2327 = vadd.f32 %v2317, %v2325
  %v2328 = vtanh.pop %v2327
  %2330 = vrot.lane.b32.xlu0 %v2328, 64
  %v2331 = vpop.permute.xlu0 %2330
  %v2333 = vmul.f32 %v2315, %v2331
  %2335 = vst [vmem:[#allocation1] ss:$4 sm:$0xff] %v2296
  %v2336 = vld.sshfl [vmem:[#allocation1] sm:$0xff pattern:$0x73625140]
  %2337 = vrot.lane.b32.xlu0 %v2336, 32
  %v2338 = vpop.permute.xlu0 %2337
  %2340 = vst.msk [vmem:[%s819] sm:$0x3] %vm312, %v2338
  %2342 = vst [vmem:[#allocation1] ss:$4 sm:$0xff] %v2333
  %v2343 = vld.sshfl [vmem:[#allocation1] sm:$0xff pattern:$0x73625140]
  %2344 = vrot.lane.b32.xlu0 %v2343, 32
  %v2345 = vpop.permute.xlu0 %2344
  %2347 = vst.msk [vmem:[%s827] sm:$0x3] %vm312, %v2345
  %2348 = vst [vmem:[#allocation1] ss:$4 sm:$0xff] %v2296
  %v2349 = vld.sshfl [vmem:[#allocation1] sm:$0xff pattern:$0x73625140]
  %2350 = vrot.lane.b32.xlu0 %v2349, 32
  %v2351 = vpop.permute.xlu0 %2350
  %2353 = vst [vmem:[#allocation1] ss:$4 sm:$0xff] %v2333
  %v2354 = vld.sshfl [vmem:[#allocation1] sm:$0xff pattern:$0x73625140]
  %2355 = vrot.lane.b32.xlu0 %v2354, 64
  %v2356 = vpop.permute.xlu0 %2355
  %v2358 = vsel %vm73, %v2351, %v2356
  %v2359 = vld [vmem:[%s5] sm:$0xff]
  %v2360 = vld [vmem:[%s5 + $0x8] sm:$0xff]
  %v2361 = vld [vmem:[%s5 + $0x10] sm:$0xff]
  %v2362 = vld [vmem:[%s5 + $0x18] sm:$0xff]
  %v2363 = vld [vmem:[%s5 + $0x20] sm:$0xff]
  %v2364 = vld [vmem:[%s5 + $0x28] sm:$0xff]
  %v2365 = vld [vmem:[%s5 + $0x30] sm:$0xff]
  %v2366 = vld [vmem:[%s5 + $0x38] sm:$0xff]
  %v2367 = vld [vmem:[%s5 + $0x40] sm:$0xff]
  %v2368 = vld [vmem:[%s5 + $0x48] sm:$0xff]
  %v2369 = vld [vmem:[%s5 + $0x50] sm:$0xff]
  %v2370 = vld [vmem:[%s5 + $0x58] sm:$0xff]
  %v2371 = vld [vmem:[%s5 + $0x60] sm:$0xff]
  %v2372 = vld [vmem:[%s5 + $0x68] sm:$0xff]
  %v2373 = vld [vmem:[%s5 + $0x70] sm:$0xff]
  %v2374 = vld [vmem:[%s5 + $0x78] sm:$0xff]
  %v2376 = vsel %vm180, %v2358, 0
  %2378 = vmatpush.msra.mxu0 0.0
  %2379 = vmatpush.msra.mxu0 0.0
  %2380 = vmatpush.msra.mxu0 0.0
  %2381 = vmatpush.msra.mxu0 0.0
  %2382 = vmatpush.msra.mxu0 0.0
  %2383 = vmatpush.msra.mxu0 0.0
  %2384 = vmatpush.msra.mxu0 0.0
  %2385 = vmatpush.msra.mxu0 0.0
  %2386 = vmatpush.msra.mxu0 %v2373
  %2387 = vmatpush.msra.mxu0 %v2371
  %2388 = vmatpush.msra.mxu0 %v2369
  %2389 = vmatpush.msra.mxu0 %v2367
  %2390 = vmatpush.msra.mxu0 %v2365
  %2391 = vmatpush.msra.mxu0 %v2363
  %2392 = vmatpush.msra.mxu0 %v2361
  %2393 = vmatpush.msra.mxu0 %v2359
  %2394 = vmatmul.f32.gmra.mxu0 %v2376
  %v2395 = vpop.f32.mrf.mxu0
  %v2396 = vadd.f32 0.0, %v2395
  %2397 = vdwg.mxu0
  %2398 = vmatpush.msra.mxu0 0.0
  %2399 = vmatpush.msra.mxu0 0.0
  %2400 = vmatpush.msra.mxu0 0.0
  %2401 = vmatpush.msra.mxu0 0.0
  %2402 = vmatpush.msra.mxu0 0.0
  %2403 = vmatpush.msra.mxu0 0.0
  %2404 = vmatpush.msra.mxu0 0.0
  %2405 = vmatpush.msra.mxu0 0.0
  %2406 = vmatpush.msra.mxu0 %v2374
  %2407 = vmatpush.msra.mxu0 %v2372
  %2408 = vmatpush.msra.mxu0 %v2370
  %2409 = vmatpush.msra.mxu0 %v2368
  %2410 = vmatpush.msra.mxu0 %v2366
  %2411 = vmatpush.msra.mxu0 %v2364
  %2412 = vmatpush.msra.mxu0 %v2362
  %2413 = vmatpush.msra.mxu0 %v2360
  %2414 = vmatmul.f32.gmra.mxu0 %v2376
  %v2415 = vpop.f32.mrf.mxu0
  %v2416 = vadd.f32 0.0, %v2415
  %2417 = vdwg.mxu0
  %v2418 = vld [vmem:[%s733] sm:$0xf]
  %v2419 = vadd.f32 %v2418, %v2396
  %v2420 = vld [vmem:[%s730] sm:$0xf]
  %v2422 = vrot.slane %v2420, 2
  %v2424 = vadd.f32 %v2422, %v2416
  %v2425 = vxor.u32 %v2419, 2147483648
  %v2426 = vmul.f32 %v2425, 1.442695
  %v2427 = vpow.pop %v2426
  %v2428 = vadd.f32 %v2427, 1.0
  %v2429 = vrcp.pop %v2428
  %v2430 = vmul.f32 %v2428, %v2429
  %v2431 = vsub.f32 1.0, %v2430
  %v2432 = vmul.f32 %v2429, %v2431
  %v2433 = vadd.f32 %v2429, %v2432
  %vm2434 = vweird.f32 %v2428
  %vm2435 = vweird.f32 %v2429
  %vm2436 = vmor %vm2434, %vm2435
  %v2437 = vsel %vm2436, %v2429, %v2433
  %v2438 = vand.u32 2147483647, %v2428
  %vm2439 = vcmp.eq.f32.partialorder %v2438, 8.507059e+37
  %v2440 = vand.u32 %v2428, 2147483648
  %v2441 = vor.u32 1.1754944e-38, %v2440
  %v2442 = vsel %vm2439, %v2441, %v2437
  %v2443 = vmul.f32 1.0, %v2442
  %v2444 = vtanh.pop %v2419
  %v2445 = vmul.f32 %v2443, %v2290
  %2447 = vrot.lane.b32.xlu0 %v2444, 64
  %v2448 = vpop.permute.xlu0 %2447
  %v2450 = vmul.f32 %v2443, %v2448
  %2452 = vrot.lane.b32.xlu0 %v2450, 32
  %v2453 = vpop.permute.xlu0 %2452
  %v2455 = vadd.f32 %v2445, %v2453
  %v2456 = vtanh.pop %v2455
  %2458 = vrot.lane.b32.xlu0 %v2456, 64
  %v2459 = vpop.permute.xlu0 %2458
  %v2461 = vmul.f32 %v2443, %v2459
  %v2462 = vxor.u32 %v2424, 2147483648
  %v2463 = vmul.f32 %v2462, 1.442695
  %v2464 = vpow.pop %v2463
  %v2465 = vadd.f32 %v2464, 1.0
  %v2466 = vrcp.pop %v2465
  %v2467 = vmul.f32 %v2465, %v2466
  %v2468 = vsub.f32 1.0, %v2467
  %v2469 = vmul.f32 %v2466, %v2468
  %v2470 = vadd.f32 %v2466, %v2469
  %vm2471 = vweird.f32 %v2465
  %vm2472 = vweird.f32 %v2466
  %vm2473 = vmor %vm2471, %vm2472
  %v2474 = vsel %vm2473, %v2466, %v2470
  %v2475 = vand.u32 2147483647, %v2465
  %vm2476 = vcmp.eq.f32.partialorder %v2475, 8.507059e+37
  %v2477 = vand.u32 %v2465, 2147483648
  %v2478 = vor.u32 1.1754944e-38, %v2477
  %v2479 = vsel %vm2476, %v2478, %v2474
  %v2480 = vmul.f32 1.0, %v2479
  %v2481 = vtanh.pop %v2424
  %v2482 = vmul.f32 %v2480, %v2327
  %2484 = vrot.lane.b32.xlu0 %v2481, 64
  %v2485 = vpop.permute.xlu0 %2484
  %v2487 = vmul.f32 %v2480, %v2485
  %2489 = vrot.lane.b32.xlu0 %v2487, 32
  %v2490 = vpop.permute.xlu0 %2489
  %v2492 = vadd.f32 %v2482, %v2490
  %v2493 = vtanh.pop %v2492
  %2495 = vrot.lane.b32.xlu0 %v2493, 64
  %v2496 = vpop.permute.xlu0 %2495
  %v2498 = vmul.f32 %v2480, %v2496
  %2500 = vst [vmem:[#allocation1] ss:$4 sm:$0xff] %v2461
  %v2501 = vld.sshfl [vmem:[#allocation1] sm:$0xff pattern:$0x73625140]
  %2502 = vrot.lane.b32.xlu0 %v2501, 32
  %v2503 = vpop.permute.xlu0 %2502
  %2505 = vst.msk [vmem:[%s986] sm:$0x3] %vm312, %v2503
  %2507 = vst [vmem:[#allocation1] ss:$4 sm:$0xff] %v2498
  %v2508 = vld.sshfl [vmem:[#allocation1] sm:$0xff pattern:$0x73625140]
  %2509 = vrot.lane.b32.xlu0 %v2508, 32
  %v2510 = vpop.permute.xlu0 %2509
  %2512 = vst.msk [vmem:[%s994] sm:$0x3] %vm312, %v2510
  %2513 = vst [vmem:[#allocation1] ss:$4 sm:$0xff] %v2461
  %v2514 = vld.sshfl [vmem:[#allocation1] sm:$0xff pattern:$0x73625140]
  %2515 = vrot.lane.b32.xlu0 %v2514, 32
  %v2516 = vpop.permute.xlu0 %2515
  %2518 = vst [vmem:[#allocation1] ss:$4 sm:$0xff] %v2498
  %v2519 = vld.sshfl [vmem:[#allocation1] sm:$0xff pattern:$0x73625140]
  %2520 = vrot.lane.b32.xlu0 %v2519, 64
  %v2521 = vpop.permute.xlu0 %2520
  %v2523 = vsel %vm73, %v2516, %v2521
  %v2524 = vld [vmem:[%s5] sm:$0xff]
  %v2525 = vld [vmem:[%s5 + $0x8] sm:$0xff]
  %v2526 = vld [vmem:[%s5 + $0x10] sm:$0xff]
  %v2527 = vld [vmem:[%s5 + $0x18] sm:$0xff]
  %v2528 = vld [vmem:[%s5 + $0x20] sm:$0xff]
  %v2529 = vld [vmem:[%s5 + $0x28] sm:$0xff]
  %v2530 = vld [vmem:[%s5 + $0x30] sm:$0xff]
  %v2531 = vld [vmem:[%s5 + $0x38] sm:$0xff]
  %v2532 = vld [vmem:[%s5 + $0x40] sm:$0xff]
  %v2533 = vld [vmem:[%s5 + $0x48] sm:$0xff]
  %v2534 = vld [vmem:[%s5 + $0x50] sm:$0xff]
  %v2535 = vld [vmem:[%s5 + $0x58] sm:$0xff]
  %v2536 = vld [vmem:[%s5 + $0x60] sm:$0xff]
  %v2537 = vld [vmem:[%s5 + $0x68] sm:$0xff]
  %v2538 = vld [vmem:[%s5 + $0x70] sm:$0xff]
  %v2539 = vld [vmem:[%s5 + $0x78] sm:$0xff]
  %v2541 = vsel %vm180, %v2523, 0
  %2543 = vmatpush.msra.mxu0 0.0
  %2544 = vmatpush.msra.mxu0 0.0
  %2545 = vmatpush.msra.mxu0 0.0
  %2546 = vmatpush.msra.mxu0 0.0
  %2547 = vmatpush.msra.mxu0 0.0
  %2548 = vmatpush.msra.mxu0 0.0
  %2549 = vmatpush.msra.mxu0 0.0
  %2550 = vmatpush.msra.mxu0 0.0
  %2551 = vmatpush.msra.mxu0 %v2538
  %2552 = vmatpush.msra.mxu0 %v2536
  %2553 = vmatpush.msra.mxu0 %v2534
  %2554 = vmatpush.msra.mxu0 %v2532
  %2555 = vmatpush.msra.mxu0 %v2530
  %2556 = vmatpush.msra.mxu0 %v2528
  %2557 = vmatpush.msra.mxu0 %v2526
  %2558 = vmatpush.msra.mxu0 %v2524
  %2559 = vmatmul.f32.gmra.mxu0 %v2541
  %v2560 = vpop.f32.mrf.mxu0
  %v2561 = vadd.f32 0.0, %v2560
  %2562 = vdwg.mxu0
  %2563 = vmatpush.msra.mxu0 0.0
  %2564 = vmatpush.msra.mxu0 0.0
  %2565 = vmatpush.msra.mxu0 0.0
  %2566 = vmatpush.msra.mxu0 0.0
  %2567 = vmatpush.msra.mxu0 0.0
  %2568 = vmatpush.msra.mxu0 0.0
  %2569 = vmatpush.msra.mxu0 0.0
  %2570 = vmatpush.msra.mxu0 0.0
  %2571 = vmatpush.msra.mxu0 %v2539
  %2572 = vmatpush.msra.mxu0 %v2537
  %2573 = vmatpush.msra.mxu0 %v2535
  %2574 = vmatpush.msra.mxu0 %v2533
  %2575 = vmatpush.msra.mxu0 %v2531
  %2576 = vmatpush.msra.mxu0 %v2529
  %2577 = vmatpush.msra.mxu0 %v2527
  %2578 = vmatpush.msra.mxu0 %v2525
  %2579 = vmatmul.f32.gmra.mxu0 %v2541
  %v2580 = vpop.f32.mrf.mxu0
  %v2581 = vadd.f32 0.0, %v2580
  %2582 = vdwg.mxu0
  %v2583 = vld [vmem:[%s564] sm:$0xf]
  %v2584 = vadd.f32 %v2583, %v2561
  %v2585 = vld [vmem:[%s561] sm:$0xf]
  %v2587 = vrot.slane %v2585, 2
  %v2589 = vadd.f32 %v2587, %v2581
  %v2590 = vxor.u32 %v2584, 2147483648
  %v2591 = vmul.f32 %v2590, 1.442695
  %v2592 = vpow.pop %v2591
  %v2593 = vadd.f32 %v2592, 1.0
  %v2594 = vrcp.pop %v2593
  %v2595 = vmul.f32 %v2593, %v2594
  %v2596 = vsub.f32 1.0, %v2595
  %v2597 = vmul.f32 %v2594, %v2596
  %v2598 = vadd.f32 %v2594, %v2597
  %vm2599 = vweird.f32 %v2593
  %vm2600 = vweird.f32 %v2594
  %vm2601 = vmor %vm2599, %vm2600
  %v2602 = vsel %vm2601, %v2594, %v2598
  %v2603 = vand.u32 2147483647, %v2593
  %vm2604 = vcmp.eq.f32.partialorder %v2603, 8.507059e+37
  %v2605 = vand.u32 %v2593, 2147483648
  %v2606 = vor.u32 1.1754944e-38, %v2605
  %v2607 = vsel %vm2604, %v2606, %v2602
  %v2608 = vmul.f32 1.0, %v2607
  %v2609 = vtanh.pop %v2584
  %v2610 = vmul.f32 %v2608, %v2455
  %2612 = vrot.lane.b32.xlu0 %v2609, 64
  %v2613 = vpop.permute.xlu0 %2612
  %v2615 = vmul.f32 %v2608, %v2613
  %2617 = vrot.lane.b32.xlu0 %v2615, 32
  %v2618 = vpop.permute.xlu0 %2617
  %v2620 = vadd.f32 %v2610, %v2618
  %v2621 = vtanh.pop %v2620
  %2623 = vrot.lane.b32.xlu0 %v2621, 64
  %v2624 = vpop.permute.xlu0 %2623
  %v2626 = vmul.f32 %v2608, %v2624
  %v2627 = vxor.u32 %v2589, 2147483648
  %v2628 = vmul.f32 %v2627, 1.442695
  %v2629 = vpow.pop %v2628
  %v2630 = vadd.f32 %v2629, 1.0
  %v2631 = vrcp.pop %v2630
  %v2632 = vmul.f32 %v2630, %v2631
  %v2633 = vsub.f32 1.0, %v2632
  %v2634 = vmul.f32 %v2631, %v2633
  %v2635 = vadd.f32 %v2631, %v2634
  %vm2636 = vweird.f32 %v2630
  %vm2637 = vweird.f32 %v2631
  %vm2638 = vmor %vm2636, %vm2637
  %v2639 = vsel %vm2638, %v2631, %v2635
  %v2640 = vand.u32 2147483647, %v2630
  %vm2641 = vcmp.eq.f32.partialorder %v2640, 8.507059e+37
  %v2642 = vand.u32 %v2630, 2147483648
  %v2643 = vor.u32 1.1754944e-38, %v2642
  %v2644 = vsel %vm2641, %v2643, %v2639
  %v2645 = vmul.f32 1.0, %v2644
  %v2646 = vtanh.pop %v2589
  %v2647 = vmul.f32 %v2645, %v2492
  %2649 = vrot.lane.b32.xlu0 %v2646, 64
  %v2650 = vpop.permute.xlu0 %2649
  %v2652 = vmul.f32 %v2645, %v2650
  %2654 = vrot.lane.b32.xlu0 %v2652, 32
  %v2655 = vpop.permute.xlu0 %2654
  %v2657 = vadd.f32 %v2647, %v2655
  %v2658 = vtanh.pop %v2657
  %2660 = vrot.lane.b32.xlu0 %v2658, 64
  %v2661 = vpop.permute.xlu0 %2660
  %v2663 = vmul.f32 %v2645, %v2661
  %2665 = vst [vmem:[#allocation1] ss:$4 sm:$0xff] %v2626
  %v2666 = vld.sshfl [vmem:[#allocation1] sm:$0xff pattern:$0x73625140]
  %2667 = vrot.lane.b32.xlu0 %v2666, 32
  %v2668 = vpop.permute.xlu0 %2667
  %2670 = vst.msk [vmem:[%s1153] sm:$0x3] %vm312, %v2668
  %2672 = vst [vmem:[#allocation1] ss:$4 sm:$0xff] %v2663
  %v2673 = vld.sshfl [vmem:[#allocation1] sm:$0xff pattern:$0x73625140]
  %2674 = vrot.lane.b32.xlu0 %v2673, 32
  %v2675 = vpop.permute.xlu0 %2674
  %2677 = vst.msk [vmem:[%s1161] sm:$0x3] %vm312, %v2675
  %2678 = vst [vmem:[#allocation1] ss:$4 sm:$0xff] %v2626
  %v2679 = vld.sshfl [vmem:[#allocation1] sm:$0xff pattern:$0x73625140]
  %2680 = vrot.lane.b32.xlu0 %v2679, 32
  %v2681 = vpop.permute.xlu0 %2680
  %2683 = vst [vmem:[#allocation1] ss:$4 sm:$0xff] %v2663
  %v2684 = vld.sshfl [vmem:[#allocation1] sm:$0xff pattern:$0x73625140]
  %2685 = vrot.lane.b32.xlu0 %v2684, 64
  %v2686 = vpop.permute.xlu0 %2685
  %v2688 = vsel %vm73, %v2681, %v2686
  %v2689 = vld [vmem:[%s5] sm:$0xff]
  %v2690 = vld [vmem:[%s5 + $0x8] sm:$0xff]
  %v2691 = vld [vmem:[%s5 + $0x10] sm:$0xff]
  %v2692 = vld [vmem:[%s5 + $0x18] sm:$0xff]
  %v2693 = vld [vmem:[%s5 + $0x20] sm:$0xff]
  %v2694 = vld [vmem:[%s5 + $0x28] sm:$0xff]
  %v2695 = vld [vmem:[%s5 + $0x30] sm:$0xff]
  %v2696 = vld [vmem:[%s5 + $0x38] sm:$0xff]
  %v2697 = vld [vmem:[%s5 + $0x40] sm:$0xff]
  %v2698 = vld [vmem:[%s5 + $0x48] sm:$0xff]
  %v2699 = vld [vmem:[%s5 + $0x50] sm:$0xff]
  %v2700 = vld [vmem:[%s5 + $0x58] sm:$0xff]
  %v2701 = vld [vmem:[%s5 + $0x60] sm:$0xff]
  %v2702 = vld [vmem:[%s5 + $0x68] sm:$0xff]
  %v2703 = vld [vmem:[%s5 + $0x70] sm:$0xff]
  %v2704 = vld [vmem:[%s5 + $0x78] sm:$0xff]
  %v2706 = vsel %vm180, %v2688, 0
  %2708 = vmatpush.msra.mxu0 0.0
  %2709 = vmatpush.msra.mxu0 0.0
  %2710 = vmatpush.msra.mxu0 0.0
  %2711 = vmatpush.msra.mxu0 0.0
  %2712 = vmatpush.msra.mxu0 0.0
  %2713 = vmatpush.msra.mxu0 0.0
  %2714 = vmatpush.msra.mxu0 0.0
  %2715 = vmatpush.msra.mxu0 0.0
  %2716 = vmatpush.msra.mxu0 %v2703
  %2717 = vmatpush.msra.mxu0 %v2701
  %2718 = vmatpush.msra.mxu0 %v2699
  %2719 = vmatpush.msra.mxu0 %v2697
  %2720 = vmatpush.msra.mxu0 %v2695
  %2721 = vmatpush.msra.mxu0 %v2693
  %2722 = vmatpush.msra.mxu0 %v2691
  %2723 = vmatpush.msra.mxu0 %v2689
  %2724 = vmatmul.f32.gmra.mxu0 %v2706
  %v2725 = vpop.f32.mrf.mxu0
  %v2726 = vadd.f32 0.0, %v2725
  %2727 = vdwg.mxu0
  %2728 = vmatpush.msra.mxu0 0.0
  %2729 = vmatpush.msra.mxu0 0.0
  %2730 = vmatpush.msra.mxu0 0.0
  %2731 = vmatpush.msra.mxu0 0.0
  %2732 = vmatpush.msra.mxu0 0.0
  %2733 = vmatpush.msra.mxu0 0.0
  %2734 = vmatpush.msra.mxu0 0.0
  %2735 = vmatpush.msra.mxu0 0.0
  %2736 = vmatpush.msra.mxu0 %v2704
  %2737 = vmatpush.msra.mxu0 %v2702
  %2738 = vmatpush.msra.mxu0 %v2700
  %2739 = vmatpush.msra.mxu0 %v2698
  %2740 = vmatpush.msra.mxu0 %v2696
  %2741 = vmatpush.msra.mxu0 %v2694
  %2742 = vmatpush.msra.mxu0 %v2692
  %2743 = vmatpush.msra.mxu0 %v2690
  %2744 = vmatmul.f32.gmra.mxu0 %v2706
  %v2745 = vpop.f32.mrf.mxu0
  %v2746 = vadd.f32 0.0, %v2745
  %2747 = vdwg.mxu0
  %v2748 = vld [vmem:[%s395] sm:$0xf]
  %v2749 = vadd.f32 %v2748, %v2726
  %v2750 = vld [vmem:[%s392] sm:$0xf]
  %v2752 = vrot.slane %v2750, 2
  %v2754 = vadd.f32 %v2752, %v2746
  %v2755 = vxor.u32 %v2749, 2147483648
  %v2756 = vmul.f32 %v2755, 1.442695
  %v2757 = vpow.pop %v2756
  %v2758 = vadd.f32 %v2757, 1.0
  %v2759 = vrcp.pop %v2758
  %v2760 = vmul.f32 %v2758, %v2759
  %v2761 = vsub.f32 1.0, %v2760
  %v2762 = vmul.f32 %v2759, %v2761
  %v2763 = vadd.f32 %v2759, %v2762
  %vm2764 = vweird.f32 %v2758
  %vm2765 = vweird.f32 %v2759
  %vm2766 = vmor %vm2764, %vm2765
  %v2767 = vsel %vm2766, %v2759, %v2763
  %v2768 = vand.u32 2147483647, %v2758
  %vm2769 = vcmp.eq.f32.partialorder %v2768, 8.507059e+37
  %v2770 = vand.u32 %v2758, 2147483648
  %v2771 = vor.u32 1.1754944e-38, %v2770
  %v2772 = vsel %vm2769, %v2771, %v2767
  %v2773 = vmul.f32 1.0, %v2772
  %v2774 = vtanh.pop %v2749
  %v2775 = vmul.f32 %v2773, %v2620
  %2777 = vrot.lane.b32.xlu0 %v2774, 64
  %v2778 = vpop.permute.xlu0 %2777
  %v2780 = vmul.f32 %v2773, %v2778
  %2782 = vrot.lane.b32.xlu0 %v2780, 32
  %v2783 = vpop.permute.xlu0 %2782
  %v2785 = vadd.f32 %v2775, %v2783
  %v2786 = vtanh.pop %v2785
  %2788 = vrot.lane.b32.xlu0 %v2786, 64
  %v2789 = vpop.permute.xlu0 %2788
  %v2791 = vmul.f32 %v2773, %v2789
  %v2792 = vxor.u32 %v2754, 2147483648
  %v2793 = vmul.f32 %v2792, 1.442695
  %v2794 = vpow.pop %v2793
  %v2795 = vadd.f32 %v2794, 1.0
  %v2796 = vrcp.pop %v2795
  %v2797 = vmul.f32 %v2795, %v2796
  %v2798 = vsub.f32 1.0, %v2797
  %v2799 = vmul.f32 %v2796, %v2798
  %v2800 = vadd.f32 %v2796, %v2799
  %vm2801 = vweird.f32 %v2795
  %vm2802 = vweird.f32 %v2796
  %vm2803 = vmor %vm2801, %vm2802
  %v2804 = vsel %vm2803, %v2796, %v2800
  %v2805 = vand.u32 2147483647, %v2795
  %vm2806 = vcmp.eq.f32.partialorder %v2805, 8.507059e+37
  %v2807 = vand.u32 %v2795, 2147483648
  %v2808 = vor.u32 1.1754944e-38, %v2807
  %v2809 = vsel %vm2806, %v2808, %v2804
  %v2810 = vmul.f32 1.0, %v2809
  %v2811 = vtanh.pop %v2754
  %v2812 = vmul.f32 %v2810, %v2657
  %2814 = vrot.lane.b32.xlu0 %v2811, 64
  %v2815 = vpop.permute.xlu0 %2814
  %v2817 = vmul.f32 %v2810, %v2815
  %2819 = vrot.lane.b32.xlu0 %v2817, 32
  %v2820 = vpop.permute.xlu0 %2819
  %v2822 = vadd.f32 %v2812, %v2820
  %v2823 = vtanh.pop %v2822
  %2825 = vrot.lane.b32.xlu0 %v2823, 64
  %v2826 = vpop.permute.xlu0 %2825
  %v2828 = vmul.f32 %v2810, %v2826
  %2830 = vst [vmem:[#allocation1] ss:$4 sm:$0xff] %v2791
  %v2831 = vld.sshfl [vmem:[#allocation1] sm:$0xff pattern:$0x73625140]
  %2832 = vrot.lane.b32.xlu0 %v2831, 32
  %v2833 = vpop.permute.xlu0 %2832
  %2835 = vst.msk [vmem:[%s1320] sm:$0x3] %vm312, %v2833
  %2837 = vst [vmem:[#allocation1] ss:$4 sm:$0xff] %v2828
  %v2838 = vld.sshfl [vmem:[#allocation1] sm:$0xff pattern:$0x73625140]
  %2839 = vrot.lane.b32.xlu0 %v2838, 32
  %v2840 = vpop.permute.xlu0 %2839
  %2842 = vst.msk [vmem:[%s1328] sm:$0x3] %vm312, %v2840
  %2843 = vst [vmem:[#allocation1] ss:$4 sm:$0xff] %v2791
  %v2844 = vld.sshfl [vmem:[#allocation1] sm:$0xff pattern:$0x73625140]
  %2845 = vrot.lane.b32.xlu0 %v2844, 32
  %v2846 = vpop.permute.xlu0 %2845
  %2848 = vst [vmem:[#allocation1] ss:$4 sm:$0xff] %v2828
  %v2849 = vld.sshfl [vmem:[#allocation1] sm:$0xff pattern:$0x73625140]
  %2850 = vrot.lane.b32.xlu0 %v2849, 64
  %v2851 = vpop.permute.xlu0 %2850
  %v2853 = vsel %vm73, %v2846, %v2851
  %v2854 = vld [vmem:[%s5] sm:$0xff]
  %v2855 = vld [vmem:[%s5 + $0x8] sm:$0xff]
  %v2856 = vld [vmem:[%s5 + $0x10] sm:$0xff]
  %v2857 = vld [vmem:[%s5 + $0x18] sm:$0xff]
  %v2858 = vld [vmem:[%s5 + $0x20] sm:$0xff]
  %v2859 = vld [vmem:[%s5 + $0x28] sm:$0xff]
  %v2860 = vld [vmem:[%s5 + $0x30] sm:$0xff]
  %v2861 = vld [vmem:[%s5 + $0x38] sm:$0xff]
  %v2862 = vld [vmem:[%s5 + $0x40] sm:$0xff]
  %v2863 = vld [vmem:[%s5 + $0x48] sm:$0xff]
  %v2864 = vld [vmem:[%s5 + $0x50] sm:$0xff]
  %v2865 = vld [vmem:[%s5 + $0x58] sm:$0xff]
  %v2866 = vld [vmem:[%s5 + $0x60] sm:$0xff]
  %v2867 = vld [vmem:[%s5 + $0x68] sm:$0xff]
  %v2868 = vld [vmem:[%s5 + $0x70] sm:$0xff]
  %v2869 = vld [vmem:[%s5 + $0x78] sm:$0xff]
  %v2871 = vsel %vm180, %v2853, 0
  %2873 = vmatpush.msra.mxu0 0.0
  %2874 = vmatpush.msra.mxu0 0.0
  %2875 = vmatpush.msra.mxu0 0.0
  %2876 = vmatpush.msra.mxu0 0.0
  %2877 = vmatpush.msra.mxu0 0.0
  %2878 = vmatpush.msra.mxu0 0.0
  %2879 = vmatpush.msra.mxu0 0.0
  %2880 = vmatpush.msra.mxu0 0.0
  %2881 = vmatpush.msra.mxu0 %v2868
  %2882 = vmatpush.msra.mxu0 %v2866
  %2883 = vmatpush.msra.mxu0 %v2864
  %2884 = vmatpush.msra.mxu0 %v2862
  %2885 = vmatpush.msra.mxu0 %v2860
  %2886 = vmatpush.msra.mxu0 %v2858
  %2887 = vmatpush.msra.mxu0 %v2856
  %2888 = vmatpush.msra.mxu0 %v2854
  %2889 = vmatmul.f32.gmra.mxu0 %v2871
  %v2890 = vpop.f32.mrf.mxu0
  %v2891 = vadd.f32 0.0, %v2890
  %2892 = vdwg.mxu0
  %2893 = vmatpush.msra.mxu0 0.0
  %2894 = vmatpush.msra.mxu0 0.0
  %2895 = vmatpush.msra.mxu0 0.0
  %2896 = vmatpush.msra.mxu0 0.0
  %2897 = vmatpush.msra.mxu0 0.0
  %2898 = vmatpush.msra.mxu0 0.0
  %2899 = vmatpush.msra.mxu0 0.0
  %2900 = vmatpush.msra.mxu0 0.0
  %2901 = vmatpush.msra.mxu0 %v2869
  %2902 = vmatpush.msra.mxu0 %v2867
  %2903 = vmatpush.msra.mxu0 %v2865
  %2904 = vmatpush.msra.mxu0 %v2863
  %2905 = vmatpush.msra.mxu0 %v2861
  %2906 = vmatpush.msra.mxu0 %v2859
  %2907 = vmatpush.msra.mxu0 %v2857
  %2908 = vmatpush.msra.mxu0 %v2855
  %2909 = vmatmul.f32.gmra.mxu0 %v2871
  %v2910 = vpop.f32.mrf.mxu0
  %v2911 = vadd.f32 0.0, %v2910
  %2912 = vdwg.mxu0
  %v2913 = vld [vmem:[%s226] sm:$0xf]
  %v2914 = vadd.f32 %v2913, %v2891
  %v2915 = vld [vmem:[#allocation2] sm:$0xf]
  %v2917 = vrot.slane %v2915, 2
  %v2919 = vadd.f32 %v2917, %v2911
  %v2920 = vxor.u32 %v2914, 2147483648
  %v2921 = vmul.f32 %v2920, 1.442695
  %v2922 = vpow.pop %v2921
  %v2923 = vadd.f32 %v2922, 1.0
  %v2924 = vrcp.pop %v2923
  %v2925 = vmul.f32 %v2923, %v2924
  %v2926 = vsub.f32 1.0, %v2925
  %v2927 = vmul.f32 %v2924, %v2926
  %v2928 = vadd.f32 %v2924, %v2927
  %vm2929 = vweird.f32 %v2923
  %vm2930 = vweird.f32 %v2924
  %vm2931 = vmor %vm2929, %vm2930
  %v2932 = vsel %vm2931, %v2924, %v2928
  %v2933 = vand.u32 2147483647, %v2923
  %vm2934 = vcmp.eq.f32.partialorder %v2933, 8.507059e+37
  %v2935 = vand.u32 %v2923, 2147483648
  %v2936 = vor.u32 1.1754944e-38, %v2935
  %v2937 = vsel %vm2934, %v2936, %v2932
  %v2938 = vmul.f32 1.0, %v2937
  %v2939 = vtanh.pop %v2914
  %v2940 = vmul.f32 %v2938, %v2785
  %2942 = vrot.lane.b32.xlu0 %v2939, 64
  %v2943 = vpop.permute.xlu0 %2942
  %v2945 = vmul.f32 %v2938, %v2943
  %2947 = vrot.lane.b32.xlu0 %v2945, 32
  %v2948 = vpop.permute.xlu0 %2947
  %v2950 = vadd.f32 %v2940, %v2948
  %v2951 = vtanh.pop %v2950
  %2953 = vrot.lane.b32.xlu0 %v2951, 64
  %v2954 = vpop.permute.xlu0 %2953
  %v2956 = vmul.f32 %v2938, %v2954
  %v2957 = vxor.u32 %v2919, 2147483648
  %v2958 = vmul.f32 %v2957, 1.442695
  %v2959 = vpow.pop %v2958
  %v2960 = vadd.f32 %v2959, 1.0
  %v2961 = vrcp.pop %v2960
  %v2962 = vmul.f32 %v2960, %v2961
  %v2963 = vsub.f32 1.0, %v2962
  %v2964 = vmul.f32 %v2961, %v2963
  %v2965 = vadd.f32 %v2961, %v2964
  %vm2966 = vweird.f32 %v2960
  %vm2967 = vweird.f32 %v2961
  %vm2968 = vmor %vm2966, %vm2967
  %v2969 = vsel %vm2968, %v2961, %v2965
  %v2970 = vand.u32 2147483647, %v2960
  %vm2971 = vcmp.eq.f32.partialorder %v2970, 8.507059e+37
  %v2972 = vand.u32 %v2960, 2147483648
  %v2973 = vor.u32 1.1754944e-38, %v2972
  %v2974 = vsel %vm2971, %v2973, %v2969
  %v2975 = vmul.f32 1.0, %v2974
  %v2976 = vtanh.pop %v2919
  %v2977 = vmul.f32 %v2975, %v2822
  %2979 = vrot.lane.b32.xlu0 %v2976, 64
  %v2980 = vpop.permute.xlu0 %2979
  %v2982 = vmul.f32 %v2975, %v2980
  %2984 = vrot.lane.b32.xlu0 %v2982, 32
  %v2985 = vpop.permute.xlu0 %2984
  %v2987 = vadd.f32 %v2977, %v2985
  %v2988 = vtanh.pop %v2987
  %2990 = vrot.lane.b32.xlu0 %v2988, 64
  %v2991 = vpop.permute.xlu0 %2990
  %v2993 = vmul.f32 %v2975, %v2991
  %2995 = vst [vmem:[#allocation1] ss:$4 sm:$0xff] %v2956
  %v2996 = vld.sshfl [vmem:[#allocation1] sm:$0xff pattern:$0x73625140]
  %2997 = vrot.lane.b32.xlu0 %v2996, 32
  %v2998 = vpop.permute.xlu0 %2997
  %3000 = vst.msk [vmem:[%s1487] sm:$0x3] %vm312, %v2998
  %3002 = vst [vmem:[#allocation1] ss:$4 sm:$0xff] %v2993
  %v3003 = vld.sshfl [vmem:[#allocation1] sm:$0xff pattern:$0x73625140]
  %3004 = vrot.lane.b32.xlu0 %v3003, 32
  %v3005 = vpop.permute.xlu0 %3004
  %3007 = vst.msk [vmem:[#allocation4] sm:$0x3] %vm312, %v3005
  %v3008 = vld [vmem:[#allocation3] sm:$0x3]
  %v3009 = vld [vmem:[#allocation3 + $0x2] sm:$0x3]
  %v3010 = vld [vmem:[#allocation3 + $0x4] sm:$0x3]
  %v3011 = vld [vmem:[#allocation3 + $0x6] sm:$0x3]
  %v3012 = vld [vmem:[#allocation3 + $0x8] sm:$0x3]
  %v3013 = vld [vmem:[#allocation3 + $0xa] sm:$0x3]
  %v3014 = vld [vmem:[#allocation3 + $0xc] sm:$0x3]
  %v3015 = vld [vmem:[#allocation3 + $0xe] sm:$0x3]
  %3016 = vst.msk [vmem:[%s7] sm:$0x3] %vm312, %v3008
  %3017 = vst.msk [vmem:[%s7 + $0x2] sm:$0x3] %vm312, %v3009
  %3018 = vst.msk [vmem:[%s7 + $0x4] sm:$0x3] %vm312, %v3010
  %3019 = vst.msk [vmem:[%s7 + $0x6] sm:$0x3] %vm312, %v3011
  %3020 = vst.msk [vmem:[%s7 + $0x8] sm:$0x3] %vm312, %v3012
  %3021 = vst.msk [vmem:[%s7 + $0xa] sm:$0x3] %vm312, %v3013
  %3022 = vst.msk [vmem:[%s7 + $0xc] sm:$0x3] %vm312, %v3014
  %3023 = vst.msk [vmem:[%s7 + $0xe] sm:$0x3] %vm312, %v3015
  %v3024 = vld [vmem:[#allocation4] sm:$0x3]
  %v3025 = vld [vmem:[#allocation4 + $0x2] sm:$0x3]
  %v3026 = vld [vmem:[#allocation4 + $0x4] sm:$0x3]
  %v3027 = vld [vmem:[#allocation4 + $0x6] sm:$0x3]
  %v3028 = vld [vmem:[#allocation4 + $0x8] sm:$0x3]
  %v3029 = vld [vmem:[#allocation4 + $0xa] sm:$0x3]
  %v3030 = vld [vmem:[#allocation4 + $0xc] sm:$0x3]
  %v3031 = vld [vmem:[#allocation4 + $0xe] sm:$0x3]
  %3040 = vrot.lane.b32.xlu0 %v3024, 32
  %v3041 = vpop.permute.xlu0 %3040
  %3042 = vrot.lane.b32.xlu0 %v3025, 32
  %v3043 = vpop.permute.xlu0 %3042
  %3044 = vrot.lane.b32.xlu0 %v3026, 32
  %v3045 = vpop.permute.xlu0 %3044
  %3046 = vrot.lane.b32.xlu0 %v3027, 32
  %v3047 = vpop.permute.xlu0 %3046
  %3048 = vrot.lane.b32.xlu0 %v3028, 32
  %v3049 = vpop.permute.xlu0 %3048
  %3050 = vrot.lane.b32.xlu0 %v3029, 32
  %v3051 = vpop.permute.xlu0 %3050
  %3052 = vrot.lane.b32.xlu0 %v3030, 32
  %v3053 = vpop.permute.xlu0 %3052
  %3054 = vrot.lane.b32.xlu0 %v3031, 32
  %v3055 = vpop.permute.xlu0 %3054
  %3064 = vst.msk [vmem:[%s7] sm:$0x3] %vm1552, %v3041
  %3065 = vst.msk [vmem:[%s7 + $0x2] sm:$0x3] %vm1552, %v3043
  %3066 = vst.msk [vmem:[%s7 + $0x4] sm:$0x3] %vm1552, %v3045
  %3067 = vst.msk [vmem:[%s7 + $0x6] sm:$0x3] %vm1552, %v3047
  %3068 = vst.msk [vmem:[%s7 + $0x8] sm:$0x3] %vm1552, %v3049
  %3069 = vst.msk [vmem:[%s7 + $0xa] sm:$0x3] %vm1552, %v3051
  %3070 = vst.msk [vmem:[%s7 + $0xc] sm:$0x3] %vm1552, %v3053
  %3071 = vst.msk [vmem:[%s7 + $0xe] sm:$0x3] %vm1552, %v3055
  // Predicated region
  $region30: #{bilstm_forward.1} parent=0 // pred_check
    _
  $region31: #{bilstm_forward.1} parent=0 // pred_check_branch
    %3073 = sbr.rel (0) target = $region33
  $region32: #{bilstm_forward.1} parent=0 // pred_region
    _
  $region33: #{bilstm_forward.1} parent=0 // pred_fallthru
    _
  // Predicated region
  $region34: #{bilstm_forward.1} parent=0 // pred_check
    _
  $region35: #{bilstm_forward.1} parent=0 // pred_check_branch
    %3075 = sbr.rel (0) target = $region37
  $region36: #{bilstm_forward.1} parent=0 // pred_region
    _
  $region37: #{bilstm_forward.1} parent=0 // pred_fallthru
    _

</llo_original>
